<compile_context>
chip_gen: v7x
topology: tpu7x:2x2x1
jax: 0.10.0
libtpu: 0.0.40
codegen_flags: <defaults>
</compile_context>

<pallas_src>
import functools

import jax
import jax.numpy as jnp
from jax.experimental import pallas as pl
from jax.experimental.pallas import tpu as pltpu


def _round_up(x, m):
    return (x + m - 1) // m * m


# ---------------------------------------------------------------------------
# Fused encoder kernel (one grid step == one batch element).
# ---------------------------------------------------------------------------
def _encoder_kernel(cols1_ref, mask_l_ref, mask_r_ref,
                    w1_ref, b1_ref, w2_ref, b2_ref, w3_ref, b3_ref,
                    fcw_ref, fcb_ref, o_ref, q_ref, *, H1, W1, OFF):
    HW = H1 * W1
    C = w2_ref.shape[-1]           # conv width (32)

    # Zero the padded scratch; only the halo rows actually need to stay zero,
    # the data region [OFF, OFF+HW) is overwritten below.
    q_ref[...] = jnp.zeros_like(q_ref)

    mask_l = mask_l_ref[...]       # (HW, 1) f32: zero where w == 0
    mask_r = mask_r_ref[...]       # (HW, 1) f32: zero where w == W1-1

    # ---- conv1: stride-2 3x3 conv as a single bf16 GEMM over im2col patches.
    y1 = jnp.dot(cols1_ref[0], w1_ref[...],
                 preferred_element_type=jnp.float32)          # (HW, 32) f32
    y1 = jnp.maximum(y1 + b1_ref[...], 0.0)

    def conv3x3_same(x, w9_ref, bias, residual=None):
        # x: (HW, C) activation, rows ordered row-major over the (H1, W1) grid.
        # Shift trick: write x into an H-padded flat buffer; the 3x3 tap at
        # offset (dh, dw) is then a contiguous slice starting at
        # OFF + dh*W1 + dw.  W-direction wrap is removed with column masks.
        q_ref[OFF:OFF + HW, :] = x
        acc = jnp.zeros((HW, C), jnp.float32)
        for i in range(3):                     # kh
            for j in range(3):                 # kw
                start = OFF + (i - 1) * W1 + (j - 1)
                win = q_ref[start:start + HW, :]
                if j == 0:
                    win = win * mask_l
                elif j == 2:
                    win = win * mask_r
                acc = acc + jnp.dot(win, w9_ref[i * 3 + j],
                                    preferred_element_type=jnp.float32)
        acc = acc + bias
        if residual is not None:
            acc = acc + residual
        return jnp.maximum(acc, 0.0)

    y2 = conv3x3_same(y1, w2_ref, b2_ref[...])
    y3 = conv3x3_same(y2, w3_ref, b3_ref[...], residual=y1)

    # ---- global average pool (as an MXU dot) fused with the fc head.
    ones_row = jnp.full((1, HW), 1.0 / HW, dtype=jnp.float32)
    feat = jnp.dot(ones_row, y3, preferred_element_type=jnp.float32)   # (1, 32)
    out = jnp.dot(feat, fcw_ref[...],
                  preferred_element_type=jnp.float32) + fcb_ref[...]   # (1, F)
    o_ref[0] = out.astype(o_ref.dtype)


# ---------------------------------------------------------------------------
# XLA glue: im2col for the stride-2 stem only + weight re-layout.
# ---------------------------------------------------------------------------
def im2col(x_nhwc, stride):
    B, H, W, C = x_nhwc.shape
    k, pad = 3, 1
    xp = jnp.pad(x_nhwc, ((0, 0), (pad, pad), (pad, pad), (0, 0)))
    Ho = (H + 2 * pad - k) // stride + 1
    Wo = (W + 2 * pad - k) // stride + 1
    patches = []
    for di in range(k):
        for dj in range(k):
            patches.append(xp[:, di:di + stride * Ho:stride,
                              dj:dj + stride * Wo:stride, :])
    cols = jnp.stack(patches, axis=3)                 # (B, Ho, Wo, 9, C)
    cols = cols.reshape(B, Ho * Wo, k * k * C)        # patch order (kh, kw, Cin)
    return cols, (B, Ho, Wo)


def conv_weight_to_gemm(w_oihw):
    # (Cout, Cin, kh, kw) -> (kh*kw*Cin, Cout), matching im2col patch order.
    Cout, Cin, kh, kw = w_oihw.shape
    return jnp.transpose(w_oihw, (2, 3, 1, 0)).reshape(kh * kw * Cin, Cout)


def conv_weight_to_taps(w_oihw):
    # (Cout, Cin, 3, 3) -> (9, Cin, Cout), tap index t = kh*3 + kw.
    Cout, Cin, kh, kw = w_oihw.shape
    return jnp.transpose(w_oihw, (2, 3, 1, 0)).reshape(kh * kw, Cin, Cout)


# ---------------------------------------------------------------------------
# Parameters + forward
# ---------------------------------------------------------------------------
def init_params(key, c_in, feature_dim=256, width=32):
    keys = jax.random.split(key, 8)
    s = 0.1
    return {
        "conv1_w": s * jax.random.normal(keys[0], (width, c_in, 3, 3), jnp.float32),
        "conv1_b": s * jax.random.normal(keys[1], (width,), jnp.float32),
        "conv2_w": s * jax.random.normal(keys[2], (width, width, 3, 3), jnp.float32),
        "conv2_b": s * jax.random.normal(keys[3], (width,), jnp.float32),
        "conv3_w": s * jax.random.normal(keys[4], (width, width, 3, 3), jnp.float32),
        "conv3_b": s * jax.random.normal(keys[5], (width,), jnp.float32),
        "fc_w":    s * jax.random.normal(keys[6], (feature_dim, width), jnp.float32),
        "fc_b":    s * jax.random.normal(keys[7], (feature_dim,), jnp.float32),
    }


def resnet_encoder_forward(params, obs_nchw):
    # layout: input is NCHW (PyTorch convention); converted to NHWC internally.
    x = jnp.transpose(obs_nchw, (0, 2, 3, 1)).astype(jnp.bfloat16)
    width = params["conv2_w"].shape[0]
    feature_dim = params["fc_w"].shape[0]

    cols1, (B, H1, W1) = im2col(x, stride=2)          # (B, H1*W1, 9*Cin) bf16
    HW = H1 * W1
    K1 = cols1.shape[-1]

    # W-boundary masks for the in-kernel shifted-stencil convs.
    col = jnp.arange(HW, dtype=jnp.int32) % W1
    mask_l = (col != 0).astype(jnp.float32).reshape(HW, 1)
    mask_r = (col != (W1 - 1)).astype(jnp.float32).reshape(HW, 1)

    # Kernel-layout weights (bf16 only for the big conv1 A-stream path).
    w1g = conv_weight_to_gemm(params["conv1_w"]).astype(jnp.bfloat16)   # (K1, 32)
    w2g = conv_weight_to_taps(params["conv2_w"]).astype(jnp.float32)    # (9, 32, 32)
    w3g = conv_weight_to_taps(params["conv3_w"]).astype(jnp.float32)
    b1 = params["conv1_b"].reshape(1, width).astype(jnp.float32)
    b2 = params["conv2_b"].reshape(1, width).astype(jnp.float32)
    b3 = params["conv3_b"].reshape(1, width).astype(jnp.float32)
    fcw = params["fc_w"].T.astype(jnp.float32)                          # (32, F)
    fcb = params["fc_b"].reshape(1, feature_dim).astype(jnp.float32)

    OFF = _round_up(W1 + 1, 8)                       # aligned data offset
    size_q = _round_up(OFF + HW + W1 + 2, 8)         # padded flat buffer rows

    kernel = functools.partial(_encoder_kernel, H1=H1, W1=W1, OFF=OFF)
    full2 = lambda b: (0, 0)
    full3 = lambda b: (0, 0, 0)

    out = pl.pallas_call(
        kernel,
        out_shape=jax.ShapeDtypeStruct((B, 1, feature_dim), jnp.float32),
        grid_spec=pltpu.PrefetchScalarGridSpec(
            num_scalar_prefetch=0,
            grid=(B,),
            in_specs=[
                pl.BlockSpec((1, HW, K1), lambda b: (b, 0, 0)),     # cols1
                pl.BlockSpec((HW, 1), full2),                       # mask_l
                pl.BlockSpec((HW, 1), full2),                       # mask_r
                pl.BlockSpec((K1, width), full2),                   # w1
                pl.BlockSpec((1, width), full2),                    # b1
                pl.BlockSpec((9, width, width), full3),             # w2
                pl.BlockSpec((1, width), full2),                    # b2
                pl.BlockSpec((9, width, width), full3),             # w3
                pl.BlockSpec((1, width), full2),                    # b3
                pl.BlockSpec((width, feature_dim), full2),          # fc_w
                pl.BlockSpec((1, feature_dim), full2),              # fc_b
            ],
            out_specs=pl.BlockSpec((1, 1, feature_dim), lambda b: (b, 0, 0)),
            scratch_shapes=[pltpu.VMEM((size_q, width), jnp.float32)],
        ),
        compiler_params=pltpu.CompilerParams(
            dimension_semantics=("parallel",)),
    )(cols1, mask_l, mask_r, w1g, b1, w2g, b2, w3g, b3, fcw, fcb)
    return out.reshape(B, feature_dim)


# ---------------------------------------------------------------------------
# Plain-XLA reference of the same network (for a sanity cross-check).
# ---------------------------------------------------------------------------
def _ref_forward(params, obs_nchw):
    x = obs_nchw.astype(jnp.float32)

    def conv(z, w, b, stride):
        y = jax.lax.conv_general_dilated(
            z, w, window_strides=(stride, stride), padding=((1, 1), (1, 1)),
            dimension_numbers=("NCHW", "OIHW", "NCHW"))
        return y + b.reshape(1, -1, 1, 1)

    y1 = jax.nn.relu(conv(x, params["conv1_w"], params["conv1_b"], 2))
    y2 = jax.nn.relu(conv(y1, params["conv2_w"], params["conv2_b"], 1))
    y3 = jax.nn.relu(conv(y2, params["conv3_w"], params["conv3_b"], 1) + y1)
    feat = y3.mean(axis=(2, 3))
    return feat @ params["fc_w"].T + params["fc_b"]


# ---------------------------------------------------------------------------
if __name__ == "__main__":
    key = jax.random.PRNGKey(0)
    k_obs, k_params = jax.random.split(key)

    B, C, H, W = 2, 4, 16, 16          # small shapes (module default is 84x84)
    feature_dim = 256

    obs = jax.random.normal(k_obs, (B, C, H, W), jnp.float32)
    params = init_params(k_params, c_in=C, feature_dim=feature_dim)

    out = jax.jit(resnet_encoder_forward)(params, obs)
    out = jax.block_until_ready(out)
    assert out.shape == (B, feature_dim), out.shape
    assert out.dtype == jnp.float32

    ref = jax.block_until_ready(jax.jit(_ref_forward)(params, obs))
    err = float(jnp.max(jnp.abs(out - ref)))
    assert err < 5e-2, f"max abs err vs XLA reference: {err}"
    print("KERNEL_OK")
</pallas_src>

<mosaic_0001>
module attributes {stable_mosaic.version = 11 : i64} {
  func.func @_encoder_kernel(%arg0: i32, %arg1: memref<1x64x36xbf16, #tpu.memory_space<vmem>>, %arg2: memref<64x1xf32, #tpu.memory_space<vmem>>, %arg3: memref<64x1xf32, #tpu.memory_space<vmem>>, %arg4: memref<36x32xbf16, #tpu.memory_space<vmem>>, %arg5: memref<1x32xf32, #tpu.memory_space<vmem>>, %arg6: memref<9x32x32xf32, #tpu.memory_space<vmem>>, %arg7: memref<1x32xf32, #tpu.memory_space<vmem>>, %arg8: memref<9x32x32xf32, #tpu.memory_space<vmem>>, %arg9: memref<1x32xf32, #tpu.memory_space<vmem>>, %arg10: memref<32x256xf32, #tpu.memory_space<vmem>>, %arg11: memref<1x256xf32, #tpu.memory_space<vmem>>, %arg12: memref<1x1x256xf32, #tpu.memory_space<vmem>>, %arg13: memref<96x32xf32, #tpu.memory_space<vmem>>) attributes {dimension_semantics = [#tpu.dimension_semantics<parallel>], iteration_bounds = array<i64: 2>, scalar_prefetch = 0 : i64, scratch_operands = 1 : i64, tpu.core_type = #tpu.core_type<tc>, window_params = [{transform_indices = @transform_0, window_bounds = array<i64: 1, 64, 36>}, {pipeline_mode = #tpu.pipeline_mode<synchronous>, transform_indices = @transform_1, window_bounds = array<i64: 64, 1>}, {pipeline_mode = #tpu.pipeline_mode<synchronous>, transform_indices = @transform_2, window_bounds = array<i64: 64, 1>}, {pipeline_mode = #tpu.pipeline_mode<synchronous>, transform_indices = @transform_3, window_bounds = array<i64: 36, 32>}, {pipeline_mode = #tpu.pipeline_mode<synchronous>, transform_indices = @transform_4, window_bounds = array<i64: 1, 32>}, {pipeline_mode = #tpu.pipeline_mode<synchronous>, transform_indices = @transform_5, window_bounds = array<i64: 9, 32, 32>}, {pipeline_mode = #tpu.pipeline_mode<synchronous>, transform_indices = @transform_6, window_bounds = array<i64: 1, 32>}, {pipeline_mode = #tpu.pipeline_mode<synchronous>, transform_indices = @transform_7, window_bounds = array<i64: 9, 32, 32>}, {pipeline_mode = #tpu.pipeline_mode<synchronous>, transform_indices = @transform_8, window_bounds = array<i64: 1, 32>}, {pipeline_mode = #tpu.pipeline_mode<synchronous>, transform_indices = @transform_9, window_bounds = array<i64: 32, 256>}, {pipeline_mode = #tpu.pipeline_mode<synchronous>, transform_indices = @transform_10, window_bounds = array<i64: 1, 256>}, {transform_indices = @transform_11, window_bounds = array<i64: 1, 1, 256>}]} {
    %cst = arith.constant 0.000000e+00 : f32
    %0 = vector.broadcast %cst : f32 to vector<96x32xf32>
    %c0 = arith.constant 0 : index
    %c0_0 = arith.constant 0 : index
    %1 = vector.load %arg13[%c0, %c0_0] : memref<96x32xf32, #tpu.memory_space<vmem>>, vector<96x32xf32>
    tpu.vector_store %arg13[%c0, %c0_0], %0 {strides = array<i32>} : memref<96x32xf32, #tpu.memory_space<vmem>>, vector<96x32xf32>,
    %c0_1 = arith.constant 0 : index
    %c0_2 = arith.constant 0 : index
    %2 = vector.load %arg2[%c0_1, %c0_2] : memref<64x1xf32, #tpu.memory_space<vmem>>, vector<64x1xf32>
    %c0_3 = arith.constant 0 : index
    %c0_4 = arith.constant 0 : index
    %3 = vector.load %arg3[%c0_3, %c0_4] : memref<64x1xf32, #tpu.memory_space<vmem>>, vector<64x1xf32>
    %c0_5 = arith.constant 0 : index
    %c0_6 = arith.constant 0 : index
    %c0_7 = arith.constant 0 : index
    %4 = vector.load %arg1[%c0_5, %c0_6, %c0_7] : memref<1x64x36xbf16, #tpu.memory_space<vmem>>, vector<1x64x36xbf16>
    %5 = vector.shape_cast %4 : vector<1x64x36xbf16> to vector<64x36xbf16>
    %c0_8 = arith.constant 0 : index
    %c0_9 = arith.constant 0 : index
    %6 = vector.load %arg4[%c0_8, %c0_9] : memref<36x32xbf16, #tpu.memory_space<vmem>>, vector<36x32xbf16>
    %cst_10 = arith.constant dense<0.000000e+00> : vector<64x32xf32>
    %7 = tpu.matmul %5, %6, %cst_10 {dimension_numbers = #tpu.dot_dimension_numbers<[1], [0], [0], [1], [0, 0, 1, 1], [], []>} : vector<64x36xbf16>, vector<36x32xbf16>, vector<64x32xf32> -> vector<64x32xf32>
    %c0_11 = arith.constant 0 : index
    %c0_12 = arith.constant 0 : index
    %8 = vector.load %arg5[%c0_11, %c0_12] : memref<1x32xf32, #tpu.memory_space<vmem>>, vector<1x32xf32>
    %9 = vector.broadcast %8 : vector<1x32xf32> to vector<64x32xf32>
    %10 = arith.addf %7, %9 : vector<64x32xf32>
    %cst_13 = arith.constant 0.000000e+00 : f32
    %11 = vector.broadcast %cst_13 : f32 to vector<64x32xf32>
    %12 = arith.maximumf %10, %11 : vector<64x32xf32>
    %c0_14 = arith.constant 0 : index
    %c0_15 = arith.constant 0 : index
    %13 = vector.load %arg7[%c0_14, %c0_15] : memref<1x32xf32, #tpu.memory_space<vmem>>, vector<1x32xf32>
    %c16 = arith.constant 16 : index
    %c0_16 = arith.constant 0 : index
    %14 = vector.load %arg13[%c16, %c0_16] : memref<96x32xf32, #tpu.memory_space<vmem>>, vector<64x32xf32>
    tpu.vector_store %arg13[%c16, %c0_16], %12 {strides = array<i32>} : memref<96x32xf32, #tpu.memory_space<vmem>>, vector<64x32xf32>,
    %cst_17 = arith.constant 0.000000e+00 : f32
    %15 = vector.broadcast %cst_17 : f32 to vector<64x32xf32>
    %c7 = arith.constant 7 : index
    %c0_18 = arith.constant 0 : index
    %16 = vector.load %arg13[%c7, %c0_18] : memref<96x32xf32, #tpu.memory_space<vmem>>, vector<64x32xf32>
    %17 = vector.broadcast %2 : vector<64x1xf32> to vector<64x32xf32>
    %18 = arith.mulf %16, %17 : vector<64x32xf32>
    %c0_19 = arith.constant 0 : index
    %c0_20 = arith.constant 0 : index
    %c0_21 = arith.constant 0 : index
    %19 = vector.load %arg6[%c0_19, %c0_20, %c0_21] : memref<9x32x32xf32, #tpu.memory_space<vmem>>, vector<1x32x32xf32>
    %20 = vector.shape_cast %19 : vector<1x32x32xf32> to vector<32x32xf32>
    %cst_22 = arith.constant dense<0.000000e+00> : vector<64x32xf32>
    %21 = tpu.matmul %18, %20, %cst_22 {dimension_numbers = #tpu.dot_dimension_numbers<[1], [0], [0], [1], [0, 0, 1, 1], [], []>} : vector<64x32xf32>, vector<32x32xf32>, vector<64x32xf32> -> vector<64x32xf32>
    %22 = arith.addf %15, %21 : vector<64x32xf32>
    %c8 = arith.constant 8 : index
    %c0_23 = arith.constant 0 : index
    %23 = vector.load %arg13[%c8, %c0_23] : memref<96x32xf32, #tpu.memory_space<vmem>>, vector<64x32xf32>
    %c1 = arith.constant 1 : index
    %c0_24 = arith.constant 0 : index
    %c0_25 = arith.constant 0 : index
    %24 = vector.load %arg6[%c1, %c0_24, %c0_25] : memref<9x32x32xf32, #tpu.memory_space<vmem>>, vector<1x32x32xf32>
    %25 = vector.shape_cast %24 : vector<1x32x32xf32> to vector<32x32xf32>
    %cst_26 = arith.constant dense<0.000000e+00> : vector<64x32xf32>
    %26 = tpu.matmul %23, %25, %cst_26 {dimension_numbers = #tpu.dot_dimension_numbers<[1], [0], [0], [1], [0, 0, 1, 1], [], []>} : vector<64x32xf32>, vector<32x32xf32>, vector<64x32xf32> -> vector<64x32xf32>
    %27 = arith.addf %22, %26 : vector<64x32xf32>
    %c9 = arith.constant 9 : index
    %c0_27 = arith.constant 0 : index
    %28 = vector.load %arg13[%c9, %c0_27] : memref<96x32xf32, #tpu.memory_space<vmem>>, vector<64x32xf32>
    %29 = vector.broadcast %3 : vector<64x1xf32> to vector<64x32xf32>
    %30 = arith.mulf %28, %29 : vector<64x32xf32>
    %c2 = arith.constant 2 : index
    %c0_28 = arith.constant 0 : index
    %c0_29 = arith.constant 0 : index
    %31 = vector.load %arg6[%c2, %c0_28, %c0_29] : memref<9x32x32xf32, #tpu.memory_space<vmem>>, vector<1x32x32xf32>
    %32 = vector.shape_cast %31 : vector<1x32x32xf32> to vector<32x32xf32>
    %cst_30 = arith.constant dense<0.000000e+00> : vector<64x32xf32>
    %33 = tpu.matmul %30, %32, %cst_30 {dimension_numbers = #tpu.dot_dimension_numbers<[1], [0], [0], [1], [0, 0, 1, 1], [], []>} : vector<64x32xf32>, vector<32x32xf32>, vector<64x32xf32> -> vector<64x32xf32>
    %34 = arith.addf %27, %33 : vector<64x32xf32>
    %c15 = arith.constant 15 : index
    %c0_31 = arith.constant 0 : index
    %35 = vector.load %arg13[%c15, %c0_31] : memref<96x32xf32, #tpu.memory_space<vmem>>, vector<64x32xf32>
    %36 = vector.broadcast %2 : vector<64x1xf32> to vector<64x32xf32>
    %37 = arith.mulf %35, %36 : vector<64x32xf32>
    %c3 = arith.constant 3 : index
    %c0_32 = arith.constant 0 : index
    %c0_33 = arith.constant 0 : index
    %38 = vector.load %arg6[%c3, %c0_32, %c0_33] : memref<9x32x32xf32, #tpu.memory_space<vmem>>, vector<1x32x32xf32>
    %39 = vector.shape_cast %38 : vector<1x32x32xf32> to vector<32x32xf32>
    %cst_34 = arith.constant dense<0.000000e+00> : vector<64x32xf32>
    %40 = tpu.matmul %37, %39, %cst_34 {dimension_numbers = #tpu.dot_dimension_numbers<[1], [0], [0], [1], [0, 0, 1, 1], [], []>} : vector<64x32xf32>, vector<32x32xf32>, vector<64x32xf32> -> vector<64x32xf32>
    %41 = arith.addf %34, %40 : vector<64x32xf32>
    %c16_35 = arith.constant 16 : index
    %c0_36 = arith.constant 0 : index
    %42 = vector.load %arg13[%c16_35, %c0_36] : memref<96x32xf32, #tpu.memory_space<vmem>>, vector<64x32xf32>
    %c4 = arith.constant 4 : index
    %c0_37 = arith.constant 0 : index
    %c0_38 = arith.constant 0 : index
    %43 = vector.load %arg6[%c4, %c0_37, %c0_38] : memref<9x32x32xf32, #tpu.memory_space<vmem>>, vector<1x32x32xf32>
    %44 = vector.shape_cast %43 : vector<1x32x32xf32> to vector<32x32xf32>
    %cst_39 = arith.constant dense<0.000000e+00> : vector<64x32xf32>
    %45 = tpu.matmul %42, %44, %cst_39 {dimension_numbers = #tpu.dot_dimension_numbers<[1], [0], [0], [1], [0, 0, 1, 1], [], []>} : vector<64x32xf32>, vector<32x32xf32>, vector<64x32xf32> -> vector<64x32xf32>
    %46 = arith.addf %41, %45 : vector<64x32xf32>
    %c17 = arith.constant 17 : index
    %c0_40 = arith.constant 0 : index
    %47 = vector.load %arg13[%c17, %c0_40] : memref<96x32xf32, #tpu.memory_space<vmem>>, vector<64x32xf32>
    %48 = vector.broadcast %3 : vector<64x1xf32> to vector<64x32xf32>
    %49 = arith.mulf %47, %48 : vector<64x32xf32>
    %c5 = arith.constant 5 : index
    %c0_41 = arith.constant 0 : index
    %c0_42 = arith.constant 0 : index
    %50 = vector.load %arg6[%c5, %c0_41, %c0_42] : memref<9x32x32xf32, #tpu.memory_space<vmem>>, vector<1x32x32xf32>
    %51 = vector.shape_cast %50 : vector<1x32x32xf32> to vector<32x32xf32>
    %cst_43 = arith.constant dense<0.000000e+00> : vector<64x32xf32>
    %52 = tpu.matmul %49, %51, %cst_43 {dimension_numbers = #tpu.dot_dimension_numbers<[1], [0], [0], [1], [0, 0, 1, 1], [], []>} : vector<64x32xf32>, vector<32x32xf32>, vector<64x32xf32> -> vector<64x32xf32>
    %53 = arith.addf %46, %52 : vector<64x32xf32>
    %c23 = arith.constant 23 : index
    %c0_44 = arith.constant 0 : index
    %54 = vector.load %arg13[%c23, %c0_44] : memref<96x32xf32, #tpu.memory_space<vmem>>, vector<64x32xf32>
    %55 = vector.broadcast %2 : vector<64x1xf32> to vector<64x32xf32>
    %56 = arith.mulf %54, %55 : vector<64x32xf32>
    %c6 = arith.constant 6 : index
    %c0_45 = arith.constant 0 : index
    %c0_46 = arith.constant 0 : index
    %57 = vector.load %arg6[%c6, %c0_45, %c0_46] : memref<9x32x32xf32, #tpu.memory_space<vmem>>, vector<1x32x32xf32>
    %58 = vector.shape_cast %57 : vector<1x32x32xf32> to vector<32x32xf32>
    %cst_47 = arith.constant dense<0.000000e+00> : vector<64x32xf32>
    %59 = tpu.matmul %56, %58, %cst_47 {dimension_numbers = #tpu.dot_dimension_numbers<[1], [0], [0], [1], [0, 0, 1, 1], [], []>} : vector<64x32xf32>, vector<32x32xf32>, vector<64x32xf32> -> vector<64x32xf32>
    %60 = arith.addf %53, %59 : vector<64x32xf32>
    %c24 = arith.constant 24 : index
    %c0_48 = arith.constant 0 : index
    %61 = vector.load %arg13[%c24, %c0_48] : memref<96x32xf32, #tpu.memory_space<vmem>>, vector<64x32xf32>
    %c7_49 = arith.constant 7 : index
    %c0_50 = arith.constant 0 : index
    %c0_51 = arith.constant 0 : index
    %62 = vector.load %arg6[%c7_49, %c0_50, %c0_51] : memref<9x32x32xf32, #tpu.memory_space<vmem>>, vector<1x32x32xf32>
    %63 = vector.shape_cast %62 : vector<1x32x32xf32> to vector<32x32xf32>
    %cst_52 = arith.constant dense<0.000000e+00> : vector<64x32xf32>
    %64 = tpu.matmul %61, %63, %cst_52 {dimension_numbers = #tpu.dot_dimension_numbers<[1], [0], [0], [1], [0, 0, 1, 1], [], []>} : vector<64x32xf32>, vector<32x32xf32>, vector<64x32xf32> -> vector<64x32xf32>
    %65 = arith.addf %60, %64 : vector<64x32xf32>
    %c25 = arith.constant 25 : index
    %c0_53 = arith.constant 0 : index
    %66 = vector.load %arg13[%c25, %c0_53] : memref<96x32xf32, #tpu.memory_space<vmem>>, vector<64x32xf32>
    %67 = vector.broadcast %3 : vector<64x1xf32> to vector<64x32xf32>
    %68 = arith.mulf %66, %67 : vector<64x32xf32>
    %c8_54 = arith.constant 8 : index
    %c0_55 = arith.constant 0 : index
    %c0_56 = arith.constant 0 : index
    %69 = vector.load %arg6[%c8_54, %c0_55, %c0_56] : memref<9x32x32xf32, #tpu.memory_space<vmem>>, vector<1x32x32xf32>
    %70 = vector.shape_cast %69 : vector<1x32x32xf32> to vector<32x32xf32>
    %cst_57 = arith.constant dense<0.000000e+00> : vector<64x32xf32>
    %71 = tpu.matmul %68, %70, %cst_57 {dimension_numbers = #tpu.dot_dimension_numbers<[1], [0], [0], [1], [0, 0, 1, 1], [], []>} : vector<64x32xf32>, vector<32x32xf32>, vector<64x32xf32> -> vector<64x32xf32>
    %72 = arith.addf %65, %71 : vector<64x32xf32>
    %73 = vector.broadcast %13 : vector<1x32xf32> to vector<64x32xf32>
    %74 = arith.addf %72, %73 : vector<64x32xf32>
    %cst_58 = arith.constant 0.000000e+00 : f32
    %75 = vector.broadcast %cst_58 : f32 to vector<64x32xf32>
    %76 = arith.maximumf %74, %75 : vector<64x32xf32>
    %c0_59 = arith.constant 0 : index
    %c0_60 = arith.constant 0 : index
    %77 = vector.load %arg9[%c0_59, %c0_60] : memref<1x32xf32, #tpu.memory_space<vmem>>, vector<1x32xf32>
    %c16_61 = arith.constant 16 : index
    %c0_62 = arith.constant 0 : index
    %78 = vector.load %arg13[%c16_61, %c0_62] : memref<96x32xf32, #tpu.memory_space<vmem>>, vector<64x32xf32>
    tpu.vector_store %arg13[%c16_61, %c0_62], %76 {strides = array<i32>} : memref<96x32xf32, #tpu.memory_space<vmem>>, vector<64x32xf32>,
    %cst_63 = arith.constant 0.000000e+00 : f32
    %79 = vector.broadcast %cst_63 : f32 to vector<64x32xf32>
    %c7_64 = arith.constant 7 : index
    %c0_65 = arith.constant 0 : index
    %80 = vector.load %arg13[%c7_64, %c0_65] : memref<96x32xf32, #tpu.memory_space<vmem>>, vector<64x32xf32>
    %81 = vector.broadcast %2 : vector<64x1xf32> to vector<64x32xf32>
    %82 = arith.mulf %80, %81 : vector<64x32xf32>
    %c0_66 = arith.constant 0 : index
    %c0_67 = arith.constant 0 : index
    %c0_68 = arith.constant 0 : index
    %83 = vector.load %arg8[%c0_66, %c0_67, %c0_68] : memref<9x32x32xf32, #tpu.memory_space<vmem>>, vector<1x32x32xf32>
    %84 = vector.shape_cast %83 : vector<1x32x32xf32> to vector<32x32xf32>
    %cst_69 = arith.constant dense<0.000000e+00> : vector<64x32xf32>
    %85 = tpu.matmul %82, %84, %cst_69 {dimension_numbers = #tpu.dot_dimension_numbers<[1], [0], [0], [1], [0, 0, 1, 1], [], []>} : vector<64x32xf32>, vector<32x32xf32>, vector<64x32xf32> -> vector<64x32xf32>
    %86 = arith.addf %79, %85 : vector<64x32xf32>
    %c8_70 = arith.constant 8 : index
    %c0_71 = arith.constant 0 : index
    %87 = vector.load %arg13[%c8_70, %c0_71] : memref<96x32xf32, #tpu.memory_space<vmem>>, vector<64x32xf32>
    %c1_72 = arith.constant 1 : index
    %c0_73 = arith.constant 0 : index
    %c0_74 = arith.constant 0 : index
    %88 = vector.load %arg8[%c1_72, %c0_73, %c0_74] : memref<9x32x32xf32, #tpu.memory_space<vmem>>, vector<1x32x32xf32>
    %89 = vector.shape_cast %88 : vector<1x32x32xf32> to vector<32x32xf32>
    %cst_75 = arith.constant dense<0.000000e+00> : vector<64x32xf32>
    %90 = tpu.matmul %87, %89, %cst_75 {dimension_numbers = #tpu.dot_dimension_numbers<[1], [0], [0], [1], [0, 0, 1, 1], [], []>} : vector<64x32xf32>, vector<32x32xf32>, vector<64x32xf32> -> vector<64x32xf32>
    %91 = arith.addf %86, %90 : vector<64x32xf32>
    %c9_76 = arith.constant 9 : index
    %c0_77 = arith.constant 0 : index
    %92 = vector.load %arg13[%c9_76, %c0_77] : memref<96x32xf32, #tpu.memory_space<vmem>>, vector<64x32xf32>
    %93 = vector.broadcast %3 : vector<64x1xf32> to vector<64x32xf32>
    %94 = arith.mulf %92, %93 : vector<64x32xf32>
    %c2_78 = arith.constant 2 : index
    %c0_79 = arith.constant 0 : index
    %c0_80 = arith.constant 0 : index
    %95 = vector.load %arg8[%c2_78, %c0_79, %c0_80] : memref<9x32x32xf32, #tpu.memory_space<vmem>>, vector<1x32x32xf32>
    %96 = vector.shape_cast %95 : vector<1x32x32xf32> to vector<32x32xf32>
    %cst_81 = arith.constant dense<0.000000e+00> : vector<64x32xf32>
    %97 = tpu.matmul %94, %96, %cst_81 {dimension_numbers = #tpu.dot_dimension_numbers<[1], [0], [0], [1], [0, 0, 1, 1], [], []>} : vector<64x32xf32>, vector<32x32xf32>, vector<64x32xf32> -> vector<64x32xf32>
    %98 = arith.addf %91, %97 : vector<64x32xf32>
    %c15_82 = arith.constant 15 : index
    %c0_83 = arith.constant 0 : index
    %99 = vector.load %arg13[%c15_82, %c0_83] : memref<96x32xf32, #tpu.memory_space<vmem>>, vector<64x32xf32>
    %100 = vector.broadcast %2 : vector<64x1xf32> to vector<64x32xf32>
    %101 = arith.mulf %99, %100 : vector<64x32xf32>
    %c3_84 = arith.constant 3 : index
    %c0_85 = arith.constant 0 : index
    %c0_86 = arith.constant 0 : index
    %102 = vector.load %arg8[%c3_84, %c0_85, %c0_86] : memref<9x32x32xf32, #tpu.memory_space<vmem>>, vector<1x32x32xf32>
    %103 = vector.shape_cast %102 : vector<1x32x32xf32> to vector<32x32xf32>
    %cst_87 = arith.constant dense<0.000000e+00> : vector<64x32xf32>
    %104 = tpu.matmul %101, %103, %cst_87 {dimension_numbers = #tpu.dot_dimension_numbers<[1], [0], [0], [1], [0, 0, 1, 1], [], []>} : vector<64x32xf32>, vector<32x32xf32>, vector<64x32xf32> -> vector<64x32xf32>
    %105 = arith.addf %98, %104 : vector<64x32xf32>
    %c16_88 = arith.constant 16 : index
    %c0_89 = arith.constant 0 : index
    %106 = vector.load %arg13[%c16_88, %c0_89] : memref<96x32xf32, #tpu.memory_space<vmem>>, vector<64x32xf32>
    %c4_90 = arith.constant 4 : index
    %c0_91 = arith.constant 0 : index
    %c0_92 = arith.constant 0 : index
    %107 = vector.load %arg8[%c4_90, %c0_91, %c0_92] : memref<9x32x32xf32, #tpu.memory_space<vmem>>, vector<1x32x32xf32>
    %108 = vector.shape_cast %107 : vector<1x32x32xf32> to vector<32x32xf32>
    %cst_93 = arith.constant dense<0.000000e+00> : vector<64x32xf32>
    %109 = tpu.matmul %106, %108, %cst_93 {dimension_numbers = #tpu.dot_dimension_numbers<[1], [0], [0], [1], [0, 0, 1, 1], [], []>} : vector<64x32xf32>, vector<32x32xf32>, vector<64x32xf32> -> vector<64x32xf32>
    %110 = arith.addf %105, %109 : vector<64x32xf32>
    %c17_94 = arith.constant 17 : index
    %c0_95 = arith.constant 0 : index
    %111 = vector.load %arg13[%c17_94, %c0_95] : memref<96x32xf32, #tpu.memory_space<vmem>>, vector<64x32xf32>
    %112 = vector.broadcast %3 : vector<64x1xf32> to vector<64x32xf32>
    %113 = arith.mulf %111, %112 : vector<64x32xf32>
    %c5_96 = arith.constant 5 : index
    %c0_97 = arith.constant 0 : index
    %c0_98 = arith.constant 0 : index
    %114 = vector.load %arg8[%c5_96, %c0_97, %c0_98] : memref<9x32x32xf32, #tpu.memory_space<vmem>>, vector<1x32x32xf32>
    %115 = vector.shape_cast %114 : vector<1x32x32xf32> to vector<32x32xf32>
    %cst_99 = arith.constant dense<0.000000e+00> : vector<64x32xf32>
    %116 = tpu.matmul %113, %115, %cst_99 {dimension_numbers = #tpu.dot_dimension_numbers<[1], [0], [0], [1], [0, 0, 1, 1], [], []>} : vector<64x32xf32>, vector<32x32xf32>, vector<64x32xf32> -> vector<64x32xf32>
    %117 = arith.addf %110, %116 : vector<64x32xf32>
    %c23_100 = arith.constant 23 : index
    %c0_101 = arith.constant 0 : index
    %118 = vector.load %arg13[%c23_100, %c0_101] : memref<96x32xf32, #tpu.memory_space<vmem>>, vector<64x32xf32>
    %119 = vector.broadcast %2 : vector<64x1xf32> to vector<64x32xf32>
    %120 = arith.mulf %118, %119 : vector<64x32xf32>
    %c6_102 = arith.constant 6 : index
    %c0_103 = arith.constant 0 : index
    %c0_104 = arith.constant 0 : index
    %121 = vector.load %arg8[%c6_102, %c0_103, %c0_104] : memref<9x32x32xf32, #tpu.memory_space<vmem>>, vector<1x32x32xf32>
    %122 = vector.shape_cast %121 : vector<1x32x32xf32> to vector<32x32xf32>
    %cst_105 = arith.constant dense<0.000000e+00> : vector<64x32xf32>
    %123 = tpu.matmul %120, %122, %cst_105 {dimension_numbers = #tpu.dot_dimension_numbers<[1], [0], [0], [1], [0, 0, 1, 1], [], []>} : vector<64x32xf32>, vector<32x32xf32>, vector<64x32xf32> -> vector<64x32xf32>
    %124 = arith.addf %117, %123 : vector<64x32xf32>
    %c24_106 = arith.constant 24 : index
    %c0_107 = arith.constant 0 : index
    %125 = vector.load %arg13[%c24_106, %c0_107] : memref<96x32xf32, #tpu.memory_space<vmem>>, vector<64x32xf32>
    %c7_108 = arith.constant 7 : index
    %c0_109 = arith.constant 0 : index
    %c0_110 = arith.constant 0 : index
    %126 = vector.load %arg8[%c7_108, %c0_109, %c0_110] : memref<9x32x32xf32, #tpu.memory_space<vmem>>, vector<1x32x32xf32>
    %127 = vector.shape_cast %126 : vector<1x32x32xf32> to vector<32x32xf32>
    %cst_111 = arith.constant dense<0.000000e+00> : vector<64x32xf32>
    %128 = tpu.matmul %125, %127, %cst_111 {dimension_numbers = #tpu.dot_dimension_numbers<[1], [0], [0], [1], [0, 0, 1, 1], [], []>} : vector<64x32xf32>, vector<32x32xf32>, vector<64x32xf32> -> vector<64x32xf32>
    %129 = arith.addf %124, %128 : vector<64x32xf32>
    %c25_112 = arith.constant 25 : index
    %c0_113 = arith.constant 0 : index
    %130 = vector.load %arg13[%c25_112, %c0_113] : memref<96x32xf32, #tpu.memory_space<vmem>>, vector<64x32xf32>
    %131 = vector.broadcast %3 : vector<64x1xf32> to vector<64x32xf32>
    %132 = arith.mulf %130, %131 : vector<64x32xf32>
    %c8_114 = arith.constant 8 : index
    %c0_115 = arith.constant 0 : index
    %c0_116 = arith.constant 0 : index
    %133 = vector.load %arg8[%c8_114, %c0_115, %c0_116] : memref<9x32x32xf32, #tpu.memory_space<vmem>>, vector<1x32x32xf32>
    %134 = vector.shape_cast %133 : vector<1x32x32xf32> to vector<32x32xf32>
    %cst_117 = arith.constant dense<0.000000e+00> : vector<64x32xf32>
    %135 = tpu.matmul %132, %134, %cst_117 {dimension_numbers = #tpu.dot_dimension_numbers<[1], [0], [0], [1], [0, 0, 1, 1], [], []>} : vector<64x32xf32>, vector<32x32xf32>, vector<64x32xf32> -> vector<64x32xf32>
    %136 = arith.addf %129, %135 : vector<64x32xf32>
    %137 = vector.broadcast %77 : vector<1x32xf32> to vector<64x32xf32>
    %138 = arith.addf %136, %137 : vector<64x32xf32>
    %139 = arith.addf %138, %12 : vector<64x32xf32>
    %cst_118 = arith.constant 0.000000e+00 : f32
    %140 = vector.broadcast %cst_118 : f32 to vector<64x32xf32>
    %141 = arith.maximumf %139, %140 : vector<64x32xf32>
    %cst_119 = arith.constant 1.562500e-02 : f32
    %142 = vector.broadcast %cst_119 : f32 to vector<1x64xf32>
    %cst_120 = arith.constant dense<0.000000e+00> : vector<1x32xf32>
    %143 = tpu.matmul %142, %141, %cst_120 {dimension_numbers = #tpu.dot_dimension_numbers<[1], [0], [0], [1], [0, 0, 1, 1], [], []>} : vector<1x64xf32>, vector<64x32xf32>, vector<1x32xf32> -> vector<1x32xf32>
    %c0_121 = arith.constant 0 : index
    %c0_122 = arith.constant 0 : index
    %144 = vector.load %arg10[%c0_121, %c0_122] : memref<32x256xf32, #tpu.memory_space<vmem>>, vector<32x256xf32>
    %cst_123 = arith.constant dense<0.000000e+00> : vector<1x256xf32>
    %145 = tpu.matmul %143, %144, %cst_123 {dimension_numbers = #tpu.dot_dimension_numbers<[1], [0], [0], [1], [0, 0, 1, 1], [], []>} : vector<1x32xf32>, vector<32x256xf32>, vector<1x256xf32> -> vector<1x256xf32>
    %c0_124 = arith.constant 0 : index
    %c0_125 = arith.constant 0 : index
    %146 = vector.load %arg11[%c0_124, %c0_125] : memref<1x256xf32, #tpu.memory_space<vmem>>, vector<1x256xf32>
    %147 = arith.addf %145, %146 : vector<1x256xf32>
    %c0_126 = arith.constant 0 : index
    %c0_127 = arith.constant 0 : index
    %c0_128 = arith.constant 0 : index
    %148 = vector.load %arg12[%c0_126, %c0_127, %c0_128] : memref<1x1x256xf32, #tpu.memory_space<vmem>>, vector<1x1x256xf32>
    %149 = vector.shape_cast %148 : vector<1x1x256xf32> to vector<1x256xf32>
    %150 = vector.shape_cast %147 : vector<1x256xf32> to vector<1x1x256xf32>
    tpu.vector_store %arg12[%c0_126, %c0_127, %c0_128], %150 {strides = array<i32>} : memref<1x1x256xf32, #tpu.memory_space<vmem>>, vector<1x1x256xf32>,
    return
  }
  func.func @transform_0(%arg0: i32) -> (i32, i32, i32) {
    %c0_i32 = arith.constant 0 : i32
    %c0_i32_0 = arith.constant 0 : i32
    %c0_i32_1 = arith.constant 0 : i32
    return %arg0, %c0_i32, %c0_i32_0 : i32, i32, i32
  }
  func.func @transform_1(%arg0: i32) -> (i32, i32) {
    %c0_i32 = arith.constant 0 : i32
    %c0_i32_0 = arith.constant 0 : i32
    %c0_i32_1 = arith.constant 0 : i32
    return %c0_i32, %c0_i32_0 : i32, i32
  }
  func.func @transform_2(%arg0: i32) -> (i32, i32) {
    %c0_i32 = arith.constant 0 : i32
    %c0_i32_0 = arith.constant 0 : i32
    %c0_i32_1 = arith.constant 0 : i32
    return %c0_i32, %c0_i32_0 : i32, i32
  }
  func.func @transform_3(%arg0: i32) -> (i32, i32) {
    %c0_i32 = arith.constant 0 : i32
    %c0_i32_0 = arith.constant 0 : i32
    %c0_i32_1 = arith.constant 0 : i32
    return %c0_i32, %c0_i32_0 : i32, i32
  }
  func.func @transform_4(%arg0: i32) -> (i32, i32) {
    %c0_i32 = arith.constant 0 : i32
    %c0_i32_0 = arith.constant 0 : i32
    %c0_i32_1 = arith.constant 0 : i32
    return %c0_i32, %c0_i32_0 : i32, i32
  }
  func.func @transform_5(%arg0: i32) -> (i32, i32, i32) {
    %c0_i32 = arith.constant 0 : i32
    %c0_i32_0 = arith.constant 0 : i32
    %c0_i32_1 = arith.constant 0 : i32
    %c0_i32_2 = arith.constant 0 : i32
    return %c0_i32, %c0_i32_0, %c0_i32_1 : i32, i32, i32
  }
  func.func @transform_6(%arg0: i32) -> (i32, i32) {
    %c0_i32 = arith.constant 0 : i32
    %c0_i32_0 = arith.constant 0 : i32
    %c0_i32_1 = arith.constant 0 : i32
    return %c0_i32, %c0_i32_0 : i32, i32
  }
  func.func @transform_7(%arg0: i32) -> (i32, i32, i32) {
    %c0_i32 = arith.constant 0 : i32
    %c0_i32_0 = arith.constant 0 : i32
    %c0_i32_1 = arith.constant 0 : i32
    %c0_i32_2 = arith.constant 0 : i32
    return %c0_i32, %c0_i32_0, %c0_i32_1 : i32, i32, i32
  }
  func.func @transform_8(%arg0: i32) -> (i32, i32) {
    %c0_i32 = arith.constant 0 : i32
    %c0_i32_0 = arith.constant 0 : i32
    %c0_i32_1 = arith.constant 0 : i32
    return %c0_i32, %c0_i32_0 : i32, i32
  }
  func.func @transform_9(%arg0: i32) -> (i32, i32) {
    %c0_i32 = arith.constant 0 : i32
    %c0_i32_0 = arith.constant 0 : i32
    %c0_i32_1 = arith.constant 0 : i32
    return %c0_i32, %c0_i32_0 : i32, i32
  }
  func.func @transform_10(%arg0: i32) -> (i32, i32) {
    %c0_i32 = arith.constant 0 : i32
    %c0_i32_0 = arith.constant 0 : i32
    %c0_i32_1 = arith.constant 0 : i32
    return %c0_i32, %c0_i32_0 : i32, i32
  }
  func.func @transform_11(%arg0: i32) -> (i32, i32, i32) {
    %c0_i32 = arith.constant 0 : i32
    %c0_i32_0 = arith.constant 0 : i32
    %c0_i32_1 = arith.constant 0 : i32
    return %arg0, %c0_i32, %c0_i32_0 : i32, i32, i32
  }
}

</mosaic_0001>

<llo_original>
// kernel: resnet_encoder_forward.1
$region0: #{resnet_encoder_forward.1}
  #allocation0 [shape = 'u32[]', space=smem, size = 0x4, offset = 0x4, fixed_abs, tag = 'smem constant byte address 0x4 - core index']
  #allocation1 [shape = 'u32[144,128]{1,0:T(1,128)}', space=vmem, size = 0x12000, scoped, tag = 'internal scratch']
  #allocation2 [shape = 'f32[96,32]{1,0:T(8,128)}', space=vmem, size = 0xc000, scoped, tag = 'scratch operand']
  %s0 = inlined_call_operand.vmem [shape: bf16[2,64,36], index: 0, kind: input, shape index: {}]
  %s1 = inlined_call_operand.vmem [shape: f32[64,1], index: 1, kind: input, shape index: {}]
  %s2 = inlined_call_operand.vmem [shape: f32[64,1], index: 2, kind: input, shape index: {}]
  %s3 = inlined_call_operand.vmem [shape: bf16[36,32], index: 3, kind: input, shape index: {}]
  %s4 = inlined_call_operand.vmem [shape: f32[1,32], index: 4, kind: input, shape index: {}]
  %s5 = inlined_call_operand.vmem [shape: f32[9,32,32], index: 5, kind: input, shape index: {}]
  %s6 = inlined_call_operand.vmem [shape: f32[1,32], index: 6, kind: input, shape index: {}]
  %s7 = inlined_call_operand.vmem [shape: f32[9,32,32], index: 7, kind: input, shape index: {}]
  %s8 = inlined_call_operand.vmem [shape: f32[1,32], index: 8, kind: input, shape index: {}]
  %s9 = inlined_call_operand.vmem [shape: f32[32,256], index: 9, kind: input, shape index: {}]
  %s10 = inlined_call_operand.vmem [shape: f32[1,256], index: 10, kind: input, shape index: {}]
  %s11 = inlined_call_operand.vmem [shape: f32[2,1,256], index: 11, kind: output, shape index: {}]
  %s12 = sld [smem:[#allocation0]]
  $region77: #{resnet_encoder_forward.1} parent=0
    _
  %s14 = ssub.s32 1, %s12
  %s15 = scalar_select 0, %s14, %s12
  loop: start=0, step=1, limit=4
  $region2: #{resnet_encoder_forward.1} parent=0 // loop_pre_header
    _
  $region3: #{resnet_encoder_forward.1} parent=0 // loop_header
    %s17 = sphi 0, %s21
    %p18 = scmp.ge.s32.totalorder %s17, 4
    %s27 = sphi 0, %s29
    %s30 = sphi 0, %s27
    %s31 = sphi 0, %s30
    %s47 = sphi 0, %s31
    %s51 = sphi 0, %s51
    %s53 = sphi 0, %s51
    %s54 = sphi 0, %s53
    %s68 = sphi 0, %s54
    %s72 = sphi 0, %s72
    %s74 = sphi 0, %s72
    %s75 = sphi 0, %s74
    %s89 = sphi 0, %s75
    %s93 = sphi 0, %s93
    %s95 = sphi 0, %s93
    %s96 = sphi 0, %s95
    %s110 = sphi 0, %s96
    %s114 = sphi 0, %s114
    %s116 = sphi 0, %s114
    %s117 = sphi 0, %s116
    %s131 = sphi 0, %s117
    %s135 = sphi 0, %s135
    %s137 = sphi 0, %s135
    %s138 = sphi 0, %s137
    %s152 = sphi 0, %s138
    %s156 = sphi 0, %s156
    %s158 = sphi 0, %s156
    %s159 = sphi 0, %s158
    %s173 = sphi 0, %s159
    %s177 = sphi 0, %s177
    %s179 = sphi 0, %s177
    %s180 = sphi 0, %s179
    %s194 = sphi 0, %s180
    %s198 = sphi 0, %s198
    %s200 = sphi 0, %s198
    %s201 = sphi 0, %s200
    %s215 = sphi 0, %s201
    %s219 = sphi 0, %s219
    %s221 = sphi 0, %s219
    %s222 = sphi 0, %s221
    %s236 = sphi 0, %s222
    %s240 = sphi 0, %s240
    %s242 = sphi 0, %s240
    %s243 = sphi 0, %s242
    %s257 = sphi 0, %s243
    %s263 = sphi 0, %s265
    %s266 = sphi 0, %s263
    %s267 = sphi 0, %s266
    %s283 = sphi 0, %s267
  $region4: #{resnet_encoder_forward.1} parent=0 // loop_header_branch
    %20 = sbr.rel (%p18) target = $region8
  $region5: #{resnet_encoder_forward.1} parent=0 // loop_body
    %s22 = ssub.s32 %s17, 1
    %s23 = ssub.s32 %s17, 2
    %s24 = sadd.s32 %s17, 1
    %s25 = ssub.s32 %s17, %s24
    %p26 = scmp.eq.s32.totalorder %s25, 0
    %s28 = sadd.s32 %s27, 1
    %s29 = scalar_select %p26, %s27, %s28
    %p32 = pneg %p26
    %p33 = scmp.eq.s32.totalorder %s17, 1
    %p34 = por %p32, %p33
    %p35 = scmp.ne.s32.totalorder %s27, %s30
    %p36 = scmp.eq.s32.totalorder %s17, 0
    %p37 = por %p35, %p36
    %p38 = scmp.ne.s32.totalorder %s27, %s30
    %p39 = scmp.eq.s32.totalorder %s22, 1
    %p40 = por %p38, %p39
    %p41 = scmp.ne.s32.totalorder %s30, %s31
    %p42 = scmp.eq.s32.totalorder %s22, 0
    %p43 = por %p41, %p42
    %p44 = scmp.ne.s32.totalorder %s30, %s31
    %p45 = scmp.eq.s32.totalorder %s23, 1
    %p46 = por %p44, %p45
    %p48 = scmp.ne.s32.totalorder %s31, %s47
    %p49 = scmp.eq.s32.totalorder %s23, 0
    %p50 = por %p48, %p49
    %s52 = sadd.s32 %s51, 1
    %p55 = scmp.eq.s32.totalorder %s17, 1
    %p56 = scmp.ne.s32.totalorder %s51, %s53
    %p57 = scmp.eq.s32.totalorder %s17, 0
    %p58 = por %p56, %p57
    %p59 = scmp.ne.s32.totalorder %s51, %s53
    %p60 = scmp.eq.s32.totalorder %s22, 1
    %p61 = por %p59, %p60
    %p62 = scmp.ne.s32.totalorder %s53, %s54
    %p63 = scmp.eq.s32.totalorder %s22, 0
    %p64 = por %p62, %p63
    %p65 = scmp.ne.s32.totalorder %s53, %s54
    %p66 = scmp.eq.s32.totalorder %s23, 1
    %p67 = por %p65, %p66
    %p69 = scmp.ne.s32.totalorder %s54, %s68
    %p70 = scmp.eq.s32.totalorder %s23, 0
    %p71 = por %p69, %p70
    %s73 = sadd.s32 %s72, 1
    %p76 = scmp.eq.s32.totalorder %s17, 1
    %p77 = scmp.ne.s32.totalorder %s72, %s74
    %p78 = scmp.eq.s32.totalorder %s17, 0
    %p79 = por %p77, %p78
    %p80 = scmp.ne.s32.totalorder %s72, %s74
    %p81 = scmp.eq.s32.totalorder %s22, 1
    %p82 = por %p80, %p81
    %p83 = scmp.ne.s32.totalorder %s74, %s75
    %p84 = scmp.eq.s32.totalorder %s22, 0
    %p85 = por %p83, %p84
    %p86 = scmp.ne.s32.totalorder %s74, %s75
    %p87 = scmp.eq.s32.totalorder %s23, 1
    %p88 = por %p86, %p87
    %p90 = scmp.ne.s32.totalorder %s75, %s89
    %p91 = scmp.eq.s32.totalorder %s23, 0
    %p92 = por %p90, %p91
    %s94 = sadd.s32 %s93, 1
    %p97 = scmp.eq.s32.totalorder %s17, 1
    %p98 = scmp.ne.s32.totalorder %s93, %s95
    %p99 = scmp.eq.s32.totalorder %s17, 0
    %p100 = por %p98, %p99
    %p101 = scmp.ne.s32.totalorder %s93, %s95
    %p102 = scmp.eq.s32.totalorder %s22, 1
    %p103 = por %p101, %p102
    %p104 = scmp.ne.s32.totalorder %s95, %s96
    %p105 = scmp.eq.s32.totalorder %s22, 0
    %p106 = por %p104, %p105
    %p107 = scmp.ne.s32.totalorder %s95, %s96
    %p108 = scmp.eq.s32.totalorder %s23, 1
    %p109 = por %p107, %p108
    %p111 = scmp.ne.s32.totalorder %s96, %s110
    %p112 = scmp.eq.s32.totalorder %s23, 0
    %p113 = por %p111, %p112
    %s115 = sadd.s32 %s114, 1
    %p118 = scmp.eq.s32.totalorder %s17, 1
    %p119 = scmp.ne.s32.totalorder %s114, %s116
    %p120 = scmp.eq.s32.totalorder %s17, 0
    %p121 = por %p119, %p120
    %p122 = scmp.ne.s32.totalorder %s114, %s116
    %p123 = scmp.eq.s32.totalorder %s22, 1
    %p124 = por %p122, %p123
    %p125 = scmp.ne.s32.totalorder %s116, %s117
    %p126 = scmp.eq.s32.totalorder %s22, 0
    %p127 = por %p125, %p126
    %p128 = scmp.ne.s32.totalorder %s116, %s117
    %p129 = scmp.eq.s32.totalorder %s23, 1
    %p130 = por %p128, %p129
    %p132 = scmp.ne.s32.totalorder %s117, %s131
    %p133 = scmp.eq.s32.totalorder %s23, 0
    %p134 = por %p132, %p133
    %s136 = sadd.s32 %s135, 1
    %p139 = scmp.eq.s32.totalorder %s17, 1
    %p140 = scmp.ne.s32.totalorder %s135, %s137
    %p141 = scmp.eq.s32.totalorder %s17, 0
    %p142 = por %p140, %p141
    %p143 = scmp.ne.s32.totalorder %s135, %s137
    %p144 = scmp.eq.s32.totalorder %s22, 1
    %p145 = por %p143, %p144
    %p146 = scmp.ne.s32.totalorder %s137, %s138
    %p147 = scmp.eq.s32.totalorder %s22, 0
    %p148 = por %p146, %p147
    %p149 = scmp.ne.s32.totalorder %s137, %s138
    %p150 = scmp.eq.s32.totalorder %s23, 1
    %p151 = por %p149, %p150
    %p153 = scmp.ne.s32.totalorder %s138, %s152
    %p154 = scmp.eq.s32.totalorder %s23, 0
    %p155 = por %p153, %p154
    %s157 = sadd.s32 %s156, 1
    %p160 = scmp.eq.s32.totalorder %s17, 1
    %p161 = scmp.ne.s32.totalorder %s156, %s158
    %p162 = scmp.eq.s32.totalorder %s17, 0
    %p163 = por %p161, %p162
    %p164 = scmp.ne.s32.totalorder %s156, %s158
    %p165 = scmp.eq.s32.totalorder %s22, 1
    %p166 = por %p164, %p165
    %p167 = scmp.ne.s32.totalorder %s158, %s159
    %p168 = scmp.eq.s32.totalorder %s22, 0
    %p169 = por %p167, %p168
    %p170 = scmp.ne.s32.totalorder %s158, %s159
    %p171 = scmp.eq.s32.totalorder %s23, 1
    %p172 = por %p170, %p171
    %p174 = scmp.ne.s32.totalorder %s159, %s173
    %p175 = scmp.eq.s32.totalorder %s23, 0
    %p176 = por %p174, %p175
    %s178 = sadd.s32 %s177, 1
    %p181 = scmp.eq.s32.totalorder %s17, 1
    %p182 = scmp.ne.s32.totalorder %s177, %s179
    %p183 = scmp.eq.s32.totalorder %s17, 0
    %p184 = por %p182, %p183
    %p185 = scmp.ne.s32.totalorder %s177, %s179
    %p186 = scmp.eq.s32.totalorder %s22, 1
    %p187 = por %p185, %p186
    %p188 = scmp.ne.s32.totalorder %s179, %s180
    %p189 = scmp.eq.s32.totalorder %s22, 0
    %p190 = por %p188, %p189
    %p191 = scmp.ne.s32.totalorder %s179, %s180
    %p192 = scmp.eq.s32.totalorder %s23, 1
    %p193 = por %p191, %p192
    %p195 = scmp.ne.s32.totalorder %s180, %s194
    %p196 = scmp.eq.s32.totalorder %s23, 0
    %p197 = por %p195, %p196
    %s199 = sadd.s32 %s198, 1
    %p202 = scmp.eq.s32.totalorder %s17, 1
    %p203 = scmp.ne.s32.totalorder %s198, %s200
    %p204 = scmp.eq.s32.totalorder %s17, 0
    %p205 = por %p203, %p204
    %p206 = scmp.ne.s32.totalorder %s198, %s200
    %p207 = scmp.eq.s32.totalorder %s22, 1
    %p208 = por %p206, %p207
    %p209 = scmp.ne.s32.totalorder %s200, %s201
    %p210 = scmp.eq.s32.totalorder %s22, 0
    %p211 = por %p209, %p210
    %p212 = scmp.ne.s32.totalorder %s200, %s201
    %p213 = scmp.eq.s32.totalorder %s23, 1
    %p214 = por %p212, %p213
    %p216 = scmp.ne.s32.totalorder %s201, %s215
    %p217 = scmp.eq.s32.totalorder %s23, 0
    %p218 = por %p216, %p217
    %s220 = sadd.s32 %s219, 1
    %p223 = scmp.eq.s32.totalorder %s17, 1
    %p224 = scmp.ne.s32.totalorder %s219, %s221
    %p225 = scmp.eq.s32.totalorder %s17, 0
    %p226 = por %p224, %p225
    %p227 = scmp.ne.s32.totalorder %s219, %s221
    %p228 = scmp.eq.s32.totalorder %s22, 1
    %p229 = por %p227, %p228
    %p230 = scmp.ne.s32.totalorder %s221, %s222
    %p231 = scmp.eq.s32.totalorder %s22, 0
    %p232 = por %p230, %p231
    %p233 = scmp.ne.s32.totalorder %s221, %s222
    %p234 = scmp.eq.s32.totalorder %s23, 1
    %p235 = por %p233, %p234
    %p237 = scmp.ne.s32.totalorder %s222, %s236
    %p238 = scmp.eq.s32.totalorder %s23, 0
    %p239 = por %p237, %p238
    %s241 = sadd.s32 %s240, 1
    %p244 = scmp.eq.s32.totalorder %s17, 1
    %p245 = scmp.ne.s32.totalorder %s240, %s242
    %p246 = scmp.eq.s32.totalorder %s17, 0
    %p247 = por %p245, %p246
    %p248 = scmp.ne.s32.totalorder %s240, %s242
    %p249 = scmp.eq.s32.totalorder %s22, 1
    %p250 = por %p248, %p249
    %p251 = scmp.ne.s32.totalorder %s242, %s243
    %p252 = scmp.eq.s32.totalorder %s22, 0
    %p253 = por %p251, %p252
    %p254 = scmp.ne.s32.totalorder %s242, %s243
    %p255 = scmp.eq.s32.totalorder %s23, 1
    %p256 = por %p254, %p255
    %p258 = scmp.ne.s32.totalorder %s243, %s257
    %p259 = scmp.eq.s32.totalorder %s23, 0
    %p260 = por %p258, %p259
    %s261 = ssub.s32 %s17, %s24
    %p262 = scmp.eq.s32.totalorder %s261, 0
    %s264 = sadd.s32 %s263, 1
    %s265 = scalar_select %p262, %s263, %s264
    %p268 = pneg %p262
    %p269 = scmp.eq.s32.totalorder %s17, 1
    %p270 = por %p268, %p269
    %p271 = scmp.ne.s32.totalorder %s263, %s266
    %p272 = scmp.eq.s32.totalorder %s17, 0
    %p273 = por %p271, %p272
    %p274 = scmp.ne.s32.totalorder %s263, %s266
    %p275 = scmp.eq.s32.totalorder %s22, 1
    %p276 = por %p274, %p275
    %p277 = scmp.ne.s32.totalorder %s266, %s267
    %p278 = scmp.eq.s32.totalorder %s22, 0
    %p279 = por %p277, %p278
    %p280 = scmp.ne.s32.totalorder %s266, %s267
    %p281 = scmp.eq.s32.totalorder %s23, 1
    %p282 = por %p280, %p281
    %p284 = scmp.ne.s32.totalorder %s267, %s283
    %p285 = scmp.eq.s32.totalorder %s23, 0
    %p286 = por %p284, %p285
    %p287 = scmp.le.s32.totalorder 1, %s17
    %p288 = scmp.lt.s32.totalorder %s17, 3
    %p289 = pnand %p287, %p288
    %p290 = pneg %p289
    // Predicated region
    $region9: #{resnet_encoder_forward.1} parent=5 // pred_check
      _
    $region10: #{resnet_encoder_forward.1} parent=5 // pred_check_branch
      %292 = sbr.rel (%p289) target = $region12
    $region11: #{resnet_encoder_forward.1} parent=5 // pred_region
      %s293 = ssub.s32 %s17, 1
      // Predicated region
      $region13: #{resnet_encoder_forward.1} parent=11 // pred_check
        %p294 = pneg %p64
      $region14: #{resnet_encoder_forward.1} parent=11 // pred_check_branch
        %296 = sbr.rel (%p294) target = $region16
      $region15: #{resnet_encoder_forward.1} parent=11 // pred_region
        _
      $region16: #{resnet_encoder_forward.1} parent=11 // pred_fallthru
        _
      // Predicated region
      $region17: #{resnet_encoder_forward.1} parent=11 // pred_check
        %p297 = pneg %p85
      $region18: #{resnet_encoder_forward.1} parent=11 // pred_check_branch
        %299 = sbr.rel (%p297) target = $region20
      $region19: #{resnet_encoder_forward.1} parent=11 // pred_region
        _
      $region20: #{resnet_encoder_forward.1} parent=11 // pred_fallthru
        _
      // Predicated region
      $region21: #{resnet_encoder_forward.1} parent=11 // pred_check
        %p300 = pneg %p106
      $region22: #{resnet_encoder_forward.1} parent=11 // pred_check_branch
        %302 = sbr.rel (%p300) target = $region24
      $region23: #{resnet_encoder_forward.1} parent=11 // pred_region
        _
      $region24: #{resnet_encoder_forward.1} parent=11 // pred_fallthru
        _
      // Predicated region
      $region25: #{resnet_encoder_forward.1} parent=11 // pred_check
        %p303 = pneg %p127
      $region26: #{resnet_encoder_forward.1} parent=11 // pred_check_branch
        %305 = sbr.rel (%p303) target = $region28
      $region27: #{resnet_encoder_forward.1} parent=11 // pred_region
        _
      $region28: #{resnet_encoder_forward.1} parent=11 // pred_fallthru
        _
      // Predicated region
      $region29: #{resnet_encoder_forward.1} parent=11 // pred_check
        %p306 = pneg %p148
      $region30: #{resnet_encoder_forward.1} parent=11 // pred_check_branch
        %308 = sbr.rel (%p306) target = $region32
      $region31: #{resnet_encoder_forward.1} parent=11 // pred_region
        _
      $region32: #{resnet_encoder_forward.1} parent=11 // pred_fallthru
        _
      // Predicated region
      $region33: #{resnet_encoder_forward.1} parent=11 // pred_check
        %p309 = pneg %p169
      $region34: #{resnet_encoder_forward.1} parent=11 // pred_check_branch
        %311 = sbr.rel (%p309) target = $region36
      $region35: #{resnet_encoder_forward.1} parent=11 // pred_region
        _
      $region36: #{resnet_encoder_forward.1} parent=11 // pred_fallthru
        _
      // Predicated region
      $region37: #{resnet_encoder_forward.1} parent=11 // pred_check
        %p312 = pneg %p190
      $region38: #{resnet_encoder_forward.1} parent=11 // pred_check_branch
        %314 = sbr.rel (%p312) target = $region40
      $region39: #{resnet_encoder_forward.1} parent=11 // pred_region
        _
      $region40: #{resnet_encoder_forward.1} parent=11 // pred_fallthru
        _
      // Predicated region
      $region41: #{resnet_encoder_forward.1} parent=11 // pred_check
        %p315 = pneg %p211
      $region42: #{resnet_encoder_forward.1} parent=11 // pred_check_branch
        %317 = sbr.rel (%p315) target = $region44
      $region43: #{resnet_encoder_forward.1} parent=11 // pred_region
        _
      $region44: #{resnet_encoder_forward.1} parent=11 // pred_fallthru
        _
      // Predicated region
      $region45: #{resnet_encoder_forward.1} parent=11 // pred_check
        %p318 = pneg %p232
      $region46: #{resnet_encoder_forward.1} parent=11 // pred_check_branch
        %320 = sbr.rel (%p318) target = $region48
      $region47: #{resnet_encoder_forward.1} parent=11 // pred_region
        _
      $region48: #{resnet_encoder_forward.1} parent=11 // pred_fallthru
        _
      // Predicated region
      $region49: #{resnet_encoder_forward.1} parent=11 // pred_check
        %p321 = pneg %p253
      $region50: #{resnet_encoder_forward.1} parent=11 // pred_check_branch
        %323 = sbr.rel (%p321) target = $region52
      $region51: #{resnet_encoder_forward.1} parent=11 // pred_region
        _
      $region52: #{resnet_encoder_forward.1} parent=11 // pred_fallthru
        _
    $region12: #{resnet_encoder_forward.1} parent=5 // pred_fallthru
      _
    %p324 = scmp.lt.s32.totalorder %s17, 2
    // Predicated region
    $region53: #{resnet_encoder_forward.1} parent=5 // pred_check
      %p325 = pneg %p324
    $region54: #{resnet_encoder_forward.1} parent=5 // pred_check_branch
      %327 = sbr.rel (%p325) target = $region56
    $region55: #{resnet_encoder_forward.1} parent=5 // pred_region
      // Predicated region
      $region57: #{resnet_encoder_forward.1} parent=55 // pred_check
        %p328 = pneg %p37
      $region58: #{resnet_encoder_forward.1} parent=55 // pred_check_branch
        %330 = sbr.rel (%p328) target = $region60
      $region59: #{resnet_encoder_forward.1} parent=55 // pred_region
        %p331 = scmp.lt.s32.totalorder %s17, 1
        %s332 = scalar_select %p331, %s17, 1
        %s333 = smul.addr %s332, 8
        %s334 = smul.addr %s333, 4
        %s335 = scalar_lea.vmem %s0, %s334
      $region60: #{resnet_encoder_forward.1} parent=55 // pred_fallthru
        _
    $region56: #{resnet_encoder_forward.1} parent=5 // pred_fallthru
      _
    %p336 = scmp.le.s32.totalorder 1, %s17
    %p337 = scmp.lt.s32.totalorder %s17, 3
    %p338 = pnand %p336, %p337
    %p339 = pneg %p338
    // Predicated region
    $region61: #{resnet_encoder_forward.1} parent=5 // pred_check
      _
    $region62: #{resnet_encoder_forward.1} parent=5 // pred_check_branch
      %341 = sbr.rel (%p338) target = $region64
    $region63: #{resnet_encoder_forward.1} parent=5 // pred_region
      %s342 = ssub.s32 %s17, 1
      %p343 = scmp.lt.s32.totalorder %s22, 1
      %s344 = scalar_select %p343, %s22, 1
      %s345 = smul.addr %s344, 8
      %s346 = smul.addr %s345, 4
      %s347 = scalar_lea.vmem %s0, %s346
      %p348 = pneg %p43
      %p349 = pneg %p40
      %p350 = pneg %p64
      %p351 = pneg %p61
      %p352 = pneg %p85
      %p353 = pneg %p82
      %p354 = pneg %p106
      %p355 = pneg %p103
      %p356 = pneg %p127
      %p357 = pneg %p124
      %p358 = pneg %p148
      %p359 = pneg %p145
      %p360 = pneg %p169
      %p361 = pneg %p166
      %p362 = pneg %p190
      %p363 = pneg %p187
      %p364 = pneg %p211
      %p365 = pneg %p208
      %p366 = pneg %p232
      %p367 = pneg %p229
      %p368 = pneg %p253
      %p369 = pneg %p250
      %p370 = pneg %p279
      %p371 = pneg %p276
      %p372 = scmp.lt.s32.totalorder %s22, 1
      %s373 = scalar_select %p372, %s22, 1
      %s374 = smul.addr %s373, 2
      %s375 = scalar_lea.vmem %s11, %s374
      %p376 = scmp.lt.s32.totalorder %s22, 1
      %s377 = scalar_select %p376, %s22, 1
      %s378 = smul.addr %s377, 8
      %s379 = smul.addr %s378, 4
      %s380 = scalar_lea.vmem %s0, %s379
      %p381 = scmp.lt.s32.totalorder %s22, 1
      %s382 = scalar_select %p381, %s22, 1
      %s383 = smul.addr %s382, 2
      %s384 = scalar_lea.vmem %s11, %s383
      %vm386 = vcmask 261120
      %387 = vst.msk [vmem:[#allocation2] sm:$0xff] %vm386, 0.0
      %388 = vst.msk [vmem:[#allocation2 + $0x8] sm:$0xff] %vm386, 0.0
      %389 = vst.msk [vmem:[#allocation2 + $0x10] sm:$0xff] %vm386, 0.0
      %390 = vst.msk [vmem:[#allocation2 + $0x18] sm:$0xff] %vm386, 0.0
      %391 = vst.msk [vmem:[#allocation2 + $0x20] sm:$0xff] %vm386, 0.0
      %392 = vst.msk [vmem:[#allocation2 + $0x28] sm:$0xff] %vm386, 0.0
      %393 = vst.msk [vmem:[#allocation2 + $0x30] sm:$0xff] %vm386, 0.0
      %394 = vst.msk [vmem:[#allocation2 + $0x38] sm:$0xff] %vm386, 0.0
      %395 = vst.msk [vmem:[#allocation2 + $0x40] sm:$0xff] %vm386, 0.0
      %396 = vst.msk [vmem:[#allocation2 + $0x48] sm:$0xff] %vm386, 0.0
      %397 = vst.msk [vmem:[#allocation2 + $0x50] sm:$0xff] %vm386, 0.0
      %398 = vst.msk [vmem:[#allocation2 + $0x58] sm:$0xff] %vm386, 0.0
      %v399 = vld [vmem:[%s1] sm:$0xff]
      %v400 = vld [vmem:[%s1 + $0x8] sm:$0xff]
      %v401 = vld [vmem:[%s1 + $0x10] sm:$0xff]
      %v402 = vld [vmem:[%s1 + $0x18] sm:$0xff]
      %v403 = vld [vmem:[%s1 + $0x20] sm:$0xff]
      %v404 = vld [vmem:[%s1 + $0x28] sm:$0xff]
      %v405 = vld [vmem:[%s1 + $0x30] sm:$0xff]
      %v406 = vld [vmem:[%s1 + $0x38] sm:$0xff]
      %v407 = vld [vmem:[%s2] sm:$0xff]
      %v408 = vld [vmem:[%s2 + $0x8] sm:$0xff]
      %v409 = vld [vmem:[%s2 + $0x10] sm:$0xff]
      %v410 = vld [vmem:[%s2 + $0x18] sm:$0xff]
      %v411 = vld [vmem:[%s2 + $0x20] sm:$0xff]
      %v412 = vld [vmem:[%s2 + $0x28] sm:$0xff]
      %v413 = vld [vmem:[%s2 + $0x30] sm:$0xff]
      %v414 = vld [vmem:[%s2 + $0x38] sm:$0xff]
      %v415 = vld [vmem:[%s380] sm:$0xf]
      %v416 = vld [vmem:[%s380 + $0x4] sm:$0xf]
      %v417 = vld [vmem:[%s380 + $0x8] sm:$0xf]
      %v418 = vld [vmem:[%s380 + $0xc] sm:$0xf]
      %v419 = vld [vmem:[%s380 + $0x10] sm:$0xf]
      %v420 = vld [vmem:[%s380 + $0x14] sm:$0xf]
      %v421 = vld [vmem:[%s380 + $0x18] sm:$0xf]
      %v422 = vld [vmem:[%s380 + $0x1c] sm:$0xf]
      %v423 = vld [vmem:[%s3] sm:$0xf]
      %v424 = vld [vmem:[%s3 + $0x4] sm:$0xf]
      %v425 = vld [vmem:[%s3 + $0x8] sm:$0xf]
      %v426 = vld [vmem:[%s3 + $0xc] sm:$0xf]
      %v427 = vld [vmem:[%s3 + $0x10] sm:$0x3]
      %v428 = vld [vmem:[%s4] sm:$0x1]
      %v430 = vlaneseq
      %v431 = vshrl.u32 %v430, 7
      %v432 = vsub.s32 0, %v431
      %v433 = vrot.slane %v428, %v432
      %v443 = vunpack.c.l.b16 %v415
      %v444 = vunpack.c.l.b16 %v416
      %v445 = vunpack.c.l.b16 %v417
      %v446 = vunpack.c.l.b16 %v418
      %v447 = vunpack.c.l.b16 %v419
      %v448 = vunpack.c.l.b16 %v420
      %v449 = vunpack.c.l.b16 %v421
      %v450 = vunpack.c.l.b16 %v422
      %v451 = vpack.c.b16 %v444, %v443
      %v452 = vpack.c.b16 %v446, %v445
      %v453 = vpack.c.b16 %v448, %v447
      %v454 = vpack.c.b16 %v450, %v449
      %v460 = vunpack.c.l.b16 %v423
      %v461 = vunpack.c.l.b16 %v424
      %v462 = vunpack.c.l.b16 %v425
      %v463 = vunpack.c.l.b16 %v426
      %v464 = vunpack.c.l.b16 %v427
      %v465 = vpack.c.b16 %v461, %v460
      %v466 = vpack.c.b16 %v463, %v462
      %v467 = vpack.c.b16 %v464, %v464
      %vm470 = vcmask 293888
      %v472 = vsel %vm470, %v451, 0
      %v475 = vsel %vm470, %v452, 0
      %v478 = vsel %vm470, %v453, 0
      %v481 = vsel %vm470, %v454, 0
      %vm483 = vcmask 1041408
      %v485 = vsel %vm483, %v467, 0
      %487 = vmatprep.subr.bf16.mxu0 0
      %488 = vmatpush1.bf16.msra.mxu0 %v465
      %489 = vmatprep.subr.bf16.mxu0 0
      %490 = vmatpush1.bf16.msra.mxu0 %v466
      %491 = vmatprep.subr.bf16.mxu0 0
      %492 = vmatpush1.bf16.msra.mxu0 %v485
      %493 = vmatprep.subr.bf16.mxu0 0
      %494 = vmatpush1.bf16.msra.mxu0 0
      %495 = vmatprep.subr.bf16.mxu0 0
      %496 = vmatpush1.bf16.msra.mxu0 0
      %497 = vmatprep.subr.bf16.mxu0 0
      %498 = vmatpush1.bf16.msra.mxu0 0
      %499 = vmatprep.subr.bf16.mxu0 0
      %500 = vmatpush1.bf16.msra.mxu0 0
      %501 = vmatprep.subr.bf16.mxu0 0
      %502 = vmatpush1.bf16.msra.mxu0 0
      %503 = vmatprep.subr.bf16.mxu0 0
      %504 = vmatpush1.bf16.msra.mxu0 0
      %505 = vmatprep.subr.bf16.mxu0 0
      %506 = vmatpush1.bf16.msra.mxu0 0
      %507 = vmatprep.subr.bf16.mxu0 0
      %508 = vmatpush1.bf16.msra.mxu0 0
      %509 = vmatprep.subr.bf16.mxu0 0
      %510 = vmatpush1.bf16.msra.mxu0 0
      %511 = vmatprep.subr.bf16.mxu0 0
      %512 = vmatpush1.bf16.msra.mxu0 0
      %513 = vmatprep.subr.bf16.mxu0 0
      %514 = vmatpush1.bf16.msra.mxu0 0
      %515 = vmatprep.subr.bf16.mxu0 0
      %516 = vmatpush1.bf16.msra.mxu0 0
      %517 = vmatprep.subr.bf16.mxu0 0
      %518 = vmatpush1.bf16.msra.mxu0 0
      %519 = vmatprep.mubr.bf16.mxu0 0
      %520 = vmatmul.mubr.bf16.gmra.mrb[0].mxu0 %v472
      %v521 = vpop.f32.mrb[0].mxu0
      %v522 = vadd.f32 %v433, %v521
      %v523 = vpop.f32.mrb[0].mxu0
      %v524 = vpop.f32.mrb[0].mxu0
      %v525 = vadd.f32 %v433, %v524
      %v526 = vpop.f32.mrb[0].mxu0
      %527 = vmatprep.mubr.bf16.mxu0 0
      %528 = vmatmul.mubr.bf16.gmra.mrb[0].mxu0 %v475
      %v529 = vpop.f32.mrb[0].mxu0
      %v530 = vadd.f32 %v433, %v529
      %v531 = vpop.f32.mrb[0].mxu0
      %v532 = vpop.f32.mrb[0].mxu0
      %v533 = vadd.f32 %v433, %v532
      %v534 = vpop.f32.mrb[0].mxu0
      %535 = vmatprep.mubr.bf16.mxu0 0
      %536 = vmatmul.mubr.bf16.gmra.mrb[0].mxu0 %v478
      %v537 = vpop.f32.mrb[0].mxu0
      %v538 = vadd.f32 %v433, %v537
      %v539 = vpop.f32.mrb[0].mxu0
      %v540 = vpop.f32.mrb[0].mxu0
      %v541 = vadd.f32 %v433, %v540
      %v542 = vpop.f32.mrb[0].mxu0
      %543 = vmatprep.mubr.bf16.mxu0 0
      %544 = vmatmul.mubr.bf16.gmra.mrb[0].mxu0 %v481
      %v545 = vpop.f32.mrb[0].mxu0
      %v546 = vadd.f32 %v433, %v545
      %v547 = vpop.f32.mrb[0].mxu0
      %v548 = vpop.f32.mrb[0].mxu0
      %v549 = vadd.f32 %v433, %v548
      %v550 = vpop.f32.mrb[0].mxu0
      %551 = vdwg.mxu0
      %v552 = vmax.f32 %v522, 0.0
      %v553 = vmax.f32 %v525, 0.0
      %v554 = vmax.f32 %v530, 0.0
      %v555 = vmax.f32 %v533, 0.0
      %v556 = vmax.f32 %v538, 0.0
      %v557 = vmax.f32 %v541, 0.0
      %v558 = vmax.f32 %v546, 0.0
      %v559 = vmax.f32 %v549, 0.0
      %v560 = vld [vmem:[%s6] sm:$0x1]
      %561 = vst.msk [vmem:[#allocation2 + $0x10] sm:$0xff] %vm386, %v552
      %562 = vst.msk [vmem:[#allocation2 + $0x18] sm:$0xff] %vm386, %v553
      %563 = vst.msk [vmem:[#allocation2 + $0x20] sm:$0xff] %vm386, %v554
      %564 = vst.msk [vmem:[#allocation2 + $0x28] sm:$0xff] %vm386, %v555
      %565 = vst.msk [vmem:[#allocation2 + $0x30] sm:$0xff] %vm386, %v556
      %566 = vst.msk [vmem:[#allocation2 + $0x38] sm:$0xff] %vm386, %v557
      %567 = vst.msk [vmem:[#allocation2 + $0x40] sm:$0xff] %vm386, %v558
      %568 = vst.msk [vmem:[#allocation2 + $0x48] sm:$0xff] %vm386, %v559
      %v569 = vld [vmem:[#allocation2 + $0x7] sm:$0xff]
      %v570 = vld [vmem:[#allocation2 + $0xf] sm:$0xff]
      %v571 = vld [vmem:[#allocation2 + $0x17] sm:$0xff]
      %v572 = vld [vmem:[#allocation2 + $0x1f] sm:$0xff]
      %v573 = vld [vmem:[#allocation2 + $0x27] sm:$0xff]
      %v574 = vld [vmem:[#allocation2 + $0x2f] sm:$0xff]
      %v575 = vld [vmem:[#allocation2 + $0x37] sm:$0xff]
      %v576 = vld [vmem:[#allocation2 + $0x3f] sm:$0xff]
      %578 = vset.pattern.permute.xlu0 0
      %579 = vperm.xlu0 %578, %v399
      %v580 = vpop.permute.xlu0 %579
      %583 = vset.pattern.permute.xlu0 0
      %584 = vperm.xlu0 %583, %v400
      %v585 = vpop.permute.xlu0 %584
      %588 = vset.pattern.permute.xlu0 0
      %589 = vperm.xlu0 %588, %v401
      %v590 = vpop.permute.xlu0 %589
      %593 = vset.pattern.permute.xlu0 0
      %594 = vperm.xlu0 %593, %v402
      %v595 = vpop.permute.xlu0 %594
      %598 = vset.pattern.permute.xlu0 0
      %599 = vperm.xlu0 %598, %v403
      %v600 = vpop.permute.xlu0 %599
      %603 = vset.pattern.permute.xlu0 0
      %604 = vperm.xlu0 %603, %v404
      %v605 = vpop.permute.xlu0 %604
      %608 = vset.pattern.permute.xlu0 0
      %609 = vperm.xlu0 %608, %v405
      %v610 = vpop.permute.xlu0 %609
      %613 = vset.pattern.permute.xlu0 0
      %614 = vperm.xlu0 %613, %v406
      %v615 = vpop.permute.xlu0 %614
      %v617 = vmul.f32 %v569, %v580
      %v618 = vmul.f32 %v570, %v585
      %v619 = vmul.f32 %v571, %v590
      %v620 = vmul.f32 %v572, %v595
      %v621 = vmul.f32 %v573, %v600
      %v622 = vmul.f32 %v574, %v605
      %v623 = vmul.f32 %v575, %v610
      %v624 = vmul.f32 %v576, %v615
      %v625 = vld [vmem:[%s5] sm:$0xff]
      %v626 = vld [vmem:[%s5 + $0x8] sm:$0xff]
      %v627 = vld [vmem:[%s5 + $0x10] sm:$0xff]
      %v628 = vld [vmem:[%s5 + $0x18] sm:$0xff]
      %v629 = vld [vmem:[#allocation2 + $0x8] sm:$0xff]
      %v630 = vld [vmem:[#allocation2 + $0x10] sm:$0xff]
      %v631 = vld [vmem:[#allocation2 + $0x18] sm:$0xff]
      %v632 = vld [vmem:[#allocation2 + $0x20] sm:$0xff]
      %v633 = vld [vmem:[#allocation2 + $0x28] sm:$0xff]
      %v634 = vld [vmem:[#allocation2 + $0x30] sm:$0xff]
      %v635 = vld [vmem:[#allocation2 + $0x38] sm:$0xff]
      %v636 = vld [vmem:[#allocation2 + $0x40] sm:$0xff]
      %s637 = scalar_lea.vmem %s5, 32
      %v638 = vld [vmem:[%s637] sm:$0xff]
      %v639 = vld [vmem:[%s637 + $0x8] sm:$0xff]
      %v640 = vld [vmem:[%s637 + $0x10] sm:$0xff]
      %v641 = vld [vmem:[%s637 + $0x18] sm:$0xff]
      %v643 = vsel %vm386, %v629, 0
      %v646 = vsel %vm386, %v630, 0
      %v649 = vsel %vm386, %v631, 0
      %v652 = vsel %vm386, %v632, 0
      %v655 = vsel %vm386, %v633, 0
      %v658 = vsel %vm386, %v634, 0
      %v661 = vsel %vm386, %v635, 0
      %v664 = vsel %vm386, %v636, 0
      %666 = vmatprep.subr.mxu0 0.0
      %667 = vmatpush1.msra.mxu0 %v638
      %668 = vmatprep.subr.mxu0 0.0
      %669 = vmatpush1.msra.mxu0 %v639
      %670 = vmatprep.subr.mxu0 0.0
      %671 = vmatpush1.msra.mxu0 %v640
      %672 = vmatprep.subr.mxu0 0.0
      %673 = vmatpush1.msra.mxu0 %v641
      %674 = vmatprep.subr.mxu0 0.0
      %675 = vmatpush1.msra.mxu0 0.0
      %676 = vmatprep.subr.mxu0 0.0
      %677 = vmatpush1.msra.mxu0 0.0
      %678 = vmatprep.subr.mxu0 0.0
      %679 = vmatpush1.msra.mxu0 0.0
      %680 = vmatprep.subr.mxu0 0.0
      %681 = vmatpush1.msra.mxu0 0.0
      %682 = vmatprep.subr.mxu0 0.0
      %683 = vmatpush1.msra.mxu0 0.0
      %684 = vmatprep.subr.mxu0 0.0
      %685 = vmatpush1.msra.mxu0 0.0
      %686 = vmatprep.subr.mxu0 0.0
      %687 = vmatpush1.msra.mxu0 0.0
      %688 = vmatprep.subr.mxu0 0.0
      %689 = vmatpush1.msra.mxu0 0.0
      %690 = vmatprep.subr.mxu0 0.0
      %691 = vmatpush1.msra.mxu0 0.0
      %692 = vmatprep.subr.mxu0 0.0
      %693 = vmatpush1.msra.mxu0 0.0
      %694 = vmatprep.subr.mxu0 0.0
      %695 = vmatpush1.msra.mxu0 0.0
      %696 = vmatprep.subr.mxu0 0.0
      %697 = vmatpush1.msra.mxu0 0.0
      %698 = vmatprep.subr.mxu0 0.0
      %699 = vmatpush1.msra.mxu0 0.0
      %700 = vmatprep.subr.mxu0 0.0
      %701 = vmatpush1.msra.mxu0 0.0
      %702 = vmatprep.subr.mxu0 0.0
      %703 = vmatpush1.msra.mxu0 0.0
      %704 = vmatprep.subr.mxu0 0.0
      %705 = vmatpush1.msra.mxu0 0.0
      %706 = vmatprep.subr.mxu0 0.0
      %707 = vmatpush1.msra.mxu0 0.0
      %708 = vmatprep.subr.mxu0 0.0
      %709 = vmatpush1.msra.mxu0 0.0
      %710 = vmatprep.subr.mxu0 0.0
      %711 = vmatpush1.msra.mxu0 0.0
      %712 = vmatprep.subr.mxu0 0.0
      %713 = vmatpush1.msra.mxu0 0.0
      %714 = vmatprep.subr.mxu0 0.0
      %715 = vmatpush1.msra.mxu0 0.0
      %716 = vmatprep.subr.mxu0 0.0
      %717 = vmatpush1.msra.mxu0 0.0
      %718 = vmatprep.subr.mxu0 0.0
      %719 = vmatpush1.msra.mxu0 0.0
      %720 = vmatprep.subr.mxu0 0.0
      %721 = vmatpush1.msra.mxu0 0.0
      %722 = vmatprep.subr.mxu0 0.0
      %723 = vmatpush1.msra.mxu0 0.0
      %724 = vmatprep.subr.mxu0 0.0
      %725 = vmatpush1.msra.mxu0 0.0
      %726 = vmatprep.subr.mxu0 0.0
      %727 = vmatpush1.msra.mxu0 0.0
      %728 = vmatprep.subr.mxu0 0.0
      %729 = vmatpush1.msra.mxu0 0.0
      %730 = vmatprep.mubr.f32.mxu0 0.0
      %731 = vmatmul.mubr.f32.gmra.mrb[0].mxu0 %v643
      %v732 = vpop.f32.mrb[0].mxu0
      %v733 = vadd.f32 0.0, %v732
      %v734 = vpop.f32.mrb[0].mxu0
      %735 = vmatprep.mubr.f32.mxu0 0.0
      %736 = vmatmul.mubr.f32.gmra.mrb[0].mxu0 %v646
      %v737 = vpop.f32.mrb[0].mxu0
      %v738 = vadd.f32 0.0, %v737
      %v739 = vpop.f32.mrb[0].mxu0
      %740 = vmatprep.mubr.f32.mxu0 0.0
      %741 = vmatmul.mubr.f32.gmra.mrb[0].mxu0 %v649
      %v742 = vpop.f32.mrb[0].mxu0
      %v743 = vadd.f32 0.0, %v742
      %v744 = vpop.f32.mrb[0].mxu0
      %745 = vmatprep.mubr.f32.mxu0 0.0
      %746 = vmatmul.mubr.f32.gmra.mrb[0].mxu0 %v652
      %v747 = vpop.f32.mrb[0].mxu0
      %v748 = vadd.f32 0.0, %v747
      %v749 = vpop.f32.mrb[0].mxu0
      %750 = vmatprep.mubr.f32.mxu0 0.0
      %751 = vmatmul.mubr.f32.gmra.mrb[0].mxu0 %v655
      %v752 = vpop.f32.mrb[0].mxu0
      %v753 = vadd.f32 0.0, %v752
      %v754 = vpop.f32.mrb[0].mxu0
      %755 = vmatprep.mubr.f32.mxu0 0.0
      %756 = vmatmul.mubr.f32.gmra.mrb[0].mxu0 %v658
      %v757 = vpop.f32.mrb[0].mxu0
      %v758 = vadd.f32 0.0, %v757
      %v759 = vpop.f32.mrb[0].mxu0
      %760 = vmatprep.mubr.f32.mxu0 0.0
      %761 = vmatmul.mubr.f32.gmra.mrb[0].mxu0 %v661
      %v762 = vpop.f32.mrb[0].mxu0
      %v763 = vadd.f32 0.0, %v762
      %v764 = vpop.f32.mrb[0].mxu0
      %765 = vmatprep.mubr.f32.mxu0 0.0
      %766 = vmatmul.mubr.f32.gmra.mrb[0].mxu0 %v664
      %v767 = vpop.f32.mrb[0].mxu0
      %v768 = vadd.f32 0.0, %v767
      %v769 = vpop.f32.mrb[0].mxu0
      %770 = vdwg.mxu0
      %v772 = vsel %vm386, %v617, 0
      %v775 = vsel %vm386, %v618, 0
      %v778 = vsel %vm386, %v619, 0
      %v781 = vsel %vm386, %v620, 0
      %v784 = vsel %vm386, %v621, 0
      %v787 = vsel %vm386, %v622, 0
      %v790 = vsel %vm386, %v623, 0
      %v793 = vsel %vm386, %v624, 0
      %795 = vmatprep.subr.mxu0 0.0
      %796 = vmatpush1.msra.mxu0 %v625
      %797 = vmatprep.subr.mxu0 0.0
      %798 = vmatpush1.msra.mxu0 %v626
      %799 = vmatprep.subr.mxu0 0.0
      %800 = vmatpush1.msra.mxu0 %v627
      %801 = vmatprep.subr.mxu0 0.0
      %802 = vmatpush1.msra.mxu0 %v628
      %803 = vmatprep.subr.mxu0 0.0
      %804 = vmatpush1.msra.mxu0 0.0
      %805 = vmatprep.subr.mxu0 0.0
      %806 = vmatpush1.msra.mxu0 0.0
      %807 = vmatprep.subr.mxu0 0.0
      %808 = vmatpush1.msra.mxu0 0.0
      %809 = vmatprep.subr.mxu0 0.0
      %810 = vmatpush1.msra.mxu0 0.0
      %811 = vmatprep.subr.mxu0 0.0
      %812 = vmatpush1.msra.mxu0 0.0
      %813 = vmatprep.subr.mxu0 0.0
      %814 = vmatpush1.msra.mxu0 0.0
      %815 = vmatprep.subr.mxu0 0.0
      %816 = vmatpush1.msra.mxu0 0.0
      %817 = vmatprep.subr.mxu0 0.0
      %818 = vmatpush1.msra.mxu0 0.0
      %819 = vmatprep.subr.mxu0 0.0
      %820 = vmatpush1.msra.mxu0 0.0
      %821 = vmatprep.subr.mxu0 0.0
      %822 = vmatpush1.msra.mxu0 0.0
      %823 = vmatprep.subr.mxu0 0.0
      %824 = vmatpush1.msra.mxu0 0.0
      %825 = vmatprep.subr.mxu0 0.0
      %826 = vmatpush1.msra.mxu0 0.0
      %827 = vmatprep.subr.mxu0 0.0
      %828 = vmatpush1.msra.mxu0 0.0
      %829 = vmatprep.subr.mxu0 0.0
      %830 = vmatpush1.msra.mxu0 0.0
      %831 = vmatprep.subr.mxu0 0.0
      %832 = vmatpush1.msra.mxu0 0.0
      %833 = vmatprep.subr.mxu0 0.0
      %834 = vmatpush1.msra.mxu0 0.0
      %835 = vmatprep.subr.mxu0 0.0
      %836 = vmatpush1.msra.mxu0 0.0
      %837 = vmatprep.subr.mxu0 0.0
      %838 = vmatpush1.msra.mxu0 0.0
      %839 = vmatprep.subr.mxu0 0.0
      %840 = vmatpush1.msra.mxu0 0.0
      %841 = vmatprep.subr.mxu0 0.0
      %842 = vmatpush1.msra.mxu0 0.0
      %843 = vmatprep.subr.mxu0 0.0
      %844 = vmatpush1.msra.mxu0 0.0
      %845 = vmatprep.subr.mxu0 0.0
      %846 = vmatpush1.msra.mxu0 0.0
      %847 = vmatprep.subr.mxu0 0.0
      %848 = vmatpush1.msra.mxu0 0.0
      %849 = vmatprep.subr.mxu0 0.0
      %850 = vmatpush1.msra.mxu0 0.0
      %851 = vmatprep.subr.mxu0 0.0
      %852 = vmatpush1.msra.mxu0 0.0
      %853 = vmatprep.subr.mxu0 0.0
      %854 = vmatpush1.msra.mxu0 0.0
      %855 = vmatprep.subr.mxu0 0.0
      %856 = vmatpush1.msra.mxu0 0.0
      %857 = vmatprep.subr.mxu0 0.0
      %858 = vmatpush1.msra.mxu0 0.0
      %859 = vmatprep.mubr.f32.mxu0 0.0
      %860 = vmatmul.mubr.f32.gmra.mrb[0].mxu0 %v772
      %v861 = vpop.f32.mrb[0].mxu0
      %v862 = vadd.f32 %v733, %v861
      %v863 = vpop.f32.mrb[0].mxu0
      %864 = vmatprep.mubr.f32.mxu0 0.0
      %865 = vmatmul.mubr.f32.gmra.mrb[0].mxu0 %v775
      %v866 = vpop.f32.mrb[0].mxu0
      %v867 = vadd.f32 %v738, %v866
      %v868 = vpop.f32.mrb[0].mxu0
      %869 = vmatprep.mubr.f32.mxu0 0.0
      %870 = vmatmul.mubr.f32.gmra.mrb[0].mxu0 %v778
      %v871 = vpop.f32.mrb[0].mxu0
      %v872 = vadd.f32 %v743, %v871
      %v873 = vpop.f32.mrb[0].mxu0
      %874 = vmatprep.mubr.f32.mxu0 0.0
      %875 = vmatmul.mubr.f32.gmra.mrb[0].mxu0 %v781
      %v876 = vpop.f32.mrb[0].mxu0
      %v877 = vadd.f32 %v748, %v876
      %v878 = vpop.f32.mrb[0].mxu0
      %879 = vmatprep.mubr.f32.mxu0 0.0
      %880 = vmatmul.mubr.f32.gmra.mrb[0].mxu0 %v784
      %v881 = vpop.f32.mrb[0].mxu0
      %v882 = vadd.f32 %v753, %v881
      %v883 = vpop.f32.mrb[0].mxu0
      %884 = vmatprep.mubr.f32.mxu0 0.0
      %885 = vmatmul.mubr.f32.gmra.mrb[0].mxu0 %v787
      %v886 = vpop.f32.mrb[0].mxu0
      %v887 = vadd.f32 %v758, %v886
      %v888 = vpop.f32.mrb[0].mxu0
      %889 = vmatprep.mubr.f32.mxu0 0.0
      %890 = vmatmul.mubr.f32.gmra.mrb[0].mxu0 %v790
      %v891 = vpop.f32.mrb[0].mxu0
      %v892 = vadd.f32 %v763, %v891
      %v893 = vpop.f32.mrb[0].mxu0
      %894 = vmatprep.mubr.f32.mxu0 0.0
      %895 = vmatmul.mubr.f32.gmra.mrb[0].mxu0 %v793
      %v896 = vpop.f32.mrb[0].mxu0
      %v897 = vadd.f32 %v768, %v896
      %v898 = vpop.f32.mrb[0].mxu0
      %899 = vdwg.mxu0
      %v900 = vld [vmem:[#allocation2 + $0x9] sm:$0xff]
      %v901 = vld [vmem:[#allocation2 + $0x11] sm:$0xff]
      %v902 = vld [vmem:[#allocation2 + $0x19] sm:$0xff]
      %v903 = vld [vmem:[#allocation2 + $0x21] sm:$0xff]
      %v904 = vld [vmem:[#allocation2 + $0x29] sm:$0xff]
      %v905 = vld [vmem:[#allocation2 + $0x31] sm:$0xff]
      %v906 = vld [vmem:[#allocation2 + $0x39] sm:$0xff]
      %v907 = vld [vmem:[#allocation2 + $0x41] sm:$0xff]
      %909 = vset.pattern.permute.xlu0 0
      %910 = vperm.xlu0 %909, %v407
      %v911 = vpop.permute.xlu0 %910
      %914 = vset.pattern.permute.xlu0 0
      %915 = vperm.xlu0 %914, %v408
      %v916 = vpop.permute.xlu0 %915
      %919 = vset.pattern.permute.xlu0 0
      %920 = vperm.xlu0 %919, %v409
      %v921 = vpop.permute.xlu0 %920
      %924 = vset.pattern.permute.xlu0 0
      %925 = vperm.xlu0 %924, %v410
      %v926 = vpop.permute.xlu0 %925
      %929 = vset.pattern.permute.xlu0 0
      %930 = vperm.xlu0 %929, %v411
      %v931 = vpop.permute.xlu0 %930
      %934 = vset.pattern.permute.xlu0 0
      %935 = vperm.xlu0 %934, %v412
      %v936 = vpop.permute.xlu0 %935
      %939 = vset.pattern.permute.xlu0 0
      %940 = vperm.xlu0 %939, %v413
      %v941 = vpop.permute.xlu0 %940
      %944 = vset.pattern.permute.xlu0 0
      %945 = vperm.xlu0 %944, %v414
      %v946 = vpop.permute.xlu0 %945
      %v948 = vmul.f32 %v900, %v911
      %v949 = vmul.f32 %v901, %v916
      %v950 = vmul.f32 %v902, %v921
      %v951 = vmul.f32 %v903, %v926
      %v952 = vmul.f32 %v904, %v931
      %v953 = vmul.f32 %v905, %v936
      %v954 = vmul.f32 %v906, %v941
      %v955 = vmul.f32 %v907, %v946
      %s956 = scalar_lea.vmem %s5, 64
      %v957 = vld [vmem:[%s956] sm:$0xff]
      %v958 = vld [vmem:[%s956 + $0x8] sm:$0xff]
      %v959 = vld [vmem:[%s956 + $0x10] sm:$0xff]
      %v960 = vld [vmem:[%s956 + $0x18] sm:$0xff]
      %v962 = vsel %vm386, %v948, 0
      %v965 = vsel %vm386, %v949, 0
      %v968 = vsel %vm386, %v950, 0
      %v971 = vsel %vm386, %v951, 0
      %v974 = vsel %vm386, %v952, 0
      %v977 = vsel %vm386, %v953, 0
      %v980 = vsel %vm386, %v954, 0
      %v983 = vsel %vm386, %v955, 0
      %985 = vmatprep.subr.mxu0 0.0
      %986 = vmatpush1.msra.mxu0 %v957
      %987 = vmatprep.subr.mxu0 0.0
      %988 = vmatpush1.msra.mxu0 %v958
      %989 = vmatprep.subr.mxu0 0.0
      %990 = vmatpush1.msra.mxu0 %v959
      %991 = vmatprep.subr.mxu0 0.0
      %992 = vmatpush1.msra.mxu0 %v960
      %993 = vmatprep.subr.mxu0 0.0
      %994 = vmatpush1.msra.mxu0 0.0
      %995 = vmatprep.subr.mxu0 0.0
      %996 = vmatpush1.msra.mxu0 0.0
      %997 = vmatprep.subr.mxu0 0.0
      %998 = vmatpush1.msra.mxu0 0.0
      %999 = vmatprep.subr.mxu0 0.0
      %1000 = vmatpush1.msra.mxu0 0.0
      %1001 = vmatprep.subr.mxu0 0.0
      %1002 = vmatpush1.msra.mxu0 0.0
      %1003 = vmatprep.subr.mxu0 0.0
      %1004 = vmatpush1.msra.mxu0 0.0
      %1005 = vmatprep.subr.mxu0 0.0
      %1006 = vmatpush1.msra.mxu0 0.0
      %1007 = vmatprep.subr.mxu0 0.0
      %1008 = vmatpush1.msra.mxu0 0.0
      %1009 = vmatprep.subr.mxu0 0.0
      %1010 = vmatpush1.msra.mxu0 0.0
      %1011 = vmatprep.subr.mxu0 0.0
      %1012 = vmatpush1.msra.mxu0 0.0
      %1013 = vmatprep.subr.mxu0 0.0
      %1014 = vmatpush1.msra.mxu0 0.0
      %1015 = vmatprep.subr.mxu0 0.0
      %1016 = vmatpush1.msra.mxu0 0.0
      %1017 = vmatprep.subr.mxu0 0.0
      %1018 = vmatpush1.msra.mxu0 0.0
      %1019 = vmatprep.subr.mxu0 0.0
      %1020 = vmatpush1.msra.mxu0 0.0
      %1021 = vmatprep.subr.mxu0 0.0
      %1022 = vmatpush1.msra.mxu0 0.0
      %1023 = vmatprep.subr.mxu0 0.0
      %1024 = vmatpush1.msra.mxu0 0.0
      %1025 = vmatprep.subr.mxu0 0.0
      %1026 = vmatpush1.msra.mxu0 0.0
      %1027 = vmatprep.subr.mxu0 0.0
      %1028 = vmatpush1.msra.mxu0 0.0
      %1029 = vmatprep.subr.mxu0 0.0
      %1030 = vmatpush1.msra.mxu0 0.0
      %1031 = vmatprep.subr.mxu0 0.0
      %1032 = vmatpush1.msra.mxu0 0.0
      %1033 = vmatprep.subr.mxu0 0.0
      %1034 = vmatpush1.msra.mxu0 0.0
      %1035 = vmatprep.subr.mxu0 0.0
      %1036 = vmatpush1.msra.mxu0 0.0
      %1037 = vmatprep.subr.mxu0 0.0
      %1038 = vmatpush1.msra.mxu0 0.0
      %1039 = vmatprep.subr.mxu0 0.0
      %1040 = vmatpush1.msra.mxu0 0.0
      %1041 = vmatprep.subr.mxu0 0.0
      %1042 = vmatpush1.msra.mxu0 0.0
      %1043 = vmatprep.subr.mxu0 0.0
      %1044 = vmatpush1.msra.mxu0 0.0
      %1045 = vmatprep.subr.mxu0 0.0
      %1046 = vmatpush1.msra.mxu0 0.0
      %1047 = vmatprep.subr.mxu0 0.0
      %1048 = vmatpush1.msra.mxu0 0.0
      %1049 = vmatprep.mubr.f32.mxu0 0.0
      %1050 = vmatmul.mubr.f32.gmra.mrb[0].mxu0 %v962
      %v1051 = vpop.f32.mrb[0].mxu0
      %v1052 = vadd.f32 0.0, %v1051
      %v1053 = vpop.f32.mrb[0].mxu0
      %1054 = vmatprep.mubr.f32.mxu0 0.0
      %1055 = vmatmul.mubr.f32.gmra.mrb[0].mxu0 %v965
      %v1056 = vpop.f32.mrb[0].mxu0
      %v1057 = vadd.f32 0.0, %v1056
      %v1058 = vpop.f32.mrb[0].mxu0
      %1059 = vmatprep.mubr.f32.mxu0 0.0
      %1060 = vmatmul.mubr.f32.gmra.mrb[0].mxu0 %v968
      %v1061 = vpop.f32.mrb[0].mxu0
      %v1062 = vadd.f32 0.0, %v1061
      %v1063 = vpop.f32.mrb[0].mxu0
      %1064 = vmatprep.mubr.f32.mxu0 0.0
      %1065 = vmatmul.mubr.f32.gmra.mrb[0].mxu0 %v971
      %v1066 = vpop.f32.mrb[0].mxu0
      %v1067 = vadd.f32 0.0, %v1066
      %v1068 = vpop.f32.mrb[0].mxu0
      %1069 = vmatprep.mubr.f32.mxu0 0.0
      %1070 = vmatmul.mubr.f32.gmra.mrb[0].mxu0 %v974
      %v1071 = vpop.f32.mrb[0].mxu0
      %v1072 = vadd.f32 0.0, %v1071
      %v1073 = vpop.f32.mrb[0].mxu0
      %1074 = vmatprep.mubr.f32.mxu0 0.0
      %1075 = vmatmul.mubr.f32.gmra.mrb[0].mxu0 %v977
      %v1076 = vpop.f32.mrb[0].mxu0
      %v1077 = vadd.f32 0.0, %v1076
      %v1078 = vpop.f32.mrb[0].mxu0
      %1079 = vmatprep.mubr.f32.mxu0 0.0
      %1080 = vmatmul.mubr.f32.gmra.mrb[0].mxu0 %v980
      %v1081 = vpop.f32.mrb[0].mxu0
      %v1082 = vadd.f32 0.0, %v1081
      %v1083 = vpop.f32.mrb[0].mxu0
      %1084 = vmatprep.mubr.f32.mxu0 0.0
      %1085 = vmatmul.mubr.f32.gmra.mrb[0].mxu0 %v983
      %v1086 = vpop.f32.mrb[0].mxu0
      %v1087 = vadd.f32 0.0, %v1086
      %v1088 = vpop.f32.mrb[0].mxu0
      %1089 = vdwg.mxu0
      %v1090 = vadd.f32 %v862, %v1052
      %v1091 = vadd.f32 %v867, %v1057
      %v1092 = vadd.f32 %v872, %v1062
      %v1093 = vadd.f32 %v877, %v1067
      %v1094 = vadd.f32 %v882, %v1072
      %v1095 = vadd.f32 %v887, %v1077
      %v1096 = vadd.f32 %v892, %v1082
      %v1097 = vadd.f32 %v897, %v1087
      %v1098 = vld [vmem:[#allocation2 + $0xf] sm:$0xff]
      %v1099 = vld [vmem:[#allocation2 + $0x17] sm:$0xff]
      %v1100 = vld [vmem:[#allocation2 + $0x1f] sm:$0xff]
      %v1101 = vld [vmem:[#allocation2 + $0x27] sm:$0xff]
      %v1102 = vld [vmem:[#allocation2 + $0x2f] sm:$0xff]
      %v1103 = vld [vmem:[#allocation2 + $0x37] sm:$0xff]
      %v1104 = vld [vmem:[#allocation2 + $0x3f] sm:$0xff]
      %v1105 = vld [vmem:[#allocation2 + $0x47] sm:$0xff]
      %v1106 = vmul.f32 %v1098, %v580
      %v1107 = vmul.f32 %v1099, %v585
      %v1108 = vmul.f32 %v1100, %v590
      %v1109 = vmul.f32 %v1101, %v595
      %v1110 = vmul.f32 %v1102, %v600
      %v1111 = vmul.f32 %v1103, %v605
      %v1112 = vmul.f32 %v1104, %v610
      %v1113 = vmul.f32 %v1105, %v615
      %s1114 = scalar_lea.vmem %s5, 96
      %v1115 = vld [vmem:[%s1114] sm:$0xff]
      %v1116 = vld [vmem:[%s1114 + $0x8] sm:$0xff]
      %v1117 = vld [vmem:[%s1114 + $0x10] sm:$0xff]
      %v1118 = vld [vmem:[%s1114 + $0x18] sm:$0xff]
      %v1120 = vsel %vm386, %v1106, 0
      %v1123 = vsel %vm386, %v1107, 0
      %v1126 = vsel %vm386, %v1108, 0
      %v1129 = vsel %vm386, %v1109, 0
      %v1132 = vsel %vm386, %v1110, 0
      %v1135 = vsel %vm386, %v1111, 0
      %v1138 = vsel %vm386, %v1112, 0
      %v1141 = vsel %vm386, %v1113, 0
      %1143 = vmatprep.subr.mxu0 0.0
      %1144 = vmatpush1.msra.mxu0 %v1115
      %1145 = vmatprep.subr.mxu0 0.0
      %1146 = vmatpush1.msra.mxu0 %v1116
      %1147 = vmatprep.subr.mxu0 0.0
      %1148 = vmatpush1.msra.mxu0 %v1117
      %1149 = vmatprep.subr.mxu0 0.0
      %1150 = vmatpush1.msra.mxu0 %v1118
      %1151 = vmatprep.subr.mxu0 0.0
      %1152 = vmatpush1.msra.mxu0 0.0
      %1153 = vmatprep.subr.mxu0 0.0
      %1154 = vmatpush1.msra.mxu0 0.0
      %1155 = vmatprep.subr.mxu0 0.0
      %1156 = vmatpush1.msra.mxu0 0.0
      %1157 = vmatprep.subr.mxu0 0.0
      %1158 = vmatpush1.msra.mxu0 0.0
      %1159 = vmatprep.subr.mxu0 0.0
      %1160 = vmatpush1.msra.mxu0 0.0
      %1161 = vmatprep.subr.mxu0 0.0
      %1162 = vmatpush1.msra.mxu0 0.0
      %1163 = vmatprep.subr.mxu0 0.0
      %1164 = vmatpush1.msra.mxu0 0.0
      %1165 = vmatprep.subr.mxu0 0.0
      %1166 = vmatpush1.msra.mxu0 0.0
      %1167 = vmatprep.subr.mxu0 0.0
      %1168 = vmatpush1.msra.mxu0 0.0
      %1169 = vmatprep.subr.mxu0 0.0
      %1170 = vmatpush1.msra.mxu0 0.0
      %1171 = vmatprep.subr.mxu0 0.0
      %1172 = vmatpush1.msra.mxu0 0.0
      %1173 = vmatprep.subr.mxu0 0.0
      %1174 = vmatpush1.msra.mxu0 0.0
      %1175 = vmatprep.subr.mxu0 0.0
      %1176 = vmatpush1.msra.mxu0 0.0
      %1177 = vmatprep.subr.mxu0 0.0
      %1178 = vmatpush1.msra.mxu0 0.0
      %1179 = vmatprep.subr.mxu0 0.0
      %1180 = vmatpush1.msra.mxu0 0.0
      %1181 = vmatprep.subr.mxu0 0.0
      %1182 = vmatpush1.msra.mxu0 0.0
      %1183 = vmatprep.subr.mxu0 0.0
      %1184 = vmatpush1.msra.mxu0 0.0
      %1185 = vmatprep.subr.mxu0 0.0
      %1186 = vmatpush1.msra.mxu0 0.0
      %1187 = vmatprep.subr.mxu0 0.0
      %1188 = vmatpush1.msra.mxu0 0.0
      %1189 = vmatprep.subr.mxu0 0.0
      %1190 = vmatpush1.msra.mxu0 0.0
      %1191 = vmatprep.subr.mxu0 0.0
      %1192 = vmatpush1.msra.mxu0 0.0
      %1193 = vmatprep.subr.mxu0 0.0
      %1194 = vmatpush1.msra.mxu0 0.0
      %1195 = vmatprep.subr.mxu0 0.0
      %1196 = vmatpush1.msra.mxu0 0.0
      %1197 = vmatprep.subr.mxu0 0.0
      %1198 = vmatpush1.msra.mxu0 0.0
      %1199 = vmatprep.subr.mxu0 0.0
      %1200 = vmatpush1.msra.mxu0 0.0
      %1201 = vmatprep.subr.mxu0 0.0
      %1202 = vmatpush1.msra.mxu0 0.0
      %1203 = vmatprep.subr.mxu0 0.0
      %1204 = vmatpush1.msra.mxu0 0.0
      %1205 = vmatprep.subr.mxu0 0.0
      %1206 = vmatpush1.msra.mxu0 0.0
      %1207 = vmatprep.mubr.f32.mxu0 0.0
      %1208 = vmatmul.mubr.f32.gmra.mrb[0].mxu0 %v1120
      %v1209 = vpop.f32.mrb[0].mxu0
      %v1210 = vadd.f32 0.0, %v1209
      %v1211 = vpop.f32.mrb[0].mxu0
      %1212 = vmatprep.mubr.f32.mxu0 0.0
      %1213 = vmatmul.mubr.f32.gmra.mrb[0].mxu0 %v1123
      %v1214 = vpop.f32.mrb[0].mxu0
      %v1215 = vadd.f32 0.0, %v1214
      %v1216 = vpop.f32.mrb[0].mxu0
      %1217 = vmatprep.mubr.f32.mxu0 0.0
      %1218 = vmatmul.mubr.f32.gmra.mrb[0].mxu0 %v1126
      %v1219 = vpop.f32.mrb[0].mxu0
      %v1220 = vadd.f32 0.0, %v1219
      %v1221 = vpop.f32.mrb[0].mxu0
      %1222 = vmatprep.mubr.f32.mxu0 0.0
      %1223 = vmatmul.mubr.f32.gmra.mrb[0].mxu0 %v1129
      %v1224 = vpop.f32.mrb[0].mxu0
      %v1225 = vadd.f32 0.0, %v1224
      %v1226 = vpop.f32.mrb[0].mxu0
      %1227 = vmatprep.mubr.f32.mxu0 0.0
      %1228 = vmatmul.mubr.f32.gmra.mrb[0].mxu0 %v1132
      %v1229 = vpop.f32.mrb[0].mxu0
      %v1230 = vadd.f32 0.0, %v1229
      %v1231 = vpop.f32.mrb[0].mxu0
      %1232 = vmatprep.mubr.f32.mxu0 0.0
      %1233 = vmatmul.mubr.f32.gmra.mrb[0].mxu0 %v1135
      %v1234 = vpop.f32.mrb[0].mxu0
      %v1235 = vadd.f32 0.0, %v1234
      %v1236 = vpop.f32.mrb[0].mxu0
      %1237 = vmatprep.mubr.f32.mxu0 0.0
      %1238 = vmatmul.mubr.f32.gmra.mrb[0].mxu0 %v1138
      %v1239 = vpop.f32.mrb[0].mxu0
      %v1240 = vadd.f32 0.0, %v1239
      %v1241 = vpop.f32.mrb[0].mxu0
      %1242 = vmatprep.mubr.f32.mxu0 0.0
      %1243 = vmatmul.mubr.f32.gmra.mrb[0].mxu0 %v1141
      %v1244 = vpop.f32.mrb[0].mxu0
      %v1245 = vadd.f32 0.0, %v1244
      %v1246 = vpop.f32.mrb[0].mxu0
      %1247 = vdwg.mxu0
      %v1248 = vadd.f32 %v1090, %v1210
      %v1249 = vadd.f32 %v1091, %v1215
      %v1250 = vadd.f32 %v1092, %v1220
      %v1251 = vadd.f32 %v1093, %v1225
      %v1252 = vadd.f32 %v1094, %v1230
      %v1253 = vadd.f32 %v1095, %v1235
      %v1254 = vadd.f32 %v1096, %v1240
      %v1255 = vadd.f32 %v1097, %v1245
      %v1256 = vld [vmem:[#allocation2 + $0x10] sm:$0xff]
      %v1257 = vld [vmem:[#allocation2 + $0x18] sm:$0xff]
      %v1258 = vld [vmem:[#allocation2 + $0x20] sm:$0xff]
      %v1259 = vld [vmem:[#allocation2 + $0x28] sm:$0xff]
      %v1260 = vld [vmem:[#allocation2 + $0x30] sm:$0xff]
      %v1261 = vld [vmem:[#allocation2 + $0x38] sm:$0xff]
      %v1262 = vld [vmem:[#allocation2 + $0x40] sm:$0xff]
      %v1263 = vld [vmem:[#allocation2 + $0x48] sm:$0xff]
      %s1264 = scalar_lea.vmem %s5, 128
      %v1265 = vld [vmem:[%s1264] sm:$0xff]
      %v1266 = vld [vmem:[%s1264 + $0x8] sm:$0xff]
      %v1267 = vld [vmem:[%s1264 + $0x10] sm:$0xff]
      %v1268 = vld [vmem:[%s1264 + $0x18] sm:$0xff]
      %v1270 = vsel %vm386, %v1256, 0
      %v1273 = vsel %vm386, %v1257, 0
      %v1276 = vsel %vm386, %v1258, 0
      %v1279 = vsel %vm386, %v1259, 0
      %v1282 = vsel %vm386, %v1260, 0
      %v1285 = vsel %vm386, %v1261, 0
      %v1288 = vsel %vm386, %v1262, 0
      %v1291 = vsel %vm386, %v1263, 0
      %1293 = vmatprep.subr.mxu0 0.0
      %1294 = vmatpush1.msra.mxu0 %v1265
      %1295 = vmatprep.subr.mxu0 0.0
      %1296 = vmatpush1.msra.mxu0 %v1266
      %1297 = vmatprep.subr.mxu0 0.0
      %1298 = vmatpush1.msra.mxu0 %v1267
      %1299 = vmatprep.subr.mxu0 0.0
      %1300 = vmatpush1.msra.mxu0 %v1268
      %1301 = vmatprep.subr.mxu0 0.0
      %1302 = vmatpush1.msra.mxu0 0.0
      %1303 = vmatprep.subr.mxu0 0.0
      %1304 = vmatpush1.msra.mxu0 0.0
      %1305 = vmatprep.subr.mxu0 0.0
      %1306 = vmatpush1.msra.mxu0 0.0
      %1307 = vmatprep.subr.mxu0 0.0
      %1308 = vmatpush1.msra.mxu0 0.0
      %1309 = vmatprep.subr.mxu0 0.0
      %1310 = vmatpush1.msra.mxu0 0.0
      %1311 = vmatprep.subr.mxu0 0.0
      %1312 = vmatpush1.msra.mxu0 0.0
      %1313 = vmatprep.subr.mxu0 0.0
      %1314 = vmatpush1.msra.mxu0 0.0
      %1315 = vmatprep.subr.mxu0 0.0
      %1316 = vmatpush1.msra.mxu0 0.0
      %1317 = vmatprep.subr.mxu0 0.0
      %1318 = vmatpush1.msra.mxu0 0.0
      %1319 = vmatprep.subr.mxu0 0.0
      %1320 = vmatpush1.msra.mxu0 0.0
      %1321 = vmatprep.subr.mxu0 0.0
      %1322 = vmatpush1.msra.mxu0 0.0
      %1323 = vmatprep.subr.mxu0 0.0
      %1324 = vmatpush1.msra.mxu0 0.0
      %1325 = vmatprep.subr.mxu0 0.0
      %1326 = vmatpush1.msra.mxu0 0.0
      %1327 = vmatprep.subr.mxu0 0.0
      %1328 = vmatpush1.msra.mxu0 0.0
      %1329 = vmatprep.subr.mxu0 0.0
      %1330 = vmatpush1.msra.mxu0 0.0
      %1331 = vmatprep.subr.mxu0 0.0
      %1332 = vmatpush1.msra.mxu0 0.0
      %1333 = vmatprep.subr.mxu0 0.0
      %1334 = vmatpush1.msra.mxu0 0.0
      %1335 = vmatprep.subr.mxu0 0.0
      %1336 = vmatpush1.msra.mxu0 0.0
      %1337 = vmatprep.subr.mxu0 0.0
      %1338 = vmatpush1.msra.mxu0 0.0
      %1339 = vmatprep.subr.mxu0 0.0
      %1340 = vmatpush1.msra.mxu0 0.0
      %1341 = vmatprep.subr.mxu0 0.0
      %1342 = vmatpush1.msra.mxu0 0.0
      %1343 = vmatprep.subr.mxu0 0.0
      %1344 = vmatpush1.msra.mxu0 0.0
      %1345 = vmatprep.subr.mxu0 0.0
      %1346 = vmatpush1.msra.mxu0 0.0
      %1347 = vmatprep.subr.mxu0 0.0
      %1348 = vmatpush1.msra.mxu0 0.0
      %1349 = vmatprep.subr.mxu0 0.0
      %1350 = vmatpush1.msra.mxu0 0.0
      %1351 = vmatprep.subr.mxu0 0.0
      %1352 = vmatpush1.msra.mxu0 0.0
      %1353 = vmatprep.subr.mxu0 0.0
      %1354 = vmatpush1.msra.mxu0 0.0
      %1355 = vmatprep.subr.mxu0 0.0
      %1356 = vmatpush1.msra.mxu0 0.0
      %1357 = vmatprep.mubr.f32.mxu0 0.0
      %1358 = vmatmul.mubr.f32.gmra.mrb[0].mxu0 %v1270
      %v1359 = vpop.f32.mrb[0].mxu0
      %v1360 = vadd.f32 0.0, %v1359
      %v1361 = vpop.f32.mrb[0].mxu0
      %1362 = vmatprep.mubr.f32.mxu0 0.0
      %1363 = vmatmul.mubr.f32.gmra.mrb[0].mxu0 %v1273
      %v1364 = vpop.f32.mrb[0].mxu0
      %v1365 = vadd.f32 0.0, %v1364
      %v1366 = vpop.f32.mrb[0].mxu0
      %1367 = vmatprep.mubr.f32.mxu0 0.0
      %1368 = vmatmul.mubr.f32.gmra.mrb[0].mxu0 %v1276
      %v1369 = vpop.f32.mrb[0].mxu0
      %v1370 = vadd.f32 0.0, %v1369
      %v1371 = vpop.f32.mrb[0].mxu0
      %1372 = vmatprep.mubr.f32.mxu0 0.0
      %1373 = vmatmul.mubr.f32.gmra.mrb[0].mxu0 %v1279
      %v1374 = vpop.f32.mrb[0].mxu0
      %v1375 = vadd.f32 0.0, %v1374
      %v1376 = vpop.f32.mrb[0].mxu0
      %1377 = vmatprep.mubr.f32.mxu0 0.0
      %1378 = vmatmul.mubr.f32.gmra.mrb[0].mxu0 %v1282
      %v1379 = vpop.f32.mrb[0].mxu0
      %v1380 = vadd.f32 0.0, %v1379
      %v1381 = vpop.f32.mrb[0].mxu0
      %1382 = vmatprep.mubr.f32.mxu0 0.0
      %1383 = vmatmul.mubr.f32.gmra.mrb[0].mxu0 %v1285
      %v1384 = vpop.f32.mrb[0].mxu0
      %v1385 = vadd.f32 0.0, %v1384
      %v1386 = vpop.f32.mrb[0].mxu0
      %1387 = vmatprep.mubr.f32.mxu0 0.0
      %1388 = vmatmul.mubr.f32.gmra.mrb[0].mxu0 %v1288
      %v1389 = vpop.f32.mrb[0].mxu0
      %v1390 = vadd.f32 0.0, %v1389
      %v1391 = vpop.f32.mrb[0].mxu0
      %1392 = vmatprep.mubr.f32.mxu0 0.0
      %1393 = vmatmul.mubr.f32.gmra.mrb[0].mxu0 %v1291
      %v1394 = vpop.f32.mrb[0].mxu0
      %v1395 = vadd.f32 0.0, %v1394
      %v1396 = vpop.f32.mrb[0].mxu0
      %1397 = vdwg.mxu0
      %v1398 = vadd.f32 %v1248, %v1360
      %v1399 = vadd.f32 %v1249, %v1365
      %v1400 = vadd.f32 %v1250, %v1370
      %v1401 = vadd.f32 %v1251, %v1375
      %v1402 = vadd.f32 %v1252, %v1380
      %v1403 = vadd.f32 %v1253, %v1385
      %v1404 = vadd.f32 %v1254, %v1390
      %v1405 = vadd.f32 %v1255, %v1395
      %v1406 = vld [vmem:[#allocation2 + $0x11] sm:$0xff]
      %v1407 = vld [vmem:[#allocation2 + $0x19] sm:$0xff]
      %v1408 = vld [vmem:[#allocation2 + $0x21] sm:$0xff]
      %v1409 = vld [vmem:[#allocation2 + $0x29] sm:$0xff]
      %v1410 = vld [vmem:[#allocation2 + $0x31] sm:$0xff]
      %v1411 = vld [vmem:[#allocation2 + $0x39] sm:$0xff]
      %v1412 = vld [vmem:[#allocation2 + $0x41] sm:$0xff]
      %v1413 = vld [vmem:[#allocation2 + $0x49] sm:$0xff]
      %v1414 = vmul.f32 %v1406, %v911
      %v1415 = vmul.f32 %v1407, %v916
      %v1416 = vmul.f32 %v1408, %v921
      %v1417 = vmul.f32 %v1409, %v926
      %v1418 = vmul.f32 %v1410, %v931
      %v1419 = vmul.f32 %v1411, %v936
      %v1420 = vmul.f32 %v1412, %v941
      %v1421 = vmul.f32 %v1413, %v946
      %s1422 = scalar_lea.vmem %s5, 160
      %v1423 = vld [vmem:[%s1422] sm:$0xff]
      %v1424 = vld [vmem:[%s1422 + $0x8] sm:$0xff]
      %v1425 = vld [vmem:[%s1422 + $0x10] sm:$0xff]
      %v1426 = vld [vmem:[%s1422 + $0x18] sm:$0xff]
      %v1428 = vsel %vm386, %v1414, 0
      %v1431 = vsel %vm386, %v1415, 0
      %v1434 = vsel %vm386, %v1416, 0
      %v1437 = vsel %vm386, %v1417, 0
      %v1440 = vsel %vm386, %v1418, 0
      %v1443 = vsel %vm386, %v1419, 0
      %v1446 = vsel %vm386, %v1420, 0
      %v1449 = vsel %vm386, %v1421, 0
      %1451 = vmatprep.subr.mxu0 0.0
      %1452 = vmatpush1.msra.mxu0 %v1423
      %1453 = vmatprep.subr.mxu0 0.0
      %1454 = vmatpush1.msra.mxu0 %v1424
      %1455 = vmatprep.subr.mxu0 0.0
      %1456 = vmatpush1.msra.mxu0 %v1425
      %1457 = vmatprep.subr.mxu0 0.0
      %1458 = vmatpush1.msra.mxu0 %v1426
      %1459 = vmatprep.subr.mxu0 0.0
      %1460 = vmatpush1.msra.mxu0 0.0
      %1461 = vmatprep.subr.mxu0 0.0
      %1462 = vmatpush1.msra.mxu0 0.0
      %1463 = vmatprep.subr.mxu0 0.0
      %1464 = vmatpush1.msra.mxu0 0.0
      %1465 = vmatprep.subr.mxu0 0.0
      %1466 = vmatpush1.msra.mxu0 0.0
      %1467 = vmatprep.subr.mxu0 0.0
      %1468 = vmatpush1.msra.mxu0 0.0
      %1469 = vmatprep.subr.mxu0 0.0
      %1470 = vmatpush1.msra.mxu0 0.0
      %1471 = vmatprep.subr.mxu0 0.0
      %1472 = vmatpush1.msra.mxu0 0.0
      %1473 = vmatprep.subr.mxu0 0.0
      %1474 = vmatpush1.msra.mxu0 0.0
      %1475 = vmatprep.subr.mxu0 0.0
      %1476 = vmatpush1.msra.mxu0 0.0
      %1477 = vmatprep.subr.mxu0 0.0
      %1478 = vmatpush1.msra.mxu0 0.0
      %1479 = vmatprep.subr.mxu0 0.0
      %1480 = vmatpush1.msra.mxu0 0.0
      %1481 = vmatprep.subr.mxu0 0.0
      %1482 = vmatpush1.msra.mxu0 0.0
      %1483 = vmatprep.subr.mxu0 0.0
      %1484 = vmatpush1.msra.mxu0 0.0
      %1485 = vmatprep.subr.mxu0 0.0
      %1486 = vmatpush1.msra.mxu0 0.0
      %1487 = vmatprep.subr.mxu0 0.0
      %1488 = vmatpush1.msra.mxu0 0.0
      %1489 = vmatprep.subr.mxu0 0.0
      %1490 = vmatpush1.msra.mxu0 0.0
      %1491 = vmatprep.subr.mxu0 0.0
      %1492 = vmatpush1.msra.mxu0 0.0
      %1493 = vmatprep.subr.mxu0 0.0
      %1494 = vmatpush1.msra.mxu0 0.0
      %1495 = vmatprep.subr.mxu0 0.0
      %1496 = vmatpush1.msra.mxu0 0.0
      %1497 = vmatprep.subr.mxu0 0.0
      %1498 = vmatpush1.msra.mxu0 0.0
      %1499 = vmatprep.subr.mxu0 0.0
      %1500 = vmatpush1.msra.mxu0 0.0
      %1501 = vmatprep.subr.mxu0 0.0
      %1502 = vmatpush1.msra.mxu0 0.0
      %1503 = vmatprep.subr.mxu0 0.0
      %1504 = vmatpush1.msra.mxu0 0.0
      %1505 = vmatprep.subr.mxu0 0.0
      %1506 = vmatpush1.msra.mxu0 0.0
      %1507 = vmatprep.subr.mxu0 0.0
      %1508 = vmatpush1.msra.mxu0 0.0
      %1509 = vmatprep.subr.mxu0 0.0
      %1510 = vmatpush1.msra.mxu0 0.0
      %1511 = vmatprep.subr.mxu0 0.0
      %1512 = vmatpush1.msra.mxu0 0.0
      %1513 = vmatprep.subr.mxu0 0.0
      %1514 = vmatpush1.msra.mxu0 0.0
      %1515 = vmatprep.mubr.f32.mxu0 0.0
      %1516 = vmatmul.mubr.f32.gmra.mrb[0].mxu0 %v1428
      %v1517 = vpop.f32.mrb[0].mxu0
      %v1518 = vadd.f32 0.0, %v1517
      %v1519 = vpop.f32.mrb[0].mxu0
      %1520 = vmatprep.mubr.f32.mxu0 0.0
      %1521 = vmatmul.mubr.f32.gmra.mrb[0].mxu0 %v1431
      %v1522 = vpop.f32.mrb[0].mxu0
      %v1523 = vadd.f32 0.0, %v1522
      %v1524 = vpop.f32.mrb[0].mxu0
      %1525 = vmatprep.mubr.f32.mxu0 0.0
      %1526 = vmatmul.mubr.f32.gmra.mrb[0].mxu0 %v1434
      %v1527 = vpop.f32.mrb[0].mxu0
      %v1528 = vadd.f32 0.0, %v1527
      %v1529 = vpop.f32.mrb[0].mxu0
      %1530 = vmatprep.mubr.f32.mxu0 0.0
      %1531 = vmatmul.mubr.f32.gmra.mrb[0].mxu0 %v1437
      %v1532 = vpop.f32.mrb[0].mxu0
      %v1533 = vadd.f32 0.0, %v1532
      %v1534 = vpop.f32.mrb[0].mxu0
      %1535 = vmatprep.mubr.f32.mxu0 0.0
      %1536 = vmatmul.mubr.f32.gmra.mrb[0].mxu0 %v1440
      %v1537 = vpop.f32.mrb[0].mxu0
      %v1538 = vadd.f32 0.0, %v1537
      %v1539 = vpop.f32.mrb[0].mxu0
      %1540 = vmatprep.mubr.f32.mxu0 0.0
      %1541 = vmatmul.mubr.f32.gmra.mrb[0].mxu0 %v1443
      %v1542 = vpop.f32.mrb[0].mxu0
      %v1543 = vadd.f32 0.0, %v1542
      %v1544 = vpop.f32.mrb[0].mxu0
      %1545 = vmatprep.mubr.f32.mxu0 0.0
      %1546 = vmatmul.mubr.f32.gmra.mrb[0].mxu0 %v1446
      %v1547 = vpop.f32.mrb[0].mxu0
      %v1548 = vadd.f32 0.0, %v1547
      %v1549 = vpop.f32.mrb[0].mxu0
      %1550 = vmatprep.mubr.f32.mxu0 0.0
      %1551 = vmatmul.mubr.f32.gmra.mrb[0].mxu0 %v1449
      %v1552 = vpop.f32.mrb[0].mxu0
      %v1553 = vadd.f32 0.0, %v1552
      %v1554 = vpop.f32.mrb[0].mxu0
      %1555 = vdwg.mxu0
      %v1556 = vadd.f32 %v1398, %v1518
      %v1557 = vadd.f32 %v1399, %v1523
      %v1558 = vadd.f32 %v1400, %v1528
      %v1559 = vadd.f32 %v1401, %v1533
      %v1560 = vadd.f32 %v1402, %v1538
      %v1561 = vadd.f32 %v1403, %v1543
      %v1562 = vadd.f32 %v1404, %v1548
      %v1563 = vadd.f32 %v1405, %v1553
      %v1564 = vld [vmem:[#allocation2 + $0x17] sm:$0xff]
      %v1565 = vld [vmem:[#allocation2 + $0x1f] sm:$0xff]
      %v1566 = vld [vmem:[#allocation2 + $0x27] sm:$0xff]
      %v1567 = vld [vmem:[#allocation2 + $0x2f] sm:$0xff]
      %v1568 = vld [vmem:[#allocation2 + $0x37] sm:$0xff]
      %v1569 = vld [vmem:[#allocation2 + $0x3f] sm:$0xff]
      %v1570 = vld [vmem:[#allocation2 + $0x47] sm:$0xff]
      %v1571 = vld [vmem:[#allocation2 + $0x4f] sm:$0xff]
      %v1572 = vmul.f32 %v1564, %v580
      %v1573 = vmul.f32 %v1565, %v585
      %v1574 = vmul.f32 %v1566, %v590
      %v1575 = vmul.f32 %v1567, %v595
      %v1576 = vmul.f32 %v1568, %v600
      %v1577 = vmul.f32 %v1569, %v605
      %v1578 = vmul.f32 %v1570, %v610
      %v1579 = vmul.f32 %v1571, %v615
      %s1580 = scalar_lea.vmem %s5, 192
      %v1581 = vld [vmem:[%s1580] sm:$0xff]
      %v1582 = vld [vmem:[%s1580 + $0x8] sm:$0xff]
      %v1583 = vld [vmem:[%s1580 + $0x10] sm:$0xff]
      %v1584 = vld [vmem:[%s1580 + $0x18] sm:$0xff]
      %v1586 = vsel %vm386, %v1572, 0
      %v1589 = vsel %vm386, %v1573, 0
      %v1592 = vsel %vm386, %v1574, 0
      %v1595 = vsel %vm386, %v1575, 0
      %v1598 = vsel %vm386, %v1576, 0
      %v1601 = vsel %vm386, %v1577, 0
      %v1604 = vsel %vm386, %v1578, 0
      %v1607 = vsel %vm386, %v1579, 0
      %1609 = vmatprep.subr.mxu0 0.0
      %1610 = vmatpush1.msra.mxu0 %v1581
      %1611 = vmatprep.subr.mxu0 0.0
      %1612 = vmatpush1.msra.mxu0 %v1582
      %1613 = vmatprep.subr.mxu0 0.0
      %1614 = vmatpush1.msra.mxu0 %v1583
      %1615 = vmatprep.subr.mxu0 0.0
      %1616 = vmatpush1.msra.mxu0 %v1584
      %1617 = vmatprep.subr.mxu0 0.0
      %1618 = vmatpush1.msra.mxu0 0.0
      %1619 = vmatprep.subr.mxu0 0.0
      %1620 = vmatpush1.msra.mxu0 0.0
      %1621 = vmatprep.subr.mxu0 0.0
      %1622 = vmatpush1.msra.mxu0 0.0
      %1623 = vmatprep.subr.mxu0 0.0
      %1624 = vmatpush1.msra.mxu0 0.0
      %1625 = vmatprep.subr.mxu0 0.0
      %1626 = vmatpush1.msra.mxu0 0.0
      %1627 = vmatprep.subr.mxu0 0.0
      %1628 = vmatpush1.msra.mxu0 0.0
      %1629 = vmatprep.subr.mxu0 0.0
      %1630 = vmatpush1.msra.mxu0 0.0
      %1631 = vmatprep.subr.mxu0 0.0
      %1632 = vmatpush1.msra.mxu0 0.0
      %1633 = vmatprep.subr.mxu0 0.0
      %1634 = vmatpush1.msra.mxu0 0.0
      %1635 = vmatprep.subr.mxu0 0.0
      %1636 = vmatpush1.msra.mxu0 0.0
      %1637 = vmatprep.subr.mxu0 0.0
      %1638 = vmatpush1.msra.mxu0 0.0
      %1639 = vmatprep.subr.mxu0 0.0
      %1640 = vmatpush1.msra.mxu0 0.0
      %1641 = vmatprep.subr.mxu0 0.0
      %1642 = vmatpush1.msra.mxu0 0.0
      %1643 = vmatprep.subr.mxu0 0.0
      %1644 = vmatpush1.msra.mxu0 0.0
      %1645 = vmatprep.subr.mxu0 0.0
      %1646 = vmatpush1.msra.mxu0 0.0
      %1647 = vmatprep.subr.mxu0 0.0
      %1648 = vmatpush1.msra.mxu0 0.0
      %1649 = vmatprep.subr.mxu0 0.0
      %1650 = vmatpush1.msra.mxu0 0.0
      %1651 = vmatprep.subr.mxu0 0.0
      %1652 = vmatpush1.msra.mxu0 0.0
      %1653 = vmatprep.subr.mxu0 0.0
      %1654 = vmatpush1.msra.mxu0 0.0
      %1655 = vmatprep.subr.mxu0 0.0
      %1656 = vmatpush1.msra.mxu0 0.0
      %1657 = vmatprep.subr.mxu0 0.0
      %1658 = vmatpush1.msra.mxu0 0.0
      %1659 = vmatprep.subr.mxu0 0.0
      %1660 = vmatpush1.msra.mxu0 0.0
      %1661 = vmatprep.subr.mxu0 0.0
      %1662 = vmatpush1.msra.mxu0 0.0
      %1663 = vmatprep.subr.mxu0 0.0
      %1664 = vmatpush1.msra.mxu0 0.0
      %1665 = vmatprep.subr.mxu0 0.0
      %1666 = vmatpush1.msra.mxu0 0.0
      %1667 = vmatprep.subr.mxu0 0.0
      %1668 = vmatpush1.msra.mxu0 0.0
      %1669 = vmatprep.subr.mxu0 0.0
      %1670 = vmatpush1.msra.mxu0 0.0
      %1671 = vmatprep.subr.mxu0 0.0
      %1672 = vmatpush1.msra.mxu0 0.0
      %1673 = vmatprep.mubr.f32.mxu0 0.0
      %1674 = vmatmul.mubr.f32.gmra.mrb[0].mxu0 %v1586
      %v1675 = vpop.f32.mrb[0].mxu0
      %v1676 = vadd.f32 0.0, %v1675
      %v1677 = vpop.f32.mrb[0].mxu0
      %1678 = vmatprep.mubr.f32.mxu0 0.0
      %1679 = vmatmul.mubr.f32.gmra.mrb[0].mxu0 %v1589
      %v1680 = vpop.f32.mrb[0].mxu0
      %v1681 = vadd.f32 0.0, %v1680
      %v1682 = vpop.f32.mrb[0].mxu0
      %1683 = vmatprep.mubr.f32.mxu0 0.0
      %1684 = vmatmul.mubr.f32.gmra.mrb[0].mxu0 %v1592
      %v1685 = vpop.f32.mrb[0].mxu0
      %v1686 = vadd.f32 0.0, %v1685
      %v1687 = vpop.f32.mrb[0].mxu0
      %1688 = vmatprep.mubr.f32.mxu0 0.0
      %1689 = vmatmul.mubr.f32.gmra.mrb[0].mxu0 %v1595
      %v1690 = vpop.f32.mrb[0].mxu0
      %v1691 = vadd.f32 0.0, %v1690
      %v1692 = vpop.f32.mrb[0].mxu0
      %1693 = vmatprep.mubr.f32.mxu0 0.0
      %1694 = vmatmul.mubr.f32.gmra.mrb[0].mxu0 %v1598
      %v1695 = vpop.f32.mrb[0].mxu0
      %v1696 = vadd.f32 0.0, %v1695
      %v1697 = vpop.f32.mrb[0].mxu0
      %1698 = vmatprep.mubr.f32.mxu0 0.0
      %1699 = vmatmul.mubr.f32.gmra.mrb[0].mxu0 %v1601
      %v1700 = vpop.f32.mrb[0].mxu0
      %v1701 = vadd.f32 0.0, %v1700
      %v1702 = vpop.f32.mrb[0].mxu0
      %1703 = vmatprep.mubr.f32.mxu0 0.0
      %1704 = vmatmul.mubr.f32.gmra.mrb[0].mxu0 %v1604
      %v1705 = vpop.f32.mrb[0].mxu0
      %v1706 = vadd.f32 0.0, %v1705
      %v1707 = vpop.f32.mrb[0].mxu0
      %1708 = vmatprep.mubr.f32.mxu0 0.0
      %1709 = vmatmul.mubr.f32.gmra.mrb[0].mxu0 %v1607
      %v1710 = vpop.f32.mrb[0].mxu0
      %v1711 = vadd.f32 0.0, %v1710
      %v1712 = vpop.f32.mrb[0].mxu0
      %1713 = vdwg.mxu0
      %v1714 = vadd.f32 %v1556, %v1676
      %v1715 = vadd.f32 %v1557, %v1681
      %v1716 = vadd.f32 %v1558, %v1686
      %v1717 = vadd.f32 %v1559, %v1691
      %v1718 = vadd.f32 %v1560, %v1696
      %v1719 = vadd.f32 %v1561, %v1701
      %v1720 = vadd.f32 %v1562, %v1706
      %v1721 = vadd.f32 %v1563, %v1711
      %v1722 = vld [vmem:[#allocation2 + $0x18] sm:$0xff]
      %v1723 = vld [vmem:[#allocation2 + $0x20] sm:$0xff]
      %v1724 = vld [vmem:[#allocation2 + $0x28] sm:$0xff]
      %v1725 = vld [vmem:[#allocation2 + $0x30] sm:$0xff]
      %v1726 = vld [vmem:[#allocation2 + $0x38] sm:$0xff]
      %v1727 = vld [vmem:[#allocation2 + $0x40] sm:$0xff]
      %v1728 = vld [vmem:[#allocation2 + $0x48] sm:$0xff]
      %v1729 = vld [vmem:[#allocation2 + $0x50] sm:$0xff]
      %s1730 = scalar_lea.vmem %s5, 224
      %v1731 = vld [vmem:[%s1730] sm:$0xff]
      %v1732 = vld [vmem:[%s1730 + $0x8] sm:$0xff]
      %v1733 = vld [vmem:[%s1730 + $0x10] sm:$0xff]
      %v1734 = vld [vmem:[%s1730 + $0x18] sm:$0xff]
      %v1736 = vsel %vm386, %v1722, 0
      %v1739 = vsel %vm386, %v1723, 0
      %v1742 = vsel %vm386, %v1724, 0
      %v1745 = vsel %vm386, %v1725, 0
      %v1748 = vsel %vm386, %v1726, 0
      %v1751 = vsel %vm386, %v1727, 0
      %v1754 = vsel %vm386, %v1728, 0
      %v1757 = vsel %vm386, %v1729, 0
      %1759 = vmatprep.subr.mxu0 0.0
      %1760 = vmatpush1.msra.mxu0 %v1731
      %1761 = vmatprep.subr.mxu0 0.0
      %1762 = vmatpush1.msra.mxu0 %v1732
      %1763 = vmatprep.subr.mxu0 0.0
      %1764 = vmatpush1.msra.mxu0 %v1733
      %1765 = vmatprep.subr.mxu0 0.0
      %1766 = vmatpush1.msra.mxu0 %v1734
      %1767 = vmatprep.subr.mxu0 0.0
      %1768 = vmatpush1.msra.mxu0 0.0
      %1769 = vmatprep.subr.mxu0 0.0
      %1770 = vmatpush1.msra.mxu0 0.0
      %1771 = vmatprep.subr.mxu0 0.0
      %1772 = vmatpush1.msra.mxu0 0.0
      %1773 = vmatprep.subr.mxu0 0.0
      %1774 = vmatpush1.msra.mxu0 0.0
      %1775 = vmatprep.subr.mxu0 0.0
      %1776 = vmatpush1.msra.mxu0 0.0
      %1777 = vmatprep.subr.mxu0 0.0
      %1778 = vmatpush1.msra.mxu0 0.0
      %1779 = vmatprep.subr.mxu0 0.0
      %1780 = vmatpush1.msra.mxu0 0.0
      %1781 = vmatprep.subr.mxu0 0.0
      %1782 = vmatpush1.msra.mxu0 0.0
      %1783 = vmatprep.subr.mxu0 0.0
      %1784 = vmatpush1.msra.mxu0 0.0
      %1785 = vmatprep.subr.mxu0 0.0
      %1786 = vmatpush1.msra.mxu0 0.0
      %1787 = vmatprep.subr.mxu0 0.0
      %1788 = vmatpush1.msra.mxu0 0.0
      %1789 = vmatprep.subr.mxu0 0.0
      %1790 = vmatpush1.msra.mxu0 0.0
      %1791 = vmatprep.subr.mxu0 0.0
      %1792 = vmatpush1.msra.mxu0 0.0
      %1793 = vmatprep.subr.mxu0 0.0
      %1794 = vmatpush1.msra.mxu0 0.0
      %1795 = vmatprep.subr.mxu0 0.0
      %1796 = vmatpush1.msra.mxu0 0.0
      %1797 = vmatprep.subr.mxu0 0.0
      %1798 = vmatpush1.msra.mxu0 0.0
      %1799 = vmatprep.subr.mxu0 0.0
      %1800 = vmatpush1.msra.mxu0 0.0
      %1801 = vmatprep.subr.mxu0 0.0
      %1802 = vmatpush1.msra.mxu0 0.0
      %1803 = vmatprep.subr.mxu0 0.0
      %1804 = vmatpush1.msra.mxu0 0.0
      %1805 = vmatprep.subr.mxu0 0.0
      %1806 = vmatpush1.msra.mxu0 0.0
      %1807 = vmatprep.subr.mxu0 0.0
      %1808 = vmatpush1.msra.mxu0 0.0
      %1809 = vmatprep.subr.mxu0 0.0
      %1810 = vmatpush1.msra.mxu0 0.0
      %1811 = vmatprep.subr.mxu0 0.0
      %1812 = vmatpush1.msra.mxu0 0.0
      %1813 = vmatprep.subr.mxu0 0.0
      %1814 = vmatpush1.msra.mxu0 0.0
      %1815 = vmatprep.subr.mxu0 0.0
      %1816 = vmatpush1.msra.mxu0 0.0
      %1817 = vmatprep.subr.mxu0 0.0
      %1818 = vmatpush1.msra.mxu0 0.0
      %1819 = vmatprep.subr.mxu0 0.0
      %1820 = vmatpush1.msra.mxu0 0.0
      %1821 = vmatprep.subr.mxu0 0.0
      %1822 = vmatpush1.msra.mxu0 0.0
      %1823 = vmatprep.mubr.f32.mxu0 0.0
      %1824 = vmatmul.mubr.f32.gmra.mrb[0].mxu0 %v1736
      %v1825 = vpop.f32.mrb[0].mxu0
      %v1826 = vadd.f32 0.0, %v1825
      %v1827 = vpop.f32.mrb[0].mxu0
      %1828 = vmatprep.mubr.f32.mxu0 0.0
      %1829 = vmatmul.mubr.f32.gmra.mrb[0].mxu0 %v1739
      %v1830 = vpop.f32.mrb[0].mxu0
      %v1831 = vadd.f32 0.0, %v1830
      %v1832 = vpop.f32.mrb[0].mxu0
      %1833 = vmatprep.mubr.f32.mxu0 0.0
      %1834 = vmatmul.mubr.f32.gmra.mrb[0].mxu0 %v1742
      %v1835 = vpop.f32.mrb[0].mxu0
      %v1836 = vadd.f32 0.0, %v1835
      %v1837 = vpop.f32.mrb[0].mxu0
      %1838 = vmatprep.mubr.f32.mxu0 0.0
      %1839 = vmatmul.mubr.f32.gmra.mrb[0].mxu0 %v1745
      %v1840 = vpop.f32.mrb[0].mxu0
      %v1841 = vadd.f32 0.0, %v1840
      %v1842 = vpop.f32.mrb[0].mxu0
      %1843 = vmatprep.mubr.f32.mxu0 0.0
      %1844 = vmatmul.mubr.f32.gmra.mrb[0].mxu0 %v1748
      %v1845 = vpop.f32.mrb[0].mxu0
      %v1846 = vadd.f32 0.0, %v1845
      %v1847 = vpop.f32.mrb[0].mxu0
      %1848 = vmatprep.mubr.f32.mxu0 0.0
      %1849 = vmatmul.mubr.f32.gmra.mrb[0].mxu0 %v1751
      %v1850 = vpop.f32.mrb[0].mxu0
      %v1851 = vadd.f32 0.0, %v1850
      %v1852 = vpop.f32.mrb[0].mxu0
      %1853 = vmatprep.mubr.f32.mxu0 0.0
      %1854 = vmatmul.mubr.f32.gmra.mrb[0].mxu0 %v1754
      %v1855 = vpop.f32.mrb[0].mxu0
      %v1856 = vadd.f32 0.0, %v1855
      %v1857 = vpop.f32.mrb[0].mxu0
      %1858 = vmatprep.mubr.f32.mxu0 0.0
      %1859 = vmatmul.mubr.f32.gmra.mrb[0].mxu0 %v1757
      %v1860 = vpop.f32.mrb[0].mxu0
      %v1861 = vadd.f32 0.0, %v1860
      %v1862 = vpop.f32.mrb[0].mxu0
      %1863 = vdwg.mxu0
      %v1864 = vadd.f32 %v1714, %v1826
      %v1865 = vadd.f32 %v1715, %v1831
      %v1866 = vadd.f32 %v1716, %v1836
      %v1867 = vadd.f32 %v1717, %v1841
      %v1868 = vadd.f32 %v1718, %v1846
      %v1869 = vadd.f32 %v1719, %v1851
      %v1870 = vadd.f32 %v1720, %v1856
      %v1871 = vadd.f32 %v1721, %v1861
      %v1872 = vld [vmem:[#allocation2 + $0x19] sm:$0xff]
      %v1873 = vld [vmem:[#allocation2 + $0x21] sm:$0xff]
      %v1874 = vld [vmem:[#allocation2 + $0x29] sm:$0xff]
      %v1875 = vld [vmem:[#allocation2 + $0x31] sm:$0xff]
      %v1876 = vld [vmem:[#allocation2 + $0x39] sm:$0xff]
      %v1877 = vld [vmem:[#allocation2 + $0x41] sm:$0xff]
      %v1878 = vld [vmem:[#allocation2 + $0x49] sm:$0xff]
      %v1879 = vld [vmem:[#allocation2 + $0x51] sm:$0xff]
      %v1880 = vmul.f32 %v1872, %v911
      %v1881 = vmul.f32 %v1873, %v916
      %v1882 = vmul.f32 %v1874, %v921
      %v1883 = vmul.f32 %v1875, %v926
      %v1884 = vmul.f32 %v1876, %v931
      %v1885 = vmul.f32 %v1877, %v936
      %v1886 = vmul.f32 %v1878, %v941
      %v1887 = vmul.f32 %v1879, %v946
      %s1888 = scalar_lea.vmem %s5, 256
      %v1889 = vld [vmem:[%s1888] sm:$0xff]
      %v1890 = vld [vmem:[%s1888 + $0x8] sm:$0xff]
      %v1891 = vld [vmem:[%s1888 + $0x10] sm:$0xff]
      %v1892 = vld [vmem:[%s1888 + $0x18] sm:$0xff]
      %v1894 = vsel %vm386, %v1880, 0
      %v1897 = vsel %vm386, %v1881, 0
      %v1900 = vsel %vm386, %v1882, 0
      %v1903 = vsel %vm386, %v1883, 0
      %v1906 = vsel %vm386, %v1884, 0
      %v1909 = vsel %vm386, %v1885, 0
      %v1912 = vsel %vm386, %v1886, 0
      %v1915 = vsel %vm386, %v1887, 0
      %1917 = vmatprep.subr.mxu0 0.0
      %1918 = vmatpush1.msra.mxu0 %v1889
      %1919 = vmatprep.subr.mxu0 0.0
      %1920 = vmatpush1.msra.mxu0 %v1890
      %1921 = vmatprep.subr.mxu0 0.0
      %1922 = vmatpush1.msra.mxu0 %v1891
      %1923 = vmatprep.subr.mxu0 0.0
      %1924 = vmatpush1.msra.mxu0 %v1892
      %1925 = vmatprep.subr.mxu0 0.0
      %1926 = vmatpush1.msra.mxu0 0.0
      %1927 = vmatprep.subr.mxu0 0.0
      %1928 = vmatpush1.msra.mxu0 0.0
      %1929 = vmatprep.subr.mxu0 0.0
      %1930 = vmatpush1.msra.mxu0 0.0
      %1931 = vmatprep.subr.mxu0 0.0
      %1932 = vmatpush1.msra.mxu0 0.0
      %1933 = vmatprep.subr.mxu0 0.0
      %1934 = vmatpush1.msra.mxu0 0.0
      %1935 = vmatprep.subr.mxu0 0.0
      %1936 = vmatpush1.msra.mxu0 0.0
      %1937 = vmatprep.subr.mxu0 0.0
      %1938 = vmatpush1.msra.mxu0 0.0
      %1939 = vmatprep.subr.mxu0 0.0
      %1940 = vmatpush1.msra.mxu0 0.0
      %1941 = vmatprep.subr.mxu0 0.0
      %1942 = vmatpush1.msra.mxu0 0.0
      %1943 = vmatprep.subr.mxu0 0.0
      %1944 = vmatpush1.msra.mxu0 0.0
      %1945 = vmatprep.subr.mxu0 0.0
      %1946 = vmatpush1.msra.mxu0 0.0
      %1947 = vmatprep.subr.mxu0 0.0
      %1948 = vmatpush1.msra.mxu0 0.0
      %1949 = vmatprep.subr.mxu0 0.0
      %1950 = vmatpush1.msra.mxu0 0.0
      %1951 = vmatprep.subr.mxu0 0.0
      %1952 = vmatpush1.msra.mxu0 0.0
      %1953 = vmatprep.subr.mxu0 0.0
      %1954 = vmatpush1.msra.mxu0 0.0
      %1955 = vmatprep.subr.mxu0 0.0
      %1956 = vmatpush1.msra.mxu0 0.0
      %1957 = vmatprep.subr.mxu0 0.0
      %1958 = vmatpush1.msra.mxu0 0.0
      %1959 = vmatprep.subr.mxu0 0.0
      %1960 = vmatpush1.msra.mxu0 0.0
      %1961 = vmatprep.subr.mxu0 0.0
      %1962 = vmatpush1.msra.mxu0 0.0
      %1963 = vmatprep.subr.mxu0 0.0
      %1964 = vmatpush1.msra.mxu0 0.0
      %1965 = vmatprep.subr.mxu0 0.0
      %1966 = vmatpush1.msra.mxu0 0.0
      %1967 = vmatprep.subr.mxu0 0.0
      %1968 = vmatpush1.msra.mxu0 0.0
      %1969 = vmatprep.subr.mxu0 0.0
      %1970 = vmatpush1.msra.mxu0 0.0
      %1971 = vmatprep.subr.mxu0 0.0
      %1972 = vmatpush1.msra.mxu0 0.0
      %1973 = vmatprep.subr.mxu0 0.0
      %1974 = vmatpush1.msra.mxu0 0.0
      %1975 = vmatprep.subr.mxu0 0.0
      %1976 = vmatpush1.msra.mxu0 0.0
      %1977 = vmatprep.subr.mxu0 0.0
      %1978 = vmatpush1.msra.mxu0 0.0
      %1979 = vmatprep.subr.mxu0 0.0
      %1980 = vmatpush1.msra.mxu0 0.0
      %1981 = vmatprep.mubr.f32.mxu0 0.0
      %1982 = vmatmul.mubr.f32.gmra.mrb[0].mxu0 %v1894
      %v1983 = vpop.f32.mrb[0].mxu0
      %v1984 = vadd.f32 0.0, %v1983
      %v1985 = vpop.f32.mrb[0].mxu0
      %1986 = vmatprep.mubr.f32.mxu0 0.0
      %1987 = vmatmul.mubr.f32.gmra.mrb[0].mxu0 %v1897
      %v1988 = vpop.f32.mrb[0].mxu0
      %v1989 = vadd.f32 0.0, %v1988
      %v1990 = vpop.f32.mrb[0].mxu0
      %1991 = vmatprep.mubr.f32.mxu0 0.0
      %1992 = vmatmul.mubr.f32.gmra.mrb[0].mxu0 %v1900
      %v1993 = vpop.f32.mrb[0].mxu0
      %v1994 = vadd.f32 0.0, %v1993
      %v1995 = vpop.f32.mrb[0].mxu0
      %1996 = vmatprep.mubr.f32.mxu0 0.0
      %1997 = vmatmul.mubr.f32.gmra.mrb[0].mxu0 %v1903
      %v1998 = vpop.f32.mrb[0].mxu0
      %v1999 = vadd.f32 0.0, %v1998
      %v2000 = vpop.f32.mrb[0].mxu0
      %2001 = vmatprep.mubr.f32.mxu0 0.0
      %2002 = vmatmul.mubr.f32.gmra.mrb[0].mxu0 %v1906
      %v2003 = vpop.f32.mrb[0].mxu0
      %v2004 = vadd.f32 0.0, %v2003
      %v2005 = vpop.f32.mrb[0].mxu0
      %2006 = vmatprep.mubr.f32.mxu0 0.0
      %2007 = vmatmul.mubr.f32.gmra.mrb[0].mxu0 %v1909
      %v2008 = vpop.f32.mrb[0].mxu0
      %v2009 = vadd.f32 0.0, %v2008
      %v2010 = vpop.f32.mrb[0].mxu0
      %2011 = vmatprep.mubr.f32.mxu0 0.0
      %2012 = vmatmul.mubr.f32.gmra.mrb[0].mxu0 %v1912
      %v2013 = vpop.f32.mrb[0].mxu0
      %v2014 = vadd.f32 0.0, %v2013
      %v2015 = vpop.f32.mrb[0].mxu0
      %2016 = vmatprep.mubr.f32.mxu0 0.0
      %2017 = vmatmul.mubr.f32.gmra.mrb[0].mxu0 %v1915
      %v2018 = vpop.f32.mrb[0].mxu0
      %v2019 = vadd.f32 0.0, %v2018
      %v2020 = vpop.f32.mrb[0].mxu0
      %2021 = vdwg.mxu0
      %v2022 = vadd.f32 %v1864, %v1984
      %v2023 = vadd.f32 %v1865, %v1989
      %v2024 = vadd.f32 %v1866, %v1994
      %v2025 = vadd.f32 %v1867, %v1999
      %v2026 = vadd.f32 %v1868, %v2004
      %v2027 = vadd.f32 %v1869, %v2009
      %v2028 = vadd.f32 %v1870, %v2014
      %v2029 = vadd.f32 %v1871, %v2019
      %v2031 = vlaneseq
      %v2032 = vshrl.u32 %v2031, 7
      %v2033 = vsub.s32 0, %v2032
      %v2034 = vrot.slane %v560, %v2033
      %v2036 = vadd.f32 %v2022, %v2034
      %v2037 = vadd.f32 %v2023, %v2034
      %v2038 = vadd.f32 %v2024, %v2034
      %v2039 = vadd.f32 %v2025, %v2034
      %v2040 = vadd.f32 %v2026, %v2034
      %v2041 = vadd.f32 %v2027, %v2034
      %v2042 = vadd.f32 %v2028, %v2034
      %v2043 = vadd.f32 %v2029, %v2034
      %v2044 = vmax.f32 %v2036, 0.0
      %v2045 = vmax.f32 %v2037, 0.0
      %v2046 = vmax.f32 %v2038, 0.0
      %v2047 = vmax.f32 %v2039, 0.0
      %v2048 = vmax.f32 %v2040, 0.0
      %v2049 = vmax.f32 %v2041, 0.0
      %v2050 = vmax.f32 %v2042, 0.0
      %v2051 = vmax.f32 %v2043, 0.0
      %v2052 = vld [vmem:[%s8] sm:$0x1]
      %2053 = vst.msk [vmem:[#allocation2 + $0x10] sm:$0xff] %vm386, %v2044
      %2054 = vst.msk [vmem:[#allocation2 + $0x18] sm:$0xff] %vm386, %v2045
      %2055 = vst.msk [vmem:[#allocation2 + $0x20] sm:$0xff] %vm386, %v2046
      %2056 = vst.msk [vmem:[#allocation2 + $0x28] sm:$0xff] %vm386, %v2047
      %2057 = vst.msk [vmem:[#allocation2 + $0x30] sm:$0xff] %vm386, %v2048
      %2058 = vst.msk [vmem:[#allocation2 + $0x38] sm:$0xff] %vm386, %v2049
      %2059 = vst.msk [vmem:[#allocation2 + $0x40] sm:$0xff] %vm386, %v2050
      %2060 = vst.msk [vmem:[#allocation2 + $0x48] sm:$0xff] %vm386, %v2051
      %v2061 = vld [vmem:[#allocation2 + $0x7] sm:$0xff]
      %v2062 = vld [vmem:[#allocation2 + $0xf] sm:$0xff]
      %v2063 = vld [vmem:[#allocation2 + $0x17] sm:$0xff]
      %v2064 = vld [vmem:[#allocation2 + $0x1f] sm:$0xff]
      %v2065 = vld [vmem:[#allocation2 + $0x27] sm:$0xff]
      %v2066 = vld [vmem:[#allocation2 + $0x2f] sm:$0xff]
      %v2067 = vld [vmem:[#allocation2 + $0x37] sm:$0xff]
      %v2068 = vld [vmem:[#allocation2 + $0x3f] sm:$0xff]
      %v2069 = vmul.f32 %v2061, %v580
      %v2070 = vmul.f32 %v2062, %v585
      %v2071 = vmul.f32 %v2063, %v590
      %v2072 = vmul.f32 %v2064, %v595
      %v2073 = vmul.f32 %v2065, %v600
      %v2074 = vmul.f32 %v2066, %v605
      %v2075 = vmul.f32 %v2067, %v610
      %v2076 = vmul.f32 %v2068, %v615
      %v2077 = vld [vmem:[%s7] sm:$0xff]
      %v2078 = vld [vmem:[%s7 + $0x8] sm:$0xff]
      %v2079 = vld [vmem:[%s7 + $0x10] sm:$0xff]
      %v2080 = vld [vmem:[%s7 + $0x18] sm:$0xff]
      %v2081 = vld [vmem:[#allocation2 + $0x8] sm:$0xff]
      %v2082 = vld [vmem:[#allocation2 + $0x10] sm:$0xff]
      %v2083 = vld [vmem:[#allocation2 + $0x18] sm:$0xff]
      %v2084 = vld [vmem:[#allocation2 + $0x20] sm:$0xff]
      %v2085 = vld [vmem:[#allocation2 + $0x28] sm:$0xff]
      %v2086 = vld [vmem:[#allocation2 + $0x30] sm:$0xff]
      %v2087 = vld [vmem:[#allocation2 + $0x38] sm:$0xff]
      %v2088 = vld [vmem:[#allocation2 + $0x40] sm:$0xff]
      %s2089 = scalar_lea.vmem %s7, 32
      %v2090 = vld [vmem:[%s2089] sm:$0xff]
      %v2091 = vld [vmem:[%s2089 + $0x8] sm:$0xff]
      %v2092 = vld [vmem:[%s2089 + $0x10] sm:$0xff]
      %v2093 = vld [vmem:[%s2089 + $0x18] sm:$0xff]
      %v2095 = vsel %vm386, %v2081, 0
      %v2098 = vsel %vm386, %v2082, 0
      %v2101 = vsel %vm386, %v2083, 0
      %v2104 = vsel %vm386, %v2084, 0
      %v2107 = vsel %vm386, %v2085, 0
      %v2110 = vsel %vm386, %v2086, 0
      %v2113 = vsel %vm386, %v2087, 0
      %v2116 = vsel %vm386, %v2088, 0
      %2118 = vmatprep.subr.mxu0 0.0
      %2119 = vmatpush1.msra.mxu0 %v2090
      %2120 = vmatprep.subr.mxu0 0.0
      %2121 = vmatpush1.msra.mxu0 %v2091
      %2122 = vmatprep.subr.mxu0 0.0
      %2123 = vmatpush1.msra.mxu0 %v2092
      %2124 = vmatprep.subr.mxu0 0.0
      %2125 = vmatpush1.msra.mxu0 %v2093
      %2126 = vmatprep.subr.mxu0 0.0
      %2127 = vmatpush1.msra.mxu0 0.0
      %2128 = vmatprep.subr.mxu0 0.0
      %2129 = vmatpush1.msra.mxu0 0.0
      %2130 = vmatprep.subr.mxu0 0.0
      %2131 = vmatpush1.msra.mxu0 0.0
      %2132 = vmatprep.subr.mxu0 0.0
      %2133 = vmatpush1.msra.mxu0 0.0
      %2134 = vmatprep.subr.mxu0 0.0
      %2135 = vmatpush1.msra.mxu0 0.0
      %2136 = vmatprep.subr.mxu0 0.0
      %2137 = vmatpush1.msra.mxu0 0.0
      %2138 = vmatprep.subr.mxu0 0.0
      %2139 = vmatpush1.msra.mxu0 0.0
      %2140 = vmatprep.subr.mxu0 0.0
      %2141 = vmatpush1.msra.mxu0 0.0
      %2142 = vmatprep.subr.mxu0 0.0
      %2143 = vmatpush1.msra.mxu0 0.0
      %2144 = vmatprep.subr.mxu0 0.0
      %2145 = vmatpush1.msra.mxu0 0.0
      %2146 = vmatprep.subr.mxu0 0.0
      %2147 = vmatpush1.msra.mxu0 0.0
      %2148 = vmatprep.subr.mxu0 0.0
      %2149 = vmatpush1.msra.mxu0 0.0
      %2150 = vmatprep.subr.mxu0 0.0
      %2151 = vmatpush1.msra.mxu0 0.0
      %2152 = vmatprep.subr.mxu0 0.0
      %2153 = vmatpush1.msra.mxu0 0.0
      %2154 = vmatprep.subr.mxu0 0.0
      %2155 = vmatpush1.msra.mxu0 0.0
      %2156 = vmatprep.subr.mxu0 0.0
      %2157 = vmatpush1.msra.mxu0 0.0
      %2158 = vmatprep.subr.mxu0 0.0
      %2159 = vmatpush1.msra.mxu0 0.0
      %2160 = vmatprep.subr.mxu0 0.0
      %2161 = vmatpush1.msra.mxu0 0.0
      %2162 = vmatprep.subr.mxu0 0.0
      %2163 = vmatpush1.msra.mxu0 0.0
      %2164 = vmatprep.subr.mxu0 0.0
      %2165 = vmatpush1.msra.mxu0 0.0
      %2166 = vmatprep.subr.mxu0 0.0
      %2167 = vmatpush1.msra.mxu0 0.0
      %2168 = vmatprep.subr.mxu0 0.0
      %2169 = vmatpush1.msra.mxu0 0.0
      %2170 = vmatprep.subr.mxu0 0.0
      %2171 = vmatpush1.msra.mxu0 0.0
      %2172 = vmatprep.subr.mxu0 0.0
      %2173 = vmatpush1.msra.mxu0 0.0
      %2174 = vmatprep.subr.mxu0 0.0
      %2175 = vmatpush1.msra.mxu0 0.0
      %2176 = vmatprep.subr.mxu0 0.0
      %2177 = vmatpush1.msra.mxu0 0.0
      %2178 = vmatprep.subr.mxu0 0.0
      %2179 = vmatpush1.msra.mxu0 0.0
      %2180 = vmatprep.subr.mxu0 0.0
      %2181 = vmatpush1.msra.mxu0 0.0
      %2182 = vmatprep.mubr.f32.mxu0 0.0
      %2183 = vmatmul.mubr.f32.gmra.mrb[0].mxu0 %v2095
      %v2184 = vpop.f32.mrb[0].mxu0
      %v2185 = vadd.f32 0.0, %v2184
      %v2186 = vpop.f32.mrb[0].mxu0
      %2187 = vmatprep.mubr.f32.mxu0 0.0
      %2188 = vmatmul.mubr.f32.gmra.mrb[0].mxu0 %v2098
      %v2189 = vpop.f32.mrb[0].mxu0
      %v2190 = vadd.f32 0.0, %v2189
      %v2191 = vpop.f32.mrb[0].mxu0
      %2192 = vmatprep.mubr.f32.mxu0 0.0
      %2193 = vmatmul.mubr.f32.gmra.mrb[0].mxu0 %v2101
      %v2194 = vpop.f32.mrb[0].mxu0
      %v2195 = vadd.f32 0.0, %v2194
      %v2196 = vpop.f32.mrb[0].mxu0
      %2197 = vmatprep.mubr.f32.mxu0 0.0
      %2198 = vmatmul.mubr.f32.gmra.mrb[0].mxu0 %v2104
      %v2199 = vpop.f32.mrb[0].mxu0
      %v2200 = vadd.f32 0.0, %v2199
      %v2201 = vpop.f32.mrb[0].mxu0
      %2202 = vmatprep.mubr.f32.mxu0 0.0
      %2203 = vmatmul.mubr.f32.gmra.mrb[0].mxu0 %v2107
      %v2204 = vpop.f32.mrb[0].mxu0
      %v2205 = vadd.f32 0.0, %v2204
      %v2206 = vpop.f32.mrb[0].mxu0
      %2207 = vmatprep.mubr.f32.mxu0 0.0
      %2208 = vmatmul.mubr.f32.gmra.mrb[0].mxu0 %v2110
      %v2209 = vpop.f32.mrb[0].mxu0
      %v2210 = vadd.f32 0.0, %v2209
      %v2211 = vpop.f32.mrb[0].mxu0
      %2212 = vmatprep.mubr.f32.mxu0 0.0
      %2213 = vmatmul.mubr.f32.gmra.mrb[0].mxu0 %v2113
      %v2214 = vpop.f32.mrb[0].mxu0
      %v2215 = vadd.f32 0.0, %v2214
      %v2216 = vpop.f32.mrb[0].mxu0
      %2217 = vmatprep.mubr.f32.mxu0 0.0
      %2218 = vmatmul.mubr.f32.gmra.mrb[0].mxu0 %v2116
      %v2219 = vpop.f32.mrb[0].mxu0
      %v2220 = vadd.f32 0.0, %v2219
      %v2221 = vpop.f32.mrb[0].mxu0
      %2222 = vdwg.mxu0
      %v2224 = vsel %vm386, %v2069, 0
      %v2227 = vsel %vm386, %v2070, 0
      %v2230 = vsel %vm386, %v2071, 0
      %v2233 = vsel %vm386, %v2072, 0
      %v2236 = vsel %vm386, %v2073, 0
      %v2239 = vsel %vm386, %v2074, 0
      %v2242 = vsel %vm386, %v2075, 0
      %v2245 = vsel %vm386, %v2076, 0
      %2247 = vmatprep.subr.mxu0 0.0
      %2248 = vmatpush1.msra.mxu0 %v2077
      %2249 = vmatprep.subr.mxu0 0.0
      %2250 = vmatpush1.msra.mxu0 %v2078
      %2251 = vmatprep.subr.mxu0 0.0
      %2252 = vmatpush1.msra.mxu0 %v2079
      %2253 = vmatprep.subr.mxu0 0.0
      %2254 = vmatpush1.msra.mxu0 %v2080
      %2255 = vmatprep.subr.mxu0 0.0
      %2256 = vmatpush1.msra.mxu0 0.0
      %2257 = vmatprep.subr.mxu0 0.0
      %2258 = vmatpush1.msra.mxu0 0.0
      %2259 = vmatprep.subr.mxu0 0.0
      %2260 = vmatpush1.msra.mxu0 0.0
      %2261 = vmatprep.subr.mxu0 0.0
      %2262 = vmatpush1.msra.mxu0 0.0
      %2263 = vmatprep.subr.mxu0 0.0
      %2264 = vmatpush1.msra.mxu0 0.0
      %2265 = vmatprep.subr.mxu0 0.0
      %2266 = vmatpush1.msra.mxu0 0.0
      %2267 = vmatprep.subr.mxu0 0.0
      %2268 = vmatpush1.msra.mxu0 0.0
      %2269 = vmatprep.subr.mxu0 0.0
      %2270 = vmatpush1.msra.mxu0 0.0
      %2271 = vmatprep.subr.mxu0 0.0
      %2272 = vmatpush1.msra.mxu0 0.0
      %2273 = vmatprep.subr.mxu0 0.0
      %2274 = vmatpush1.msra.mxu0 0.0
      %2275 = vmatprep.subr.mxu0 0.0
      %2276 = vmatpush1.msra.mxu0 0.0
      %2277 = vmatprep.subr.mxu0 0.0
      %2278 = vmatpush1.msra.mxu0 0.0
      %2279 = vmatprep.subr.mxu0 0.0
      %2280 = vmatpush1.msra.mxu0 0.0
      %2281 = vmatprep.subr.mxu0 0.0
      %2282 = vmatpush1.msra.mxu0 0.0
      %2283 = vmatprep.subr.mxu0 0.0
      %2284 = vmatpush1.msra.mxu0 0.0
      %2285 = vmatprep.subr.mxu0 0.0
      %2286 = vmatpush1.msra.mxu0 0.0
      %2287 = vmatprep.subr.mxu0 0.0
      %2288 = vmatpush1.msra.mxu0 0.0
      %2289 = vmatprep.subr.mxu0 0.0
      %2290 = vmatpush1.msra.mxu0 0.0
      %2291 = vmatprep.subr.mxu0 0.0
      %2292 = vmatpush1.msra.mxu0 0.0
      %2293 = vmatprep.subr.mxu0 0.0
      %2294 = vmatpush1.msra.mxu0 0.0
      %2295 = vmatprep.subr.mxu0 0.0
      %2296 = vmatpush1.msra.mxu0 0.0
      %2297 = vmatprep.subr.mxu0 0.0
      %2298 = vmatpush1.msra.mxu0 0.0
      %2299 = vmatprep.subr.mxu0 0.0
      %2300 = vmatpush1.msra.mxu0 0.0
      %2301 = vmatprep.subr.mxu0 0.0
      %2302 = vmatpush1.msra.mxu0 0.0
      %2303 = vmatprep.subr.mxu0 0.0
      %2304 = vmatpush1.msra.mxu0 0.0
      %2305 = vmatprep.subr.mxu0 0.0
      %2306 = vmatpush1.msra.mxu0 0.0
      %2307 = vmatprep.subr.mxu0 0.0
      %2308 = vmatpush1.msra.mxu0 0.0
      %2309 = vmatprep.subr.mxu0 0.0
      %2310 = vmatpush1.msra.mxu0 0.0
      %2311 = vmatprep.mubr.f32.mxu0 0.0
      %2312 = vmatmul.mubr.f32.gmra.mrb[0].mxu0 %v2224
      %v2313 = vpop.f32.mrb[0].mxu0
      %v2314 = vadd.f32 %v2185, %v2313
      %v2315 = vpop.f32.mrb[0].mxu0
      %2316 = vmatprep.mubr.f32.mxu0 0.0
      %2317 = vmatmul.mubr.f32.gmra.mrb[0].mxu0 %v2227
      %v2318 = vpop.f32.mrb[0].mxu0
      %v2319 = vadd.f32 %v2190, %v2318
      %v2320 = vpop.f32.mrb[0].mxu0
      %2321 = vmatprep.mubr.f32.mxu0 0.0
      %2322 = vmatmul.mubr.f32.gmra.mrb[0].mxu0 %v2230
      %v2323 = vpop.f32.mrb[0].mxu0
      %v2324 = vadd.f32 %v2195, %v2323
      %v2325 = vpop.f32.mrb[0].mxu0
      %2326 = vmatprep.mubr.f32.mxu0 0.0
      %2327 = vmatmul.mubr.f32.gmra.mrb[0].mxu0 %v2233
      %v2328 = vpop.f32.mrb[0].mxu0
      %v2329 = vadd.f32 %v2200, %v2328
      %v2330 = vpop.f32.mrb[0].mxu0
      %2331 = vmatprep.mubr.f32.mxu0 0.0
      %2332 = vmatmul.mubr.f32.gmra.mrb[0].mxu0 %v2236
      %v2333 = vpop.f32.mrb[0].mxu0
      %v2334 = vadd.f32 %v2205, %v2333
      %v2335 = vpop.f32.mrb[0].mxu0
      %2336 = vmatprep.mubr.f32.mxu0 0.0
      %2337 = vmatmul.mubr.f32.gmra.mrb[0].mxu0 %v2239
      %v2338 = vpop.f32.mrb[0].mxu0
      %v2339 = vadd.f32 %v2210, %v2338
      %v2340 = vpop.f32.mrb[0].mxu0
      %2341 = vmatprep.mubr.f32.mxu0 0.0
      %2342 = vmatmul.mubr.f32.gmra.mrb[0].mxu0 %v2242
      %v2343 = vpop.f32.mrb[0].mxu0
      %v2344 = vadd.f32 %v2215, %v2343
      %v2345 = vpop.f32.mrb[0].mxu0
      %2346 = vmatprep.mubr.f32.mxu0 0.0
      %2347 = vmatmul.mubr.f32.gmra.mrb[0].mxu0 %v2245
      %v2348 = vpop.f32.mrb[0].mxu0
      %v2349 = vadd.f32 %v2220, %v2348
      %v2350 = vpop.f32.mrb[0].mxu0
      %2351 = vdwg.mxu0
      %v2352 = vld [vmem:[#allocation2 + $0x9] sm:$0xff]
      %v2353 = vld [vmem:[#allocation2 + $0x11] sm:$0xff]
      %v2354 = vld [vmem:[#allocation2 + $0x19] sm:$0xff]
      %v2355 = vld [vmem:[#allocation2 + $0x21] sm:$0xff]
      %v2356 = vld [vmem:[#allocation2 + $0x29] sm:$0xff]
      %v2357 = vld [vmem:[#allocation2 + $0x31] sm:$0xff]
      %v2358 = vld [vmem:[#allocation2 + $0x39] sm:$0xff]
      %v2359 = vld [vmem:[#allocation2 + $0x41] sm:$0xff]
      %v2360 = vmul.f32 %v2352, %v911
      %v2361 = vmul.f32 %v2353, %v916
      %v2362 = vmul.f32 %v2354, %v921
      %v2363 = vmul.f32 %v2355, %v926
      %v2364 = vmul.f32 %v2356, %v931
      %v2365 = vmul.f32 %v2357, %v936
      %v2366 = vmul.f32 %v2358, %v941
      %v2367 = vmul.f32 %v2359, %v946
      %s2368 = scalar_lea.vmem %s7, 64
      %v2369 = vld [vmem:[%s2368] sm:$0xff]
      %v2370 = vld [vmem:[%s2368 + $0x8] sm:$0xff]
      %v2371 = vld [vmem:[%s2368 + $0x10] sm:$0xff]
      %v2372 = vld [vmem:[%s2368 + $0x18] sm:$0xff]
      %v2374 = vsel %vm386, %v2360, 0
      %v2377 = vsel %vm386, %v2361, 0
      %v2380 = vsel %vm386, %v2362, 0
      %v2383 = vsel %vm386, %v2363, 0
      %v2386 = vsel %vm386, %v2364, 0
      %v2389 = vsel %vm386, %v2365, 0
      %v2392 = vsel %vm386, %v2366, 0
      %v2395 = vsel %vm386, %v2367, 0
      %2397 = vmatprep.subr.mxu0 0.0
      %2398 = vmatpush1.msra.mxu0 %v2369
      %2399 = vmatprep.subr.mxu0 0.0
      %2400 = vmatpush1.msra.mxu0 %v2370
      %2401 = vmatprep.subr.mxu0 0.0
      %2402 = vmatpush1.msra.mxu0 %v2371
      %2403 = vmatprep.subr.mxu0 0.0
      %2404 = vmatpush1.msra.mxu0 %v2372
      %2405 = vmatprep.subr.mxu0 0.0
      %2406 = vmatpush1.msra.mxu0 0.0
      %2407 = vmatprep.subr.mxu0 0.0
      %2408 = vmatpush1.msra.mxu0 0.0
      %2409 = vmatprep.subr.mxu0 0.0
      %2410 = vmatpush1.msra.mxu0 0.0
      %2411 = vmatprep.subr.mxu0 0.0
      %2412 = vmatpush1.msra.mxu0 0.0
      %2413 = vmatprep.subr.mxu0 0.0
      %2414 = vmatpush1.msra.mxu0 0.0
      %2415 = vmatprep.subr.mxu0 0.0
      %2416 = vmatpush1.msra.mxu0 0.0
      %2417 = vmatprep.subr.mxu0 0.0
      %2418 = vmatpush1.msra.mxu0 0.0
      %2419 = vmatprep.subr.mxu0 0.0
      %2420 = vmatpush1.msra.mxu0 0.0
      %2421 = vmatprep.subr.mxu0 0.0
      %2422 = vmatpush1.msra.mxu0 0.0
      %2423 = vmatprep.subr.mxu0 0.0
      %2424 = vmatpush1.msra.mxu0 0.0
      %2425 = vmatprep.subr.mxu0 0.0
      %2426 = vmatpush1.msra.mxu0 0.0
      %2427 = vmatprep.subr.mxu0 0.0
      %2428 = vmatpush1.msra.mxu0 0.0
      %2429 = vmatprep.subr.mxu0 0.0
      %2430 = vmatpush1.msra.mxu0 0.0
      %2431 = vmatprep.subr.mxu0 0.0
      %2432 = vmatpush1.msra.mxu0 0.0
      %2433 = vmatprep.subr.mxu0 0.0
      %2434 = vmatpush1.msra.mxu0 0.0
      %2435 = vmatprep.subr.mxu0 0.0
      %2436 = vmatpush1.msra.mxu0 0.0
      %2437 = vmatprep.subr.mxu0 0.0
      %2438 = vmatpush1.msra.mxu0 0.0
      %2439 = vmatprep.subr.mxu0 0.0
      %2440 = vmatpush1.msra.mxu0 0.0
      %2441 = vmatprep.subr.mxu0 0.0
      %2442 = vmatpush1.msra.mxu0 0.0
      %2443 = vmatprep.subr.mxu0 0.0
      %2444 = vmatpush1.msra.mxu0 0.0
      %2445 = vmatprep.subr.mxu0 0.0
      %2446 = vmatpush1.msra.mxu0 0.0
      %2447 = vmatprep.subr.mxu0 0.0
      %2448 = vmatpush1.msra.mxu0 0.0
      %2449 = vmatprep.subr.mxu0 0.0
      %2450 = vmatpush1.msra.mxu0 0.0
      %2451 = vmatprep.subr.mxu0 0.0
      %2452 = vmatpush1.msra.mxu0 0.0
      %2453 = vmatprep.subr.mxu0 0.0
      %2454 = vmatpush1.msra.mxu0 0.0
      %2455 = vmatprep.subr.mxu0 0.0
      %2456 = vmatpush1.msra.mxu0 0.0
      %2457 = vmatprep.subr.mxu0 0.0
      %2458 = vmatpush1.msra.mxu0 0.0
      %2459 = vmatprep.subr.mxu0 0.0
      %2460 = vmatpush1.msra.mxu0 0.0
      %2461 = vmatprep.mubr.f32.mxu0 0.0
      %2462 = vmatmul.mubr.f32.gmra.mrb[0].mxu0 %v2374
      %v2463 = vpop.f32.mrb[0].mxu0
      %v2464 = vadd.f32 0.0, %v2463
      %v2465 = vpop.f32.mrb[0].mxu0
      %2466 = vmatprep.mubr.f32.mxu0 0.0
      %2467 = vmatmul.mubr.f32.gmra.mrb[0].mxu0 %v2377
      %v2468 = vpop.f32.mrb[0].mxu0
      %v2469 = vadd.f32 0.0, %v2468
      %v2470 = vpop.f32.mrb[0].mxu0
      %2471 = vmatprep.mubr.f32.mxu0 0.0
      %2472 = vmatmul.mubr.f32.gmra.mrb[0].mxu0 %v2380
      %v2473 = vpop.f32.mrb[0].mxu0
      %v2474 = vadd.f32 0.0, %v2473
      %v2475 = vpop.f32.mrb[0].mxu0
      %2476 = vmatprep.mubr.f32.mxu0 0.0
      %2477 = vmatmul.mubr.f32.gmra.mrb[0].mxu0 %v2383
      %v2478 = vpop.f32.mrb[0].mxu0
      %v2479 = vadd.f32 0.0, %v2478
      %v2480 = vpop.f32.mrb[0].mxu0
      %2481 = vmatprep.mubr.f32.mxu0 0.0
      %2482 = vmatmul.mubr.f32.gmra.mrb[0].mxu0 %v2386
      %v2483 = vpop.f32.mrb[0].mxu0
      %v2484 = vadd.f32 0.0, %v2483
      %v2485 = vpop.f32.mrb[0].mxu0
      %2486 = vmatprep.mubr.f32.mxu0 0.0
      %2487 = vmatmul.mubr.f32.gmra.mrb[0].mxu0 %v2389
      %v2488 = vpop.f32.mrb[0].mxu0
      %v2489 = vadd.f32 0.0, %v2488
      %v2490 = vpop.f32.mrb[0].mxu0
      %2491 = vmatprep.mubr.f32.mxu0 0.0
      %2492 = vmatmul.mubr.f32.gmra.mrb[0].mxu0 %v2392
      %v2493 = vpop.f32.mrb[0].mxu0
      %v2494 = vadd.f32 0.0, %v2493
      %v2495 = vpop.f32.mrb[0].mxu0
      %2496 = vmatprep.mubr.f32.mxu0 0.0
      %2497 = vmatmul.mubr.f32.gmra.mrb[0].mxu0 %v2395
      %v2498 = vpop.f32.mrb[0].mxu0
      %v2499 = vadd.f32 0.0, %v2498
      %v2500 = vpop.f32.mrb[0].mxu0
      %2501 = vdwg.mxu0
      %v2502 = vadd.f32 %v2314, %v2464
      %v2503 = vadd.f32 %v2319, %v2469
      %v2504 = vadd.f32 %v2324, %v2474
      %v2505 = vadd.f32 %v2329, %v2479
      %v2506 = vadd.f32 %v2334, %v2484
      %v2507 = vadd.f32 %v2339, %v2489
      %v2508 = vadd.f32 %v2344, %v2494
      %v2509 = vadd.f32 %v2349, %v2499
      %v2510 = vld [vmem:[#allocation2 + $0xf] sm:$0xff]
      %v2511 = vld [vmem:[#allocation2 + $0x17] sm:$0xff]
      %v2512 = vld [vmem:[#allocation2 + $0x1f] sm:$0xff]
      %v2513 = vld [vmem:[#allocation2 + $0x27] sm:$0xff]
      %v2514 = vld [vmem:[#allocation2 + $0x2f] sm:$0xff]
      %v2515 = vld [vmem:[#allocation2 + $0x37] sm:$0xff]
      %v2516 = vld [vmem:[#allocation2 + $0x3f] sm:$0xff]
      %v2517 = vld [vmem:[#allocation2 + $0x47] sm:$0xff]
      %v2518 = vmul.f32 %v2510, %v580
      %v2519 = vmul.f32 %v2511, %v585
      %v2520 = vmul.f32 %v2512, %v590
      %v2521 = vmul.f32 %v2513, %v595
      %v2522 = vmul.f32 %v2514, %v600
      %v2523 = vmul.f32 %v2515, %v605
      %v2524 = vmul.f32 %v2516, %v610
      %v2525 = vmul.f32 %v2517, %v615
      %s2526 = scalar_lea.vmem %s7, 96
      %v2527 = vld [vmem:[%s2526] sm:$0xff]
      %v2528 = vld [vmem:[%s2526 + $0x8] sm:$0xff]
      %v2529 = vld [vmem:[%s2526 + $0x10] sm:$0xff]
      %v2530 = vld [vmem:[%s2526 + $0x18] sm:$0xff]
      %v2532 = vsel %vm386, %v2518, 0
      %v2535 = vsel %vm386, %v2519, 0
      %v2538 = vsel %vm386, %v2520, 0
      %v2541 = vsel %vm386, %v2521, 0
      %v2544 = vsel %vm386, %v2522, 0
      %v2547 = vsel %vm386, %v2523, 0
      %v2550 = vsel %vm386, %v2524, 0
      %v2553 = vsel %vm386, %v2525, 0
      %2555 = vmatprep.subr.mxu0 0.0
      %2556 = vmatpush1.msra.mxu0 %v2527
      %2557 = vmatprep.subr.mxu0 0.0
      %2558 = vmatpush1.msra.mxu0 %v2528
      %2559 = vmatprep.subr.mxu0 0.0
      %2560 = vmatpush1.msra.mxu0 %v2529
      %2561 = vmatprep.subr.mxu0 0.0
      %2562 = vmatpush1.msra.mxu0 %v2530
      %2563 = vmatprep.subr.mxu0 0.0
      %2564 = vmatpush1.msra.mxu0 0.0
      %2565 = vmatprep.subr.mxu0 0.0
      %2566 = vmatpush1.msra.mxu0 0.0
      %2567 = vmatprep.subr.mxu0 0.0
      %2568 = vmatpush1.msra.mxu0 0.0
      %2569 = vmatprep.subr.mxu0 0.0
      %2570 = vmatpush1.msra.mxu0 0.0
      %2571 = vmatprep.subr.mxu0 0.0
      %2572 = vmatpush1.msra.mxu0 0.0
      %2573 = vmatprep.subr.mxu0 0.0
      %2574 = vmatpush1.msra.mxu0 0.0
      %2575 = vmatprep.subr.mxu0 0.0
      %2576 = vmatpush1.msra.mxu0 0.0
      %2577 = vmatprep.subr.mxu0 0.0
      %2578 = vmatpush1.msra.mxu0 0.0
      %2579 = vmatprep.subr.mxu0 0.0
      %2580 = vmatpush1.msra.mxu0 0.0
      %2581 = vmatprep.subr.mxu0 0.0
      %2582 = vmatpush1.msra.mxu0 0.0
      %2583 = vmatprep.subr.mxu0 0.0
      %2584 = vmatpush1.msra.mxu0 0.0
      %2585 = vmatprep.subr.mxu0 0.0
      %2586 = vmatpush1.msra.mxu0 0.0
      %2587 = vmatprep.subr.mxu0 0.0
      %2588 = vmatpush1.msra.mxu0 0.0
      %2589 = vmatprep.subr.mxu0 0.0
      %2590 = vmatpush1.msra.mxu0 0.0
      %2591 = vmatprep.subr.mxu0 0.0
      %2592 = vmatpush1.msra.mxu0 0.0
      %2593 = vmatprep.subr.mxu0 0.0
      %2594 = vmatpush1.msra.mxu0 0.0
      %2595 = vmatprep.subr.mxu0 0.0
      %2596 = vmatpush1.msra.mxu0 0.0
      %2597 = vmatprep.subr.mxu0 0.0
      %2598 = vmatpush1.msra.mxu0 0.0
      %2599 = vmatprep.subr.mxu0 0.0
      %2600 = vmatpush1.msra.mxu0 0.0
      %2601 = vmatprep.subr.mxu0 0.0
      %2602 = vmatpush1.msra.mxu0 0.0
      %2603 = vmatprep.subr.mxu0 0.0
      %2604 = vmatpush1.msra.mxu0 0.0
      %2605 = vmatprep.subr.mxu0 0.0
      %2606 = vmatpush1.msra.mxu0 0.0
      %2607 = vmatprep.subr.mxu0 0.0
      %2608 = vmatpush1.msra.mxu0 0.0
      %2609 = vmatprep.subr.mxu0 0.0
      %2610 = vmatpush1.msra.mxu0 0.0
      %2611 = vmatprep.subr.mxu0 0.0
      %2612 = vmatpush1.msra.mxu0 0.0
      %2613 = vmatprep.subr.mxu0 0.0
      %2614 = vmatpush1.msra.mxu0 0.0
      %2615 = vmatprep.subr.mxu0 0.0
      %2616 = vmatpush1.msra.mxu0 0.0
      %2617 = vmatprep.subr.mxu0 0.0
      %2618 = vmatpush1.msra.mxu0 0.0
      %2619 = vmatprep.mubr.f32.mxu0 0.0
      %2620 = vmatmul.mubr.f32.gmra.mrb[0].mxu0 %v2532
      %v2621 = vpop.f32.mrb[0].mxu0
      %v2622 = vadd.f32 0.0, %v2621
      %v2623 = vpop.f32.mrb[0].mxu0
      %2624 = vmatprep.mubr.f32.mxu0 0.0
      %2625 = vmatmul.mubr.f32.gmra.mrb[0].mxu0 %v2535
      %v2626 = vpop.f32.mrb[0].mxu0
      %v2627 = vadd.f32 0.0, %v2626
      %v2628 = vpop.f32.mrb[0].mxu0
      %2629 = vmatprep.mubr.f32.mxu0 0.0
      %2630 = vmatmul.mubr.f32.gmra.mrb[0].mxu0 %v2538
      %v2631 = vpop.f32.mrb[0].mxu0
      %v2632 = vadd.f32 0.0, %v2631
      %v2633 = vpop.f32.mrb[0].mxu0
      %2634 = vmatprep.mubr.f32.mxu0 0.0
      %2635 = vmatmul.mubr.f32.gmra.mrb[0].mxu0 %v2541
      %v2636 = vpop.f32.mrb[0].mxu0
      %v2637 = vadd.f32 0.0, %v2636
      %v2638 = vpop.f32.mrb[0].mxu0
      %2639 = vmatprep.mubr.f32.mxu0 0.0
      %2640 = vmatmul.mubr.f32.gmra.mrb[0].mxu0 %v2544
      %v2641 = vpop.f32.mrb[0].mxu0
      %v2642 = vadd.f32 0.0, %v2641
      %v2643 = vpop.f32.mrb[0].mxu0
      %2644 = vmatprep.mubr.f32.mxu0 0.0
      %2645 = vmatmul.mubr.f32.gmra.mrb[0].mxu0 %v2547
      %v2646 = vpop.f32.mrb[0].mxu0
      %v2647 = vadd.f32 0.0, %v2646
      %v2648 = vpop.f32.mrb[0].mxu0
      %2649 = vmatprep.mubr.f32.mxu0 0.0
      %2650 = vmatmul.mubr.f32.gmra.mrb[0].mxu0 %v2550
      %v2651 = vpop.f32.mrb[0].mxu0
      %v2652 = vadd.f32 0.0, %v2651
      %v2653 = vpop.f32.mrb[0].mxu0
      %2654 = vmatprep.mubr.f32.mxu0 0.0
      %2655 = vmatmul.mubr.f32.gmra.mrb[0].mxu0 %v2553
      %v2656 = vpop.f32.mrb[0].mxu0
      %v2657 = vadd.f32 0.0, %v2656
      %v2658 = vpop.f32.mrb[0].mxu0
      %2659 = vdwg.mxu0
      %v2660 = vadd.f32 %v2502, %v2622
      %v2661 = vadd.f32 %v2503, %v2627
      %v2662 = vadd.f32 %v2504, %v2632
      %v2663 = vadd.f32 %v2505, %v2637
      %v2664 = vadd.f32 %v2506, %v2642
      %v2665 = vadd.f32 %v2507, %v2647
      %v2666 = vadd.f32 %v2508, %v2652
      %v2667 = vadd.f32 %v2509, %v2657
      %v2668 = vld [vmem:[#allocation2 + $0x10] sm:$0xff]
      %v2669 = vld [vmem:[#allocation2 + $0x18] sm:$0xff]
      %v2670 = vld [vmem:[#allocation2 + $0x20] sm:$0xff]
      %v2671 = vld [vmem:[#allocation2 + $0x28] sm:$0xff]
      %v2672 = vld [vmem:[#allocation2 + $0x30] sm:$0xff]
      %v2673 = vld [vmem:[#allocation2 + $0x38] sm:$0xff]
      %v2674 = vld [vmem:[#allocation2 + $0x40] sm:$0xff]
      %v2675 = vld [vmem:[#allocation2 + $0x48] sm:$0xff]
      %s2676 = scalar_lea.vmem %s7, 128
      %v2677 = vld [vmem:[%s2676] sm:$0xff]
      %v2678 = vld [vmem:[%s2676 + $0x8] sm:$0xff]
      %v2679 = vld [vmem:[%s2676 + $0x10] sm:$0xff]
      %v2680 = vld [vmem:[%s2676 + $0x18] sm:$0xff]
      %v2682 = vsel %vm386, %v2668, 0
      %v2685 = vsel %vm386, %v2669, 0
      %v2688 = vsel %vm386, %v2670, 0
      %v2691 = vsel %vm386, %v2671, 0
      %v2694 = vsel %vm386, %v2672, 0
      %v2697 = vsel %vm386, %v2673, 0
      %v2700 = vsel %vm386, %v2674, 0
      %v2703 = vsel %vm386, %v2675, 0
      %2705 = vmatprep.subr.mxu0 0.0
      %2706 = vmatpush1.msra.mxu0 %v2677
      %2707 = vmatprep.subr.mxu0 0.0
      %2708 = vmatpush1.msra.mxu0 %v2678
      %2709 = vmatprep.subr.mxu0 0.0
      %2710 = vmatpush1.msra.mxu0 %v2679
      %2711 = vmatprep.subr.mxu0 0.0
      %2712 = vmatpush1.msra.mxu0 %v2680
      %2713 = vmatprep.subr.mxu0 0.0
      %2714 = vmatpush1.msra.mxu0 0.0
      %2715 = vmatprep.subr.mxu0 0.0
      %2716 = vmatpush1.msra.mxu0 0.0
      %2717 = vmatprep.subr.mxu0 0.0
      %2718 = vmatpush1.msra.mxu0 0.0
      %2719 = vmatprep.subr.mxu0 0.0
      %2720 = vmatpush1.msra.mxu0 0.0
      %2721 = vmatprep.subr.mxu0 0.0
      %2722 = vmatpush1.msra.mxu0 0.0
      %2723 = vmatprep.subr.mxu0 0.0
      %2724 = vmatpush1.msra.mxu0 0.0
      %2725 = vmatprep.subr.mxu0 0.0
      %2726 = vmatpush1.msra.mxu0 0.0
      %2727 = vmatprep.subr.mxu0 0.0
      %2728 = vmatpush1.msra.mxu0 0.0
      %2729 = vmatprep.subr.mxu0 0.0
      %2730 = vmatpush1.msra.mxu0 0.0
      %2731 = vmatprep.subr.mxu0 0.0
      %2732 = vmatpush1.msra.mxu0 0.0
      %2733 = vmatprep.subr.mxu0 0.0
      %2734 = vmatpush1.msra.mxu0 0.0
      %2735 = vmatprep.subr.mxu0 0.0
      %2736 = vmatpush1.msra.mxu0 0.0
      %2737 = vmatprep.subr.mxu0 0.0
      %2738 = vmatpush1.msra.mxu0 0.0
      %2739 = vmatprep.subr.mxu0 0.0
      %2740 = vmatpush1.msra.mxu0 0.0
      %2741 = vmatprep.subr.mxu0 0.0
      %2742 = vmatpush1.msra.mxu0 0.0
      %2743 = vmatprep.subr.mxu0 0.0
      %2744 = vmatpush1.msra.mxu0 0.0
      %2745 = vmatprep.subr.mxu0 0.0
      %2746 = vmatpush1.msra.mxu0 0.0
      %2747 = vmatprep.subr.mxu0 0.0
      %2748 = vmatpush1.msra.mxu0 0.0
      %2749 = vmatprep.subr.mxu0 0.0
      %2750 = vmatpush1.msra.mxu0 0.0
      %2751 = vmatprep.subr.mxu0 0.0
      %2752 = vmatpush1.msra.mxu0 0.0
      %2753 = vmatprep.subr.mxu0 0.0
      %2754 = vmatpush1.msra.mxu0 0.0
      %2755 = vmatprep.subr.mxu0 0.0
      %2756 = vmatpush1.msra.mxu0 0.0
      %2757 = vmatprep.subr.mxu0 0.0
      %2758 = vmatpush1.msra.mxu0 0.0
      %2759 = vmatprep.subr.mxu0 0.0
      %2760 = vmatpush1.msra.mxu0 0.0
      %2761 = vmatprep.subr.mxu0 0.0
      %2762 = vmatpush1.msra.mxu0 0.0
      %2763 = vmatprep.subr.mxu0 0.0
      %2764 = vmatpush1.msra.mxu0 0.0
      %2765 = vmatprep.subr.mxu0 0.0
      %2766 = vmatpush1.msra.mxu0 0.0
      %2767 = vmatprep.subr.mxu0 0.0
      %2768 = vmatpush1.msra.mxu0 0.0
      %2769 = vmatprep.mubr.f32.mxu0 0.0
      %2770 = vmatmul.mubr.f32.gmra.mrb[0].mxu0 %v2682
      %v2771 = vpop.f32.mrb[0].mxu0
      %v2772 = vadd.f32 0.0, %v2771
      %v2773 = vpop.f32.mrb[0].mxu0
      %2774 = vmatprep.mubr.f32.mxu0 0.0
      %2775 = vmatmul.mubr.f32.gmra.mrb[0].mxu0 %v2685
      %v2776 = vpop.f32.mrb[0].mxu0
      %v2777 = vadd.f32 0.0, %v2776
      %v2778 = vpop.f32.mrb[0].mxu0
      %2779 = vmatprep.mubr.f32.mxu0 0.0
      %2780 = vmatmul.mubr.f32.gmra.mrb[0].mxu0 %v2688
      %v2781 = vpop.f32.mrb[0].mxu0
      %v2782 = vadd.f32 0.0, %v2781
      %v2783 = vpop.f32.mrb[0].mxu0
      %2784 = vmatprep.mubr.f32.mxu0 0.0
      %2785 = vmatmul.mubr.f32.gmra.mrb[0].mxu0 %v2691
      %v2786 = vpop.f32.mrb[0].mxu0
      %v2787 = vadd.f32 0.0, %v2786
      %v2788 = vpop.f32.mrb[0].mxu0
      %2789 = vmatprep.mubr.f32.mxu0 0.0
      %2790 = vmatmul.mubr.f32.gmra.mrb[0].mxu0 %v2694
      %v2791 = vpop.f32.mrb[0].mxu0
      %v2792 = vadd.f32 0.0, %v2791
      %v2793 = vpop.f32.mrb[0].mxu0
      %2794 = vmatprep.mubr.f32.mxu0 0.0
      %2795 = vmatmul.mubr.f32.gmra.mrb[0].mxu0 %v2697
      %v2796 = vpop.f32.mrb[0].mxu0
      %v2797 = vadd.f32 0.0, %v2796
      %v2798 = vpop.f32.mrb[0].mxu0
      %2799 = vmatprep.mubr.f32.mxu0 0.0
      %2800 = vmatmul.mubr.f32.gmra.mrb[0].mxu0 %v2700
      %v2801 = vpop.f32.mrb[0].mxu0
      %v2802 = vadd.f32 0.0, %v2801
      %v2803 = vpop.f32.mrb[0].mxu0
      %2804 = vmatprep.mubr.f32.mxu0 0.0
      %2805 = vmatmul.mubr.f32.gmra.mrb[0].mxu0 %v2703
      %v2806 = vpop.f32.mrb[0].mxu0
      %v2807 = vadd.f32 0.0, %v2806
      %v2808 = vpop.f32.mrb[0].mxu0
      %2809 = vdwg.mxu0
      %v2810 = vadd.f32 %v2660, %v2772
      %v2811 = vadd.f32 %v2661, %v2777
      %v2812 = vadd.f32 %v2662, %v2782
      %v2813 = vadd.f32 %v2663, %v2787
      %v2814 = vadd.f32 %v2664, %v2792
      %v2815 = vadd.f32 %v2665, %v2797
      %v2816 = vadd.f32 %v2666, %v2802
      %v2817 = vadd.f32 %v2667, %v2807
      %v2818 = vld [vmem:[#allocation2 + $0x11] sm:$0xff]
      %v2819 = vld [vmem:[#allocation2 + $0x19] sm:$0xff]
      %v2820 = vld [vmem:[#allocation2 + $0x21] sm:$0xff]
      %v2821 = vld [vmem:[#allocation2 + $0x29] sm:$0xff]
      %v2822 = vld [vmem:[#allocation2 + $0x31] sm:$0xff]
      %v2823 = vld [vmem:[#allocation2 + $0x39] sm:$0xff]
      %v2824 = vld [vmem:[#allocation2 + $0x41] sm:$0xff]
      %v2825 = vld [vmem:[#allocation2 + $0x49] sm:$0xff]
      %v2826 = vmul.f32 %v2818, %v911
      %v2827 = vmul.f32 %v2819, %v916
      %v2828 = vmul.f32 %v2820, %v921
      %v2829 = vmul.f32 %v2821, %v926
      %v2830 = vmul.f32 %v2822, %v931
      %v2831 = vmul.f32 %v2823, %v936
      %v2832 = vmul.f32 %v2824, %v941
      %v2833 = vmul.f32 %v2825, %v946
      %s2834 = scalar_lea.vmem %s7, 160
      %v2835 = vld [vmem:[%s2834] sm:$0xff]
      %v2836 = vld [vmem:[%s2834 + $0x8] sm:$0xff]
      %v2837 = vld [vmem:[%s2834 + $0x10] sm:$0xff]
      %v2838 = vld [vmem:[%s2834 + $0x18] sm:$0xff]
      %v2840 = vsel %vm386, %v2826, 0
      %v2843 = vsel %vm386, %v2827, 0
      %v2846 = vsel %vm386, %v2828, 0
      %v2849 = vsel %vm386, %v2829, 0
      %v2852 = vsel %vm386, %v2830, 0
      %v2855 = vsel %vm386, %v2831, 0
      %v2858 = vsel %vm386, %v2832, 0
      %v2861 = vsel %vm386, %v2833, 0
      %2863 = vmatprep.subr.mxu0 0.0
      %2864 = vmatpush1.msra.mxu0 %v2835
      %2865 = vmatprep.subr.mxu0 0.0
      %2866 = vmatpush1.msra.mxu0 %v2836
      %2867 = vmatprep.subr.mxu0 0.0
      %2868 = vmatpush1.msra.mxu0 %v2837
      %2869 = vmatprep.subr.mxu0 0.0
      %2870 = vmatpush1.msra.mxu0 %v2838
      %2871 = vmatprep.subr.mxu0 0.0
      %2872 = vmatpush1.msra.mxu0 0.0
      %2873 = vmatprep.subr.mxu0 0.0
      %2874 = vmatpush1.msra.mxu0 0.0
      %2875 = vmatprep.subr.mxu0 0.0
      %2876 = vmatpush1.msra.mxu0 0.0
      %2877 = vmatprep.subr.mxu0 0.0
      %2878 = vmatpush1.msra.mxu0 0.0
      %2879 = vmatprep.subr.mxu0 0.0
      %2880 = vmatpush1.msra.mxu0 0.0
      %2881 = vmatprep.subr.mxu0 0.0
      %2882 = vmatpush1.msra.mxu0 0.0
      %2883 = vmatprep.subr.mxu0 0.0
      %2884 = vmatpush1.msra.mxu0 0.0
      %2885 = vmatprep.subr.mxu0 0.0
      %2886 = vmatpush1.msra.mxu0 0.0
      %2887 = vmatprep.subr.mxu0 0.0
      %2888 = vmatpush1.msra.mxu0 0.0
      %2889 = vmatprep.subr.mxu0 0.0
      %2890 = vmatpush1.msra.mxu0 0.0
      %2891 = vmatprep.subr.mxu0 0.0
      %2892 = vmatpush1.msra.mxu0 0.0
      %2893 = vmatprep.subr.mxu0 0.0
      %2894 = vmatpush1.msra.mxu0 0.0
      %2895 = vmatprep.subr.mxu0 0.0
      %2896 = vmatpush1.msra.mxu0 0.0
      %2897 = vmatprep.subr.mxu0 0.0
      %2898 = vmatpush1.msra.mxu0 0.0
      %2899 = vmatprep.subr.mxu0 0.0
      %2900 = vmatpush1.msra.mxu0 0.0
      %2901 = vmatprep.subr.mxu0 0.0
      %2902 = vmatpush1.msra.mxu0 0.0
      %2903 = vmatprep.subr.mxu0 0.0
      %2904 = vmatpush1.msra.mxu0 0.0
      %2905 = vmatprep.subr.mxu0 0.0
      %2906 = vmatpush1.msra.mxu0 0.0
      %2907 = vmatprep.subr.mxu0 0.0
      %2908 = vmatpush1.msra.mxu0 0.0
      %2909 = vmatprep.subr.mxu0 0.0
      %2910 = vmatpush1.msra.mxu0 0.0
      %2911 = vmatprep.subr.mxu0 0.0
      %2912 = vmatpush1.msra.mxu0 0.0
      %2913 = vmatprep.subr.mxu0 0.0
      %2914 = vmatpush1.msra.mxu0 0.0
      %2915 = vmatprep.subr.mxu0 0.0
      %2916 = vmatpush1.msra.mxu0 0.0
      %2917 = vmatprep.subr.mxu0 0.0
      %2918 = vmatpush1.msra.mxu0 0.0
      %2919 = vmatprep.subr.mxu0 0.0
      %2920 = vmatpush1.msra.mxu0 0.0
      %2921 = vmatprep.subr.mxu0 0.0
      %2922 = vmatpush1.msra.mxu0 0.0
      %2923 = vmatprep.subr.mxu0 0.0
      %2924 = vmatpush1.msra.mxu0 0.0
      %2925 = vmatprep.subr.mxu0 0.0
      %2926 = vmatpush1.msra.mxu0 0.0
      %2927 = vmatprep.mubr.f32.mxu0 0.0
      %2928 = vmatmul.mubr.f32.gmra.mrb[0].mxu0 %v2840
      %v2929 = vpop.f32.mrb[0].mxu0
      %v2930 = vadd.f32 0.0, %v2929
      %v2931 = vpop.f32.mrb[0].mxu0
      %2932 = vmatprep.mubr.f32.mxu0 0.0
      %2933 = vmatmul.mubr.f32.gmra.mrb[0].mxu0 %v2843
      %v2934 = vpop.f32.mrb[0].mxu0
      %v2935 = vadd.f32 0.0, %v2934
      %v2936 = vpop.f32.mrb[0].mxu0
      %2937 = vmatprep.mubr.f32.mxu0 0.0
      %2938 = vmatmul.mubr.f32.gmra.mrb[0].mxu0 %v2846
      %v2939 = vpop.f32.mrb[0].mxu0
      %v2940 = vadd.f32 0.0, %v2939
      %v2941 = vpop.f32.mrb[0].mxu0
      %2942 = vmatprep.mubr.f32.mxu0 0.0
      %2943 = vmatmul.mubr.f32.gmra.mrb[0].mxu0 %v2849
      %v2944 = vpop.f32.mrb[0].mxu0
      %v2945 = vadd.f32 0.0, %v2944
      %v2946 = vpop.f32.mrb[0].mxu0
      %2947 = vmatprep.mubr.f32.mxu0 0.0
      %2948 = vmatmul.mubr.f32.gmra.mrb[0].mxu0 %v2852
      %v2949 = vpop.f32.mrb[0].mxu0
      %v2950 = vadd.f32 0.0, %v2949
      %v2951 = vpop.f32.mrb[0].mxu0
      %2952 = vmatprep.mubr.f32.mxu0 0.0
      %2953 = vmatmul.mubr.f32.gmra.mrb[0].mxu0 %v2855
      %v2954 = vpop.f32.mrb[0].mxu0
      %v2955 = vadd.f32 0.0, %v2954
      %v2956 = vpop.f32.mrb[0].mxu0
      %2957 = vmatprep.mubr.f32.mxu0 0.0
      %2958 = vmatmul.mubr.f32.gmra.mrb[0].mxu0 %v2858
      %v2959 = vpop.f32.mrb[0].mxu0
      %v2960 = vadd.f32 0.0, %v2959
      %v2961 = vpop.f32.mrb[0].mxu0
      %2962 = vmatprep.mubr.f32.mxu0 0.0
      %2963 = vmatmul.mubr.f32.gmra.mrb[0].mxu0 %v2861
      %v2964 = vpop.f32.mrb[0].mxu0
      %v2965 = vadd.f32 0.0, %v2964
      %v2966 = vpop.f32.mrb[0].mxu0
      %2967 = vdwg.mxu0
      %v2968 = vadd.f32 %v2810, %v2930
      %v2969 = vadd.f32 %v2811, %v2935
      %v2970 = vadd.f32 %v2812, %v2940
      %v2971 = vadd.f32 %v2813, %v2945
      %v2972 = vadd.f32 %v2814, %v2950
      %v2973 = vadd.f32 %v2815, %v2955
      %v2974 = vadd.f32 %v2816, %v2960
      %v2975 = vadd.f32 %v2817, %v2965
      %v2976 = vld [vmem:[#allocation2 + $0x17] sm:$0xff]
      %v2977 = vld [vmem:[#allocation2 + $0x1f] sm:$0xff]
      %v2978 = vld [vmem:[#allocation2 + $0x27] sm:$0xff]
      %v2979 = vld [vmem:[#allocation2 + $0x2f] sm:$0xff]
      %v2980 = vld [vmem:[#allocation2 + $0x37] sm:$0xff]
      %v2981 = vld [vmem:[#allocation2 + $0x3f] sm:$0xff]
      %v2982 = vld [vmem:[#allocation2 + $0x47] sm:$0xff]
      %v2983 = vld [vmem:[#allocation2 + $0x4f] sm:$0xff]
      %v2984 = vmul.f32 %v2976, %v580
      %v2985 = vmul.f32 %v2977, %v585
      %v2986 = vmul.f32 %v2978, %v590
      %v2987 = vmul.f32 %v2979, %v595
      %v2988 = vmul.f32 %v2980, %v600
      %v2989 = vmul.f32 %v2981, %v605
      %v2990 = vmul.f32 %v2982, %v610
      %v2991 = vmul.f32 %v2983, %v615
      %s2992 = scalar_lea.vmem %s7, 192
      %v2993 = vld [vmem:[%s2992] sm:$0xff]
      %v2994 = vld [vmem:[%s2992 + $0x8] sm:$0xff]
      %v2995 = vld [vmem:[%s2992 + $0x10] sm:$0xff]
      %v2996 = vld [vmem:[%s2992 + $0x18] sm:$0xff]
      %v2998 = vsel %vm386, %v2984, 0
      %v3001 = vsel %vm386, %v2985, 0
      %v3004 = vsel %vm386, %v2986, 0
      %v3007 = vsel %vm386, %v2987, 0
      %v3010 = vsel %vm386, %v2988, 0
      %v3013 = vsel %vm386, %v2989, 0
      %v3016 = vsel %vm386, %v2990, 0
      %v3019 = vsel %vm386, %v2991, 0
      %3021 = vmatprep.subr.mxu0 0.0
      %3022 = vmatpush1.msra.mxu0 %v2993
      %3023 = vmatprep.subr.mxu0 0.0
      %3024 = vmatpush1.msra.mxu0 %v2994
      %3025 = vmatprep.subr.mxu0 0.0
      %3026 = vmatpush1.msra.mxu0 %v2995
      %3027 = vmatprep.subr.mxu0 0.0
      %3028 = vmatpush1.msra.mxu0 %v2996
      %3029 = vmatprep.subr.mxu0 0.0
      %3030 = vmatpush1.msra.mxu0 0.0
      %3031 = vmatprep.subr.mxu0 0.0
      %3032 = vmatpush1.msra.mxu0 0.0
      %3033 = vmatprep.subr.mxu0 0.0
      %3034 = vmatpush1.msra.mxu0 0.0
      %3035 = vmatprep.subr.mxu0 0.0
      %3036 = vmatpush1.msra.mxu0 0.0
      %3037 = vmatprep.subr.mxu0 0.0
      %3038 = vmatpush1.msra.mxu0 0.0
      %3039 = vmatprep.subr.mxu0 0.0
      %3040 = vmatpush1.msra.mxu0 0.0
      %3041 = vmatprep.subr.mxu0 0.0
      %3042 = vmatpush1.msra.mxu0 0.0
      %3043 = vmatprep.subr.mxu0 0.0
      %3044 = vmatpush1.msra.mxu0 0.0
      %3045 = vmatprep.subr.mxu0 0.0
      %3046 = vmatpush1.msra.mxu0 0.0
      %3047 = vmatprep.subr.mxu0 0.0
      %3048 = vmatpush1.msra.mxu0 0.0
      %3049 = vmatprep.subr.mxu0 0.0
      %3050 = vmatpush1.msra.mxu0 0.0
      %3051 = vmatprep.subr.mxu0 0.0
      %3052 = vmatpush1.msra.mxu0 0.0
      %3053 = vmatprep.subr.mxu0 0.0
      %3054 = vmatpush1.msra.mxu0 0.0
      %3055 = vmatprep.subr.mxu0 0.0
      %3056 = vmatpush1.msra.mxu0 0.0
      %3057 = vmatprep.subr.mxu0 0.0
      %3058 = vmatpush1.msra.mxu0 0.0
      %3059 = vmatprep.subr.mxu0 0.0
      %3060 = vmatpush1.msra.mxu0 0.0
      %3061 = vmatprep.subr.mxu0 0.0
      %3062 = vmatpush1.msra.mxu0 0.0
      %3063 = vmatprep.subr.mxu0 0.0
      %3064 = vmatpush1.msra.mxu0 0.0
      %3065 = vmatprep.subr.mxu0 0.0
      %3066 = vmatpush1.msra.mxu0 0.0
      %3067 = vmatprep.subr.mxu0 0.0
      %3068 = vmatpush1.msra.mxu0 0.0
      %3069 = vmatprep.subr.mxu0 0.0
      %3070 = vmatpush1.msra.mxu0 0.0
      %3071 = vmatprep.subr.mxu0 0.0
      %3072 = vmatpush1.msra.mxu0 0.0
      %3073 = vmatprep.subr.mxu0 0.0
      %3074 = vmatpush1.msra.mxu0 0.0
      %3075 = vmatprep.subr.mxu0 0.0
      %3076 = vmatpush1.msra.mxu0 0.0
      %3077 = vmatprep.subr.mxu0 0.0
      %3078 = vmatpush1.msra.mxu0 0.0
      %3079 = vmatprep.subr.mxu0 0.0
      %3080 = vmatpush1.msra.mxu0 0.0
      %3081 = vmatprep.subr.mxu0 0.0
      %3082 = vmatpush1.msra.mxu0 0.0
      %3083 = vmatprep.subr.mxu0 0.0
      %3084 = vmatpush1.msra.mxu0 0.0
      %3085 = vmatprep.mubr.f32.mxu0 0.0
      %3086 = vmatmul.mubr.f32.gmra.mrb[0].mxu0 %v2998
      %v3087 = vpop.f32.mrb[0].mxu0
      %v3088 = vadd.f32 0.0, %v3087
      %v3089 = vpop.f32.mrb[0].mxu0
      %3090 = vmatprep.mubr.f32.mxu0 0.0
      %3091 = vmatmul.mubr.f32.gmra.mrb[0].mxu0 %v3001
      %v3092 = vpop.f32.mrb[0].mxu0
      %v3093 = vadd.f32 0.0, %v3092
      %v3094 = vpop.f32.mrb[0].mxu0
      %3095 = vmatprep.mubr.f32.mxu0 0.0
      %3096 = vmatmul.mubr.f32.gmra.mrb[0].mxu0 %v3004
      %v3097 = vpop.f32.mrb[0].mxu0
      %v3098 = vadd.f32 0.0, %v3097
      %v3099 = vpop.f32.mrb[0].mxu0
      %3100 = vmatprep.mubr.f32.mxu0 0.0
      %3101 = vmatmul.mubr.f32.gmra.mrb[0].mxu0 %v3007
      %v3102 = vpop.f32.mrb[0].mxu0
      %v3103 = vadd.f32 0.0, %v3102
      %v3104 = vpop.f32.mrb[0].mxu0
      %3105 = vmatprep.mubr.f32.mxu0 0.0
      %3106 = vmatmul.mubr.f32.gmra.mrb[0].mxu0 %v3010
      %v3107 = vpop.f32.mrb[0].mxu0
      %v3108 = vadd.f32 0.0, %v3107
      %v3109 = vpop.f32.mrb[0].mxu0
      %3110 = vmatprep.mubr.f32.mxu0 0.0
      %3111 = vmatmul.mubr.f32.gmra.mrb[0].mxu0 %v3013
      %v3112 = vpop.f32.mrb[0].mxu0
      %v3113 = vadd.f32 0.0, %v3112
      %v3114 = vpop.f32.mrb[0].mxu0
      %3115 = vmatprep.mubr.f32.mxu0 0.0
      %3116 = vmatmul.mubr.f32.gmra.mrb[0].mxu0 %v3016
      %v3117 = vpop.f32.mrb[0].mxu0
      %v3118 = vadd.f32 0.0, %v3117
      %v3119 = vpop.f32.mrb[0].mxu0
      %3120 = vmatprep.mubr.f32.mxu0 0.0
      %3121 = vmatmul.mubr.f32.gmra.mrb[0].mxu0 %v3019
      %v3122 = vpop.f32.mrb[0].mxu0
      %v3123 = vadd.f32 0.0, %v3122
      %v3124 = vpop.f32.mrb[0].mxu0
      %3125 = vdwg.mxu0
      %v3126 = vadd.f32 %v2968, %v3088
      %v3127 = vadd.f32 %v2969, %v3093
      %v3128 = vadd.f32 %v2970, %v3098
      %v3129 = vadd.f32 %v2971, %v3103
      %v3130 = vadd.f32 %v2972, %v3108
      %v3131 = vadd.f32 %v2973, %v3113
      %v3132 = vadd.f32 %v2974, %v3118
      %v3133 = vadd.f32 %v2975, %v3123
      %v3134 = vld [vmem:[#allocation2 + $0x18] sm:$0xff]
      %v3135 = vld [vmem:[#allocation2 + $0x20] sm:$0xff]
      %v3136 = vld [vmem:[#allocation2 + $0x28] sm:$0xff]
      %v3137 = vld [vmem:[#allocation2 + $0x30] sm:$0xff]
      %v3138 = vld [vmem:[#allocation2 + $0x38] sm:$0xff]
      %v3139 = vld [vmem:[#allocation2 + $0x40] sm:$0xff]
      %v3140 = vld [vmem:[#allocation2 + $0x48] sm:$0xff]
      %v3141 = vld [vmem:[#allocation2 + $0x50] sm:$0xff]
      %s3142 = scalar_lea.vmem %s7, 224
      %v3143 = vld [vmem:[%s3142] sm:$0xff]
      %v3144 = vld [vmem:[%s3142 + $0x8] sm:$0xff]
      %v3145 = vld [vmem:[%s3142 + $0x10] sm:$0xff]
      %v3146 = vld [vmem:[%s3142 + $0x18] sm:$0xff]
      %v3148 = vsel %vm386, %v3134, 0
      %v3151 = vsel %vm386, %v3135, 0
      %v3154 = vsel %vm386, %v3136, 0
      %v3157 = vsel %vm386, %v3137, 0
      %v3160 = vsel %vm386, %v3138, 0
      %v3163 = vsel %vm386, %v3139, 0
      %v3166 = vsel %vm386, %v3140, 0
      %v3169 = vsel %vm386, %v3141, 0
      %3171 = vmatprep.subr.mxu0 0.0
      %3172 = vmatpush1.msra.mxu0 %v3143
      %3173 = vmatprep.subr.mxu0 0.0
      %3174 = vmatpush1.msra.mxu0 %v3144
      %3175 = vmatprep.subr.mxu0 0.0
      %3176 = vmatpush1.msra.mxu0 %v3145
      %3177 = vmatprep.subr.mxu0 0.0
      %3178 = vmatpush1.msra.mxu0 %v3146
      %3179 = vmatprep.subr.mxu0 0.0
      %3180 = vmatpush1.msra.mxu0 0.0
      %3181 = vmatprep.subr.mxu0 0.0
      %3182 = vmatpush1.msra.mxu0 0.0
      %3183 = vmatprep.subr.mxu0 0.0
      %3184 = vmatpush1.msra.mxu0 0.0
      %3185 = vmatprep.subr.mxu0 0.0
      %3186 = vmatpush1.msra.mxu0 0.0
      %3187 = vmatprep.subr.mxu0 0.0
      %3188 = vmatpush1.msra.mxu0 0.0
      %3189 = vmatprep.subr.mxu0 0.0
      %3190 = vmatpush1.msra.mxu0 0.0
      %3191 = vmatprep.subr.mxu0 0.0
      %3192 = vmatpush1.msra.mxu0 0.0
      %3193 = vmatprep.subr.mxu0 0.0
      %3194 = vmatpush1.msra.mxu0 0.0
      %3195 = vmatprep.subr.mxu0 0.0
      %3196 = vmatpush1.msra.mxu0 0.0
      %3197 = vmatprep.subr.mxu0 0.0
      %3198 = vmatpush1.msra.mxu0 0.0
      %3199 = vmatprep.subr.mxu0 0.0
      %3200 = vmatpush1.msra.mxu0 0.0
      %3201 = vmatprep.subr.mxu0 0.0
      %3202 = vmatpush1.msra.mxu0 0.0
      %3203 = vmatprep.subr.mxu0 0.0
      %3204 = vmatpush1.msra.mxu0 0.0
      %3205 = vmatprep.subr.mxu0 0.0
      %3206 = vmatpush1.msra.mxu0 0.0
      %3207 = vmatprep.subr.mxu0 0.0
      %3208 = vmatpush1.msra.mxu0 0.0
      %3209 = vmatprep.subr.mxu0 0.0
      %3210 = vmatpush1.msra.mxu0 0.0
      %3211 = vmatprep.subr.mxu0 0.0
      %3212 = vmatpush1.msra.mxu0 0.0
      %3213 = vmatprep.subr.mxu0 0.0
      %3214 = vmatpush1.msra.mxu0 0.0
      %3215 = vmatprep.subr.mxu0 0.0
      %3216 = vmatpush1.msra.mxu0 0.0
      %3217 = vmatprep.subr.mxu0 0.0
      %3218 = vmatpush1.msra.mxu0 0.0
      %3219 = vmatprep.subr.mxu0 0.0
      %3220 = vmatpush1.msra.mxu0 0.0
      %3221 = vmatprep.subr.mxu0 0.0
      %3222 = vmatpush1.msra.mxu0 0.0
      %3223 = vmatprep.subr.mxu0 0.0
      %3224 = vmatpush1.msra.mxu0 0.0
      %3225 = vmatprep.subr.mxu0 0.0
      %3226 = vmatpush1.msra.mxu0 0.0
      %3227 = vmatprep.subr.mxu0 0.0
      %3228 = vmatpush1.msra.mxu0 0.0
      %3229 = vmatprep.subr.mxu0 0.0
      %3230 = vmatpush1.msra.mxu0 0.0
      %3231 = vmatprep.subr.mxu0 0.0
      %3232 = vmatpush1.msra.mxu0 0.0
      %3233 = vmatprep.subr.mxu0 0.0
      %3234 = vmatpush1.msra.mxu0 0.0
      %3235 = vmatprep.mubr.f32.mxu0 0.0
      %3236 = vmatmul.mubr.f32.gmra.mrb[0].mxu0 %v3148
      %v3237 = vpop.f32.mrb[0].mxu0
      %v3238 = vadd.f32 0.0, %v3237
      %v3239 = vpop.f32.mrb[0].mxu0
      %3240 = vmatprep.mubr.f32.mxu0 0.0
      %3241 = vmatmul.mubr.f32.gmra.mrb[0].mxu0 %v3151
      %v3242 = vpop.f32.mrb[0].mxu0
      %v3243 = vadd.f32 0.0, %v3242
      %v3244 = vpop.f32.mrb[0].mxu0
      %3245 = vmatprep.mubr.f32.mxu0 0.0
      %3246 = vmatmul.mubr.f32.gmra.mrb[0].mxu0 %v3154
      %v3247 = vpop.f32.mrb[0].mxu0
      %v3248 = vadd.f32 0.0, %v3247
      %v3249 = vpop.f32.mrb[0].mxu0
      %3250 = vmatprep.mubr.f32.mxu0 0.0
      %3251 = vmatmul.mubr.f32.gmra.mrb[0].mxu0 %v3157
      %v3252 = vpop.f32.mrb[0].mxu0
      %v3253 = vadd.f32 0.0, %v3252
      %v3254 = vpop.f32.mrb[0].mxu0
      %3255 = vmatprep.mubr.f32.mxu0 0.0
      %3256 = vmatmul.mubr.f32.gmra.mrb[0].mxu0 %v3160
      %v3257 = vpop.f32.mrb[0].mxu0
      %v3258 = vadd.f32 0.0, %v3257
      %v3259 = vpop.f32.mrb[0].mxu0
      %3260 = vmatprep.mubr.f32.mxu0 0.0
      %3261 = vmatmul.mubr.f32.gmra.mrb[0].mxu0 %v3163
      %v3262 = vpop.f32.mrb[0].mxu0
      %v3263 = vadd.f32 0.0, %v3262
      %v3264 = vpop.f32.mrb[0].mxu0
      %3265 = vmatprep.mubr.f32.mxu0 0.0
      %3266 = vmatmul.mubr.f32.gmra.mrb[0].mxu0 %v3166
      %v3267 = vpop.f32.mrb[0].mxu0
      %v3268 = vadd.f32 0.0, %v3267
      %v3269 = vpop.f32.mrb[0].mxu0
      %3270 = vmatprep.mubr.f32.mxu0 0.0
      %3271 = vmatmul.mubr.f32.gmra.mrb[0].mxu0 %v3169
      %v3272 = vpop.f32.mrb[0].mxu0
      %v3273 = vadd.f32 0.0, %v3272
      %v3274 = vpop.f32.mrb[0].mxu0
      %3275 = vdwg.mxu0
      %v3276 = vadd.f32 %v3126, %v3238
      %v3277 = vadd.f32 %v3127, %v3243
      %v3278 = vadd.f32 %v3128, %v3248
      %v3279 = vadd.f32 %v3129, %v3253
      %v3280 = vadd.f32 %v3130, %v3258
      %v3281 = vadd.f32 %v3131, %v3263
      %v3282 = vadd.f32 %v3132, %v3268
      %v3283 = vadd.f32 %v3133, %v3273
      %v3284 = vld [vmem:[#allocation2 + $0x19] sm:$0xff]
      %v3285 = vld [vmem:[#allocation2 + $0x21] sm:$0xff]
      %v3286 = vld [vmem:[#allocation2 + $0x29] sm:$0xff]
      %v3287 = vld [vmem:[#allocation2 + $0x31] sm:$0xff]
      %v3288 = vld [vmem:[#allocation2 + $0x39] sm:$0xff]
      %v3289 = vld [vmem:[#allocation2 + $0x41] sm:$0xff]
      %v3290 = vld [vmem:[#allocation2 + $0x49] sm:$0xff]
      %v3291 = vld [vmem:[#allocation2 + $0x51] sm:$0xff]
      %v3292 = vmul.f32 %v3284, %v911
      %v3293 = vmul.f32 %v3285, %v916
      %v3294 = vmul.f32 %v3286, %v921
      %v3295 = vmul.f32 %v3287, %v926
      %v3296 = vmul.f32 %v3288, %v931
      %v3297 = vmul.f32 %v3289, %v936
      %v3298 = vmul.f32 %v3290, %v941
      %v3299 = vmul.f32 %v3291, %v946
      %s3300 = scalar_lea.vmem %s7, 256
      %v3301 = vld [vmem:[%s3300] sm:$0xff]
      %v3302 = vld [vmem:[%s3300 + $0x8] sm:$0xff]
      %v3303 = vld [vmem:[%s3300 + $0x10] sm:$0xff]
      %v3304 = vld [vmem:[%s3300 + $0x18] sm:$0xff]
      %v3306 = vsel %vm386, %v3292, 0
      %v3309 = vsel %vm386, %v3293, 0
      %v3312 = vsel %vm386, %v3294, 0
      %v3315 = vsel %vm386, %v3295, 0
      %v3318 = vsel %vm386, %v3296, 0
      %v3321 = vsel %vm386, %v3297, 0
      %v3324 = vsel %vm386, %v3298, 0
      %v3327 = vsel %vm386, %v3299, 0
      %3329 = vmatprep.subr.mxu0 0.0
      %3330 = vmatpush1.msra.mxu0 %v3301
      %3331 = vmatprep.subr.mxu0 0.0
      %3332 = vmatpush1.msra.mxu0 %v3302
      %3333 = vmatprep.subr.mxu0 0.0
      %3334 = vmatpush1.msra.mxu0 %v3303
      %3335 = vmatprep.subr.mxu0 0.0
      %3336 = vmatpush1.msra.mxu0 %v3304
      %3337 = vmatprep.subr.mxu0 0.0
      %3338 = vmatpush1.msra.mxu0 0.0
      %3339 = vmatprep.subr.mxu0 0.0
      %3340 = vmatpush1.msra.mxu0 0.0
      %3341 = vmatprep.subr.mxu0 0.0
      %3342 = vmatpush1.msra.mxu0 0.0
      %3343 = vmatprep.subr.mxu0 0.0
      %3344 = vmatpush1.msra.mxu0 0.0
      %3345 = vmatprep.subr.mxu0 0.0
      %3346 = vmatpush1.msra.mxu0 0.0
      %3347 = vmatprep.subr.mxu0 0.0
      %3348 = vmatpush1.msra.mxu0 0.0
      %3349 = vmatprep.subr.mxu0 0.0
      %3350 = vmatpush1.msra.mxu0 0.0
      %3351 = vmatprep.subr.mxu0 0.0
      %3352 = vmatpush1.msra.mxu0 0.0
      %3353 = vmatprep.subr.mxu0 0.0
      %3354 = vmatpush1.msra.mxu0 0.0
      %3355 = vmatprep.subr.mxu0 0.0
      %3356 = vmatpush1.msra.mxu0 0.0
      %3357 = vmatprep.subr.mxu0 0.0
      %3358 = vmatpush1.msra.mxu0 0.0
      %3359 = vmatprep.subr.mxu0 0.0
      %3360 = vmatpush1.msra.mxu0 0.0
      %3361 = vmatprep.subr.mxu0 0.0
      %3362 = vmatpush1.msra.mxu0 0.0
      %3363 = vmatprep.subr.mxu0 0.0
      %3364 = vmatpush1.msra.mxu0 0.0
      %3365 = vmatprep.subr.mxu0 0.0
      %3366 = vmatpush1.msra.mxu0 0.0
      %3367 = vmatprep.subr.mxu0 0.0
      %3368 = vmatpush1.msra.mxu0 0.0
      %3369 = vmatprep.subr.mxu0 0.0
      %3370 = vmatpush1.msra.mxu0 0.0
      %3371 = vmatprep.subr.mxu0 0.0
      %3372 = vmatpush1.msra.mxu0 0.0
      %3373 = vmatprep.subr.mxu0 0.0
      %3374 = vmatpush1.msra.mxu0 0.0
      %3375 = vmatprep.subr.mxu0 0.0
      %3376 = vmatpush1.msra.mxu0 0.0
      %3377 = vmatprep.subr.mxu0 0.0
      %3378 = vmatpush1.msra.mxu0 0.0
      %3379 = vmatprep.subr.mxu0 0.0
      %3380 = vmatpush1.msra.mxu0 0.0
      %3381 = vmatprep.subr.mxu0 0.0
      %3382 = vmatpush1.msra.mxu0 0.0
      %3383 = vmatprep.subr.mxu0 0.0
      %3384 = vmatpush1.msra.mxu0 0.0
      %3385 = vmatprep.subr.mxu0 0.0
      %3386 = vmatpush1.msra.mxu0 0.0
      %3387 = vmatprep.subr.mxu0 0.0
      %3388 = vmatpush1.msra.mxu0 0.0
      %3389 = vmatprep.subr.mxu0 0.0
      %3390 = vmatpush1.msra.mxu0 0.0
      %3391 = vmatprep.subr.mxu0 0.0
      %3392 = vmatpush1.msra.mxu0 0.0
      %3393 = vmatprep.mubr.f32.mxu0 0.0
      %3394 = vmatmul.mubr.f32.gmra.mrb[0].mxu0 %v3306
      %v3395 = vpop.f32.mrb[0].mxu0
      %v3396 = vadd.f32 0.0, %v3395
      %v3397 = vpop.f32.mrb[0].mxu0
      %3398 = vmatprep.mubr.f32.mxu0 0.0
      %3399 = vmatmul.mubr.f32.gmra.mrb[0].mxu0 %v3309
      %v3400 = vpop.f32.mrb[0].mxu0
      %v3401 = vadd.f32 0.0, %v3400
      %v3402 = vpop.f32.mrb[0].mxu0
      %3403 = vmatprep.mubr.f32.mxu0 0.0
      %3404 = vmatmul.mubr.f32.gmra.mrb[0].mxu0 %v3312
      %v3405 = vpop.f32.mrb[0].mxu0
      %v3406 = vadd.f32 0.0, %v3405
      %v3407 = vpop.f32.mrb[0].mxu0
      %3408 = vmatprep.mubr.f32.mxu0 0.0
      %3409 = vmatmul.mubr.f32.gmra.mrb[0].mxu0 %v3315
      %v3410 = vpop.f32.mrb[0].mxu0
      %v3411 = vadd.f32 0.0, %v3410
      %v3412 = vpop.f32.mrb[0].mxu0
      %3413 = vmatprep.mubr.f32.mxu0 0.0
      %3414 = vmatmul.mubr.f32.gmra.mrb[0].mxu0 %v3318
      %v3415 = vpop.f32.mrb[0].mxu0
      %v3416 = vadd.f32 0.0, %v3415
      %v3417 = vpop.f32.mrb[0].mxu0
      %3418 = vmatprep.mubr.f32.mxu0 0.0
      %3419 = vmatmul.mubr.f32.gmra.mrb[0].mxu0 %v3321
      %v3420 = vpop.f32.mrb[0].mxu0
      %v3421 = vadd.f32 0.0, %v3420
      %v3422 = vpop.f32.mrb[0].mxu0
      %3423 = vmatprep.mubr.f32.mxu0 0.0
      %3424 = vmatmul.mubr.f32.gmra.mrb[0].mxu0 %v3324
      %v3425 = vpop.f32.mrb[0].mxu0
      %v3426 = vadd.f32 0.0, %v3425
      %v3427 = vpop.f32.mrb[0].mxu0
      %3428 = vmatprep.mubr.f32.mxu0 0.0
      %3429 = vmatmul.mubr.f32.gmra.mrb[0].mxu0 %v3327
      %v3430 = vpop.f32.mrb[0].mxu0
      %v3431 = vadd.f32 0.0, %v3430
      %v3432 = vpop.f32.mrb[0].mxu0
      %3433 = vdwg.mxu0
      %v3434 = vadd.f32 %v3276, %v3396
      %v3435 = vadd.f32 %v3277, %v3401
      %v3436 = vadd.f32 %v3278, %v3406
      %v3437 = vadd.f32 %v3279, %v3411
      %v3438 = vadd.f32 %v3280, %v3416
      %v3439 = vadd.f32 %v3281, %v3421
      %v3440 = vadd.f32 %v3282, %v3426
      %v3441 = vadd.f32 %v3283, %v3431
      %v3443 = vlaneseq
      %v3444 = vshrl.u32 %v3443, 7
      %v3445 = vsub.s32 0, %v3444
      %v3446 = vrot.slane %v2052, %v3445
      %v3448 = vadd.f32 %v3434, %v3446
      %v3449 = vadd.f32 %v3435, %v3446
      %v3450 = vadd.f32 %v3436, %v3446
      %v3451 = vadd.f32 %v3437, %v3446
      %v3452 = vadd.f32 %v3438, %v3446
      %v3453 = vadd.f32 %v3439, %v3446
      %v3454 = vadd.f32 %v3440, %v3446
      %v3455 = vadd.f32 %v3441, %v3446
      %v3456 = vadd.f32 %v3448, %v552
      %v3457 = vadd.f32 %v3449, %v553
      %v3458 = vadd.f32 %v3450, %v554
      %v3459 = vadd.f32 %v3451, %v555
      %v3460 = vadd.f32 %v3452, %v556
      %v3461 = vadd.f32 %v3453, %v557
      %v3462 = vadd.f32 %v3454, %v558
      %v3463 = vadd.f32 %v3455, %v559
      %v3464 = vmax.f32 %v3456, 0.0
      %v3465 = vmax.f32 %v3457, 0.0
      %v3466 = vmax.f32 %v3458, 0.0
      %v3467 = vmax.f32 %v3459, 0.0
      %v3468 = vmax.f32 %v3460, 0.0
      %v3469 = vmax.f32 %v3461, 0.0
      %v3470 = vmax.f32 %v3462, 0.0
      %v3471 = vmax.f32 %v3463, 0.0
      %vm3472 = vcmask 523264
      %v3474 = vsel %vm3472, 0.015625, 0
      %3476 = vmatprep.subr.mxu0 0.0
      %3477 = vmatpush1.msra.mxu0 %v3464
      %3478 = vmatprep.subr.mxu0 0.0
      %3479 = vmatpush1.msra.mxu0 %v3465
      %3480 = vmatprep.subr.mxu0 0.0
      %3481 = vmatpush1.msra.mxu0 %v3466
      %3482 = vmatprep.subr.mxu0 0.0
      %3483 = vmatpush1.msra.mxu0 %v3467
      %3484 = vmatprep.subr.mxu0 0.0
      %3485 = vmatpush1.msra.mxu0 %v3468
      %3486 = vmatprep.subr.mxu0 0.0
      %3487 = vmatpush1.msra.mxu0 %v3469
      %3488 = vmatprep.subr.mxu0 0.0
      %3489 = vmatpush1.msra.mxu0 %v3470
      %3490 = vmatprep.subr.mxu0 0.0
      %3491 = vmatpush1.msra.mxu0 %v3471
      %3492 = vmatprep.subr.mxu0 0.0
      %3493 = vmatpush1.msra.mxu0 0.0
      %3494 = vmatprep.subr.mxu0 0.0
      %3495 = vmatpush1.msra.mxu0 0.0
      %3496 = vmatprep.subr.mxu0 0.0
      %3497 = vmatpush1.msra.mxu0 0.0
      %3498 = vmatprep.subr.mxu0 0.0
      %3499 = vmatpush1.msra.mxu0 0.0
      %3500 = vmatprep.subr.mxu0 0.0
      %3501 = vmatpush1.msra.mxu0 0.0
      %3502 = vmatprep.subr.mxu0 0.0
      %3503 = vmatpush1.msra.mxu0 0.0
      %3504 = vmatprep.subr.mxu0 0.0
      %3505 = vmatpush1.msra.mxu0 0.0
      %3506 = vmatprep.subr.mxu0 0.0
      %3507 = vmatpush1.msra.mxu0 0.0
      %3508 = vmatprep.subr.mxu0 0.0
      %3509 = vmatpush1.msra.mxu0 0.0
      %3510 = vmatprep.subr.mxu0 0.0
      %3511 = vmatpush1.msra.mxu0 0.0
      %3512 = vmatprep.subr.mxu0 0.0
      %3513 = vmatpush1.msra.mxu0 0.0
      %3514 = vmatprep.subr.mxu0 0.0
      %3515 = vmatpush1.msra.mxu0 0.0
      %3516 = vmatprep.subr.mxu0 0.0
      %3517 = vmatpush1.msra.mxu0 0.0
      %3518 = vmatprep.subr.mxu0 0.0
      %3519 = vmatpush1.msra.mxu0 0.0
      %3520 = vmatprep.subr.mxu0 0.0
      %3521 = vmatpush1.msra.mxu0 0.0
      %3522 = vmatprep.subr.mxu0 0.0
      %3523 = vmatpush1.msra.mxu0 0.0
      %3524 = vmatprep.subr.mxu0 0.0
      %3525 = vmatpush1.msra.mxu0 0.0
      %3526 = vmatprep.subr.mxu0 0.0
      %3527 = vmatpush1.msra.mxu0 0.0
      %3528 = vmatprep.subr.mxu0 0.0
      %3529 = vmatpush1.msra.mxu0 0.0
      %3530 = vmatprep.subr.mxu0 0.0
      %3531 = vmatpush1.msra.mxu0 0.0
      %3532 = vmatprep.subr.mxu0 0.0
      %3533 = vmatpush1.msra.mxu0 0.0
      %3534 = vmatprep.subr.mxu0 0.0
      %3535 = vmatpush1.msra.mxu0 0.0
      %3536 = vmatprep.subr.mxu0 0.0
      %3537 = vmatpush1.msra.mxu0 0.0
      %3538 = vmatprep.subr.mxu0 0.0
      %3539 = vmatpush1.msra.mxu0 0.0
      %3540 = vmatprep.mubr.f32.mxu0 0.0
      %3541 = vmatmul.mubr.f32.gmra.mrb[0].mxu0 %v3474
      %v3542 = vpop.f32.mrb[0].mxu0
      %v3543 = vadd.f32 0.0, %v3542
      %v3544 = vpop.f32.mrb[0].mxu0
      %3545 = vdwg.mxu0
      %v3546 = vld [vmem:[%s9] sm:$0xff]
      %v3547 = vld [vmem:[%s9 + $0x8] sm:$0xff]
      %v3548 = vld [vmem:[%s9 + $0x10] sm:$0xff]
      %v3549 = vld [vmem:[%s9 + $0x18] sm:$0xff]
      %v3550 = vld [vmem:[%s9 + $0x20] sm:$0xff]
      %v3551 = vld [vmem:[%s9 + $0x28] sm:$0xff]
      %v3552 = vld [vmem:[%s9 + $0x30] sm:$0xff]
      %v3553 = vld [vmem:[%s9 + $0x38] sm:$0xff]
      %v3554 = vld [vmem:[%s10] sm:$0x3]
      %v3556 = vlaneseq
      %v3557 = vshrl.u32 %v3556, 7
      %v3558 = vsub.s32 0, %v3557
      %v3559 = vrot.slane %v3554, %v3558
      %v3560 = vlaneseq
      %v3561 = vshrl.u32 %v3560, 7
      %v3562 = vsub.s32 1, %v3561
      %v3563 = vrot.slane %v3554, %v3562
      %v3567 = vsel %vm386, %v3543, 0
      %3569 = vmatprep.subr.mxu0 %v3547
      %3570 = vmatpush1.msra.mxu0 %v3546
      %3571 = vmatprep.subr.mxu0 %v3549
      %3572 = vmatpush1.msra.mxu0 %v3548
      %3573 = vmatprep.subr.mxu0 %v3551
      %3574 = vmatpush1.msra.mxu0 %v3550
      %3575 = vmatprep.subr.mxu0 %v3553
      %3576 = vmatpush1.msra.mxu0 %v3552
      %3577 = vmatprep.subr.mxu0 0.0
      %3578 = vmatpush1.msra.mxu0 0.0
      %3579 = vmatprep.subr.mxu0 0.0
      %3580 = vmatpush1.msra.mxu0 0.0
      %3581 = vmatprep.subr.mxu0 0.0
      %3582 = vmatpush1.msra.mxu0 0.0
      %3583 = vmatprep.subr.mxu0 0.0
      %3584 = vmatpush1.msra.mxu0 0.0
      %3585 = vmatprep.subr.mxu0 0.0
      %3586 = vmatpush1.msra.mxu0 0.0
      %3587 = vmatprep.subr.mxu0 0.0
      %3588 = vmatpush1.msra.mxu0 0.0
      %3589 = vmatprep.subr.mxu0 0.0
      %3590 = vmatpush1.msra.mxu0 0.0
      %3591 = vmatprep.subr.mxu0 0.0
      %3592 = vmatpush1.msra.mxu0 0.0
      %3593 = vmatprep.subr.mxu0 0.0
      %3594 = vmatpush1.msra.mxu0 0.0
      %3595 = vmatprep.subr.mxu0 0.0
      %3596 = vmatpush1.msra.mxu0 0.0
      %3597 = vmatprep.subr.mxu0 0.0
      %3598 = vmatpush1.msra.mxu0 0.0
      %3599 = vmatprep.subr.mxu0 0.0
      %3600 = vmatpush1.msra.mxu0 0.0
      %3601 = vmatprep.subr.mxu0 0.0
      %3602 = vmatpush1.msra.mxu0 0.0
      %3603 = vmatprep.subr.mxu0 0.0
      %3604 = vmatpush1.msra.mxu0 0.0
      %3605 = vmatprep.subr.mxu0 0.0
      %3606 = vmatpush1.msra.mxu0 0.0
      %3607 = vmatprep.subr.mxu0 0.0
      %3608 = vmatpush1.msra.mxu0 0.0
      %3609 = vmatprep.subr.mxu0 0.0
      %3610 = vmatpush1.msra.mxu0 0.0
      %3611 = vmatprep.subr.mxu0 0.0
      %3612 = vmatpush1.msra.mxu0 0.0
      %3613 = vmatprep.subr.mxu0 0.0
      %3614 = vmatpush1.msra.mxu0 0.0
      %3615 = vmatprep.subr.mxu0 0.0
      %3616 = vmatpush1.msra.mxu0 0.0
      %3617 = vmatprep.subr.mxu0 0.0
      %3618 = vmatpush1.msra.mxu0 0.0
      %3619 = vmatprep.subr.mxu0 0.0
      %3620 = vmatpush1.msra.mxu0 0.0
      %3621 = vmatprep.subr.mxu0 0.0
      %3622 = vmatpush1.msra.mxu0 0.0
      %3623 = vmatprep.subr.mxu0 0.0
      %3624 = vmatpush1.msra.mxu0 0.0
      %3625 = vmatprep.subr.mxu0 0.0
      %3626 = vmatpush1.msra.mxu0 0.0
      %3627 = vmatprep.subr.mxu0 0.0
      %3628 = vmatpush1.msra.mxu0 0.0
      %3629 = vmatprep.subr.mxu0 0.0
      %3630 = vmatpush1.msra.mxu0 0.0
      %3631 = vmatprep.subr.mxu0 0.0
      %3632 = vmatpush1.msra.mxu0 0.0
      %3633 = vmatprep.mubr.f32.mxu0 0.0
      %3634 = vmatmul.mubr.f32.gmra.mrb[0].mxu0 %v3567
      %v3635 = vpop.f32.mrb[0].mxu0
      %v3636 = vadd.f32 %v3559, %v3635
      %v3637 = vpop.f32.mrb[0].mxu0
      %v3638 = vadd.f32 %v3563, %v3637
      %3639 = vdwg.mxu0
      %v3642 = vcombine.low %v3636, %v3638
      %v3644 = vunpack.c.l.s4 1966171168
      %v3645 = vunpack.c.0.s8 %v3644
      %v3646 = vlaneseq
      %v3647 = vshrl.u32 %v3646, 7
      %v3648 = vsub.s32 %v3645, %v3647
      %v3649 = vrot.slane %v3642, %v3648
      %v3651 = vunpack.c.l.s4 1966171168
      %v3652 = vunpack.c.0.s8 %v3651
      %v3653 = vlaneseq
      %v3654 = vshrl.u32 %v3653, 7
      %v3655 = vsub.s32 %v3652, %v3654
      %v3656 = vrot.slane %v3649, %v3655
      %v3658 = vlaneseq
      %vm3659 = vcmp.ge.s32.totalorder %v3658, 0
      %vm3660 = vcmp.lt.s32.totalorder %v3658, 256
      %vm3661 = vmand %vm3659, %vm3660
      %3662 = vst.msk [vmem:[%s384] sm:$0x3] %vm3661, %v3656
      %p3663 = scmp.lt.s32.totalorder %s22, 1
      %s3664 = scalar_select %p3663, %s22, 1
      %s3665 = smul.addr %s3664, 2
      %s3666 = scalar_lea.vmem %s11, %s3665
      // Predicated region
      $region65: #{resnet_encoder_forward.1} parent=63 // pred_check
        %p3667 = pneg %p276
      $region66: #{resnet_encoder_forward.1} parent=63 // pred_check_branch
        %3669 = sbr.rel (%p3667) target = $region68
      $region67: #{resnet_encoder_forward.1} parent=63 // pred_region
        _
      $region68: #{resnet_encoder_forward.1} parent=63 // pred_fallthru
        _
    $region64: #{resnet_encoder_forward.1} parent=5 // pred_fallthru
      _
    %p3670 = scmp.le.s32.totalorder 2, %s17
    // Predicated region
    $region69: #{resnet_encoder_forward.1} parent=5 // pred_check
      %p3671 = pneg %p3670
    $region70: #{resnet_encoder_forward.1} parent=5 // pred_check_branch
      %3673 = sbr.rel (%p3671) target = $region72
    $region71: #{resnet_encoder_forward.1} parent=5 // pred_region
      %s3674 = ssub.s32 %s17, 2
      // Predicated region
      $region73: #{resnet_encoder_forward.1} parent=71 // pred_check
        %p3675 = pneg %p282
      $region74: #{resnet_encoder_forward.1} parent=71 // pred_check_branch
        %3677 = sbr.rel (%p3675) target = $region76
      $region75: #{resnet_encoder_forward.1} parent=71 // pred_region
        %p3678 = scmp.lt.s32.totalorder %s23, 1
        %s3679 = scalar_select %p3678, %s23, 1
        %s3680 = smul.addr %s3679, 2
        %s3681 = scalar_lea.vmem %s11, %s3680
      $region76: #{resnet_encoder_forward.1} parent=71 // pred_fallthru
        _
    $region72: #{resnet_encoder_forward.1} parent=5 // pred_fallthru
      _
  $region6: #{resnet_encoder_forward.1} parent=0 // loop_footer
    %s21 = sadd.s32 1, %s17
  $region7: #{resnet_encoder_forward.1} parent=0 // loop_footer_branch
    %16 = sbr.rel target = $region3
  $region8: #{resnet_encoder_forward.1} parent=0 // loop_exit
    _

</llo_original>
